<compile_context>
chip_gen: v5e
topology: v5e:2x2
jax: 0.10.0
libtpu: 0.0.40
codegen_flags: <defaults>
</compile_context>

<pallas_src>
import functools

import jax
import jax.numpy as jnp
from jax.experimental import pallas as pl
from jax.experimental.pallas import tpu as pltpu


def _round_up(x, m):
    return ((x + m - 1) // m) * m


def _mlp_stack(x, w_refs, num_res):
    """Pointwise stack: in->hidden (ReLU), num_res residual blocks, hidden->out.

    w_refs layout: [w_in, b_in, (w_r, b_r) * num_res, w_out, b_out].
    Weights are pre-transposed to (Cin, Cout) so there is no transpose on the
    MXU path.
    """
    h = jnp.dot(x, w_refs[0][...], preferred_element_type=jnp.float32) + w_refs[1][...]
    h = jnp.maximum(h, 0.0)
    for r in range(num_res):
        w = w_refs[2 + 2 * r][...]
        b = w_refs[3 + 2 * r][...]
        t = jnp.dot(h, w, preferred_element_type=jnp.float32) + b
        h = h + jnp.maximum(t, 0.0)          # residual: Cin == Cout (asserted in wrapper)
    return jnp.dot(h, w_refs[-2][...], preferred_element_type=jnp.float32) + w_refs[-1][...]


def _vqvae_kernel(*refs, num_res, num_embeddings):
    n_stack = 4 + 2 * num_res
    x_ref = refs[0]
    enc_refs = refs[1:1 + n_stack]
    cb_ref, cbt_ref, e2_ref = refs[1 + n_stack:4 + n_stack]
    dec_refs = refs[4 + n_stack:4 + 2 * n_stack]
    z_ref, idx_ref, q_ref, xr_ref = refs[4 + 2 * n_stack:]

    k = num_embeddings
    x = x_ref[...].astype(jnp.float32)                                   # (tm, Cin)

    # ---------------- encoder (fused, weights VMEM-resident) ----------------
    z = _mlp_stack(x, enc_refs, num_res)                                 # (tm, D)
    z_ref[...] = z.astype(z_ref.dtype)

    # ---------------- vector quantization ----------------
    # argmin_k ||z - e_k||^2 == argmin_k (||e_k||^2 - 2 z.e_k); the ||z||^2
    # term is a per-row constant (dropped), ||e_k||^2 precomputed in wrapper.
    cb = cb_ref[...]                                                     # (K, D)
    xe = jnp.dot(z, cbt_ref[...], preferred_element_type=jnp.float32)    # (tm, K)
    dist = e2_ref[...] - 2.0 * xe                                        # (tm, K)
    min_val = jnp.min(dist, axis=1, keepdims=True)                       # (tm, 1)
    iota = jax.lax.broadcasted_iota(jnp.int32, dist.shape, 1)            # (tm, K)
    # first-min on ties (matches torch.argmin); K sentinel only if a row is NaN
    idx_col = jnp.min(jnp.where(dist <= min_val, iota, k), axis=1, keepdims=True)
    idx_col = jnp.minimum(idx_col, k - 1)                                # NaN guard
    onehot = (iota == idx_col).astype(jnp.float32)                       # (tm, K)
    q = jnp.dot(onehot, cb, preferred_element_type=jnp.float32)          # (tm, D)
    q_ref[...] = q.astype(q_ref.dtype)

    # Lane-dense index output: (1, tm) row via the MXU from the one-hot
    # (exact for K < 2^24), instead of a lane-width-1 masked store.
    iota_row = jax.lax.broadcasted_iota(jnp.int32, (1, k), 1).astype(jnp.float32)
    idx_row = jax.lax.dot_general(iota_row, onehot, (((1,), (1,)), ((), ())),
                                  preferred_element_type=jnp.float32)    # (1, tm)
    idx_ref[...] = idx_row.astype(jnp.int32).reshape(1, 1, -1)

    # ---------------- decoder ----------------
    # Straight-through forward value of z + stop_gradient(q - z) is exactly q,
    # so feed q directly (saves two VALU passes over the tile).
    xr = _mlp_stack(q, dec_refs, num_res)                                # (tm, Cin)
    xr_ref[...] = xr.astype(xr_ref.dtype)


def vqvae_pallas(params, x_flat, *, tm=512):
    """x_flat: (N, Cin) channels-last rows -> (z, indices, q, x_recon)."""
    n, cin = x_flat.shape
    codebook = params["codebook"]
    k, d = codebook.shape
    num_res = len(params["enc_res"])

    tm = min(tm, _round_up(n, 8))
    n_pad = pl.cdiv(n, tm) * tm
    x_p = x_flat if n_pad == n else jnp.pad(x_flat, ((0, n_pad - n), (0, 0)))
    n_tiles = n_pad // tm

    def flat_stack(lin_in, res, lin_out):
        ws = [lin_in[0], lin_in[1]]
        for w, b in res:
            assert w.shape[0] == w.shape[1], "residual block requires Cin == Cout"
            ws += [w, b]
        ws += [lin_out[0], lin_out[1]]
        return ws

    enc_ws = flat_stack(params["enc_in"], params["enc_res"], params["enc_out"])
    dec_ws = flat_stack(params["dec_in"], params["dec_res"], params["dec_out"])

    # one-time wrapper-side precompute (no per-tile transpose / norm recompute)
    cbt = codebook.T                                       # (D, K)
    e2 = jnp.sum(codebook * codebook, axis=1)[None, :]     # (1, K)

    inputs = [x_p] + enc_ws + [codebook, cbt, e2] + dec_ws

    def full(arr):   # resident block: full array, constant index map
        return pl.BlockSpec(arr.shape, lambda i: (0, 0))

    in_specs = ([pl.BlockSpec((tm, cin), lambda i: (i, 0))]
                + [full(w) for w in enc_ws]
                + [full(codebook), full(cbt), full(e2)]
                + [full(w) for w in dec_ws])

    out_shape = (
        jax.ShapeDtypeStruct((n_pad, d), jnp.float32),      # z (encoder output)
        jax.ShapeDtypeStruct((n_tiles, 1, tm), jnp.int32),  # indices (lane-dense)
        jax.ShapeDtypeStruct((n_pad, d), jnp.float32),      # quantized (pre-ST)
        jax.ShapeDtypeStruct((n_pad, cin), jnp.float32),    # reconstruction
    )
    out_specs = (
        pl.BlockSpec((tm, d), lambda i: (i, 0)),
        pl.BlockSpec((1, 1, tm), lambda i: (i, 0, 0)),
        pl.BlockSpec((tm, d), lambda i: (i, 0)),
        pl.BlockSpec((tm, cin), lambda i: (i, 0)),
    )

    kernel = functools.partial(_vqvae_kernel, num_res=num_res, num_embeddings=k)
    z_p, idx_t, q_p, xr_p = pl.pallas_call(
        kernel,
        out_shape=out_shape,
        grid_spec=pltpu.PrefetchScalarGridSpec(
            num_scalar_prefetch=0,
            grid=(n_tiles,),
            in_specs=in_specs,
            out_specs=list(out_specs),
        ),
        compiler_params=pltpu.CompilerParams(
            dimension_semantics=("parallel",),
            vmem_limit_bytes=32 * 1024 * 1024),
    )(*inputs)

    z = z_p[:n]
    q = q_p[:n]
    xr = xr_p[:n]
    indices = idx_t.reshape(n_pad)[:n][:, None]             # (N, 1) int32
    return z, indices, q, xr


def init_params(key, input_dim, hidden_dim, embedding_dim, num_resblocks,
                num_embeddings):
    keys = jax.random.split(key, 5 + 2 * num_resblocks)
    it = iter(keys)

    def dense(cin, cout, scale):
        # weights stored pre-transposed: (Cin, Cout)
        w = jax.random.normal(next(it), (cin, cout), jnp.float32) * scale
        b = jnp.zeros((1, cout), jnp.float32)
        return w, b

    p = {}
    p["enc_in"] = dense(input_dim, hidden_dim, 0.1)
    p["enc_res"] = [dense(hidden_dim, hidden_dim, 0.05) for _ in range(num_resblocks)]
    p["enc_out"] = dense(hidden_dim, embedding_dim, 0.1)
    p["dec_in"] = dense(embedding_dim, hidden_dim, 0.1)
    p["dec_res"] = [dense(hidden_dim, hidden_dim, 0.05) for _ in range(num_resblocks)]
    p["dec_out"] = dense(hidden_dim, input_dim, 0.1)
    # codebook: uniform(-1/K, 1/K), matching nn.Embedding init in the module
    p["codebook"] = jax.random.uniform(
        next(it), (num_embeddings, embedding_dim), jnp.float32,
        minval=-1.0 / num_embeddings, maxval=1.0 / num_embeddings)
    return p


def vqvae_forward(params, x_nchw):
    b, c, h, w = x_nchw.shape
    d = params["codebook"].shape[1]

    # NCHW -> (N, C) channels-last flatten (matches the PyTorch permute+view)
    x = jnp.transpose(x_nchw, (0, 2, 3, 1)).reshape(-1, c)

    z, _indices, q, xr = vqvae_pallas(params, x)

    # straight-through estimator: forward value == q
    q_st = z + jax.lax.stop_gradient(q - z)

    def to_nchw(a, cc):
        return jnp.transpose(a.reshape(b, h, w, cc), (0, 3, 1, 2))

    encoder_output = to_nchw(z, d)
    quantized = to_nchw(q_st, d)
    ori_quantized = to_nchw(q, d)
    x_recon = to_nchw(xr, c)
    return encoder_output, quantized, ori_quantized, x_recon


if __name__ == "__main__":
    # small shapes: batch=2, input_dim=4, spatial=16x16, hidden=32,
    # embedding_dim=16, num_resblocks=2, num_embeddings=128
    B, INPUT_DIM, H, W = 2, 4, 16, 16
    HIDDEN_DIM, EMBEDDING_DIM = 32, 16
    NUM_RESBLOCKS, NUM_EMBEDDINGS = 2, 128

    key = jax.random.PRNGKey(0)
    k_params, k_x = jax.random.split(key)
    params = init_params(k_params, INPUT_DIM, HIDDEN_DIM, EMBEDDING_DIM,
                         NUM_RESBLOCKS, NUM_EMBEDDINGS)
    x = jax.random.normal(k_x, (B, INPUT_DIM, H, W), jnp.float32)

    fwd = jax.jit(vqvae_forward)
    enc_out, quantized, ori_quantized, x_recon = fwd(params, x)
    jax.block_until_ready((enc_out, quantized, ori_quantized, x_recon))

    assert enc_out.shape == (B, EMBEDDING_DIM, H, W)
    assert quantized.shape == (B, EMBEDDING_DIM, H, W)
    assert ori_quantized.shape == (B, EMBEDDING_DIM, H, W)
    assert x_recon.shape == (B, INPUT_DIM, H, W)
    # forward-value check of the straight-through estimator
    assert jnp.allclose(quantized, ori_quantized, atol=1e-5)

    print("KERNEL_OK")
</pallas_src>

<mosaic_0001>
module attributes {stable_mosaic.version = 11 : i64} {
  func.func @_vqvae_kernel(%arg0: i32, %arg1: memref<512x4xf32, #tpu.memory_space<vmem>>, %arg2: memref<4x32xf32, #tpu.memory_space<vmem>>, %arg3: memref<1x32xf32, #tpu.memory_space<vmem>>, %arg4: memref<32x32xf32, #tpu.memory_space<vmem>>, %arg5: memref<1x32xf32, #tpu.memory_space<vmem>>, %arg6: memref<32x32xf32, #tpu.memory_space<vmem>>, %arg7: memref<1x32xf32, #tpu.memory_space<vmem>>, %arg8: memref<32x16xf32, #tpu.memory_space<vmem>>, %arg9: memref<1x16xf32, #tpu.memory_space<vmem>>, %arg10: memref<128x16xf32, #tpu.memory_space<vmem>>, %arg11: memref<16x128xf32, #tpu.memory_space<vmem>>, %arg12: memref<1x128xf32, #tpu.memory_space<vmem>>, %arg13: memref<16x32xf32, #tpu.memory_space<vmem>>, %arg14: memref<1x32xf32, #tpu.memory_space<vmem>>, %arg15: memref<32x32xf32, #tpu.memory_space<vmem>>, %arg16: memref<1x32xf32, #tpu.memory_space<vmem>>, %arg17: memref<32x32xf32, #tpu.memory_space<vmem>>, %arg18: memref<1x32xf32, #tpu.memory_space<vmem>>, %arg19: memref<32x4xf32, #tpu.memory_space<vmem>>, %arg20: memref<1x4xf32, #tpu.memory_space<vmem>>, %arg21: memref<512x16xf32, #tpu.memory_space<vmem>>, %arg22: memref<1x1x512xi32, #tpu.memory_space<vmem>>, %arg23: memref<512x16xf32, #tpu.memory_space<vmem>>, %arg24: memref<512x4xf32, #tpu.memory_space<vmem>>) attributes {dimension_semantics = [#tpu.dimension_semantics<parallel>], iteration_bounds = array<i64: 1>, scalar_prefetch = 0 : i64, scratch_operands = 0 : i64, tpu.core_type = #tpu.core_type<tc>, window_params = [{transform_indices = @transform_0, window_bounds = array<i64: 512, 4>}, {pipeline_mode = #tpu.pipeline_mode<synchronous>, transform_indices = @transform_1, window_bounds = array<i64: 4, 32>}, {pipeline_mode = #tpu.pipeline_mode<synchronous>, transform_indices = @transform_2, window_bounds = array<i64: 1, 32>}, {pipeline_mode = #tpu.pipeline_mode<synchronous>, transform_indices = @transform_3, window_bounds = array<i64: 32, 32>}, {pipeline_mode = #tpu.pipeline_mode<synchronous>, transform_indices = @transform_4, window_bounds = array<i64: 1, 32>}, {pipeline_mode = #tpu.pipeline_mode<synchronous>, transform_indices = @transform_5, window_bounds = array<i64: 32, 32>}, {pipeline_mode = #tpu.pipeline_mode<synchronous>, transform_indices = @transform_6, window_bounds = array<i64: 1, 32>}, {pipeline_mode = #tpu.pipeline_mode<synchronous>, transform_indices = @transform_7, window_bounds = array<i64: 32, 16>}, {pipeline_mode = #tpu.pipeline_mode<synchronous>, transform_indices = @transform_8, window_bounds = array<i64: 1, 16>}, {pipeline_mode = #tpu.pipeline_mode<synchronous>, transform_indices = @transform_9, window_bounds = array<i64: 128, 16>}, {pipeline_mode = #tpu.pipeline_mode<synchronous>, transform_indices = @transform_10, window_bounds = array<i64: 16, 128>}, {pipeline_mode = #tpu.pipeline_mode<synchronous>, transform_indices = @transform_11, window_bounds = array<i64: 1, 128>}, {pipeline_mode = #tpu.pipeline_mode<synchronous>, transform_indices = @transform_12, window_bounds = array<i64: 16, 32>}, {pipeline_mode = #tpu.pipeline_mode<synchronous>, transform_indices = @transform_13, window_bounds = array<i64: 1, 32>}, {pipeline_mode = #tpu.pipeline_mode<synchronous>, transform_indices = @transform_14, window_bounds = array<i64: 32, 32>}, {pipeline_mode = #tpu.pipeline_mode<synchronous>, transform_indices = @transform_15, window_bounds = array<i64: 1, 32>}, {pipeline_mode = #tpu.pipeline_mode<synchronous>, transform_indices = @transform_16, window_bounds = array<i64: 32, 32>}, {pipeline_mode = #tpu.pipeline_mode<synchronous>, transform_indices = @transform_17, window_bounds = array<i64: 1, 32>}, {pipeline_mode = #tpu.pipeline_mode<synchronous>, transform_indices = @transform_18, window_bounds = array<i64: 32, 4>}, {pipeline_mode = #tpu.pipeline_mode<synchronous>, transform_indices = @transform_19, window_bounds = array<i64: 1, 4>}, {transform_indices = @transform_20, window_bounds = array<i64: 512, 16>}, {transform_indices = @transform_21, window_bounds = array<i64: 1, 1, 512>}, {transform_indices = @transform_22, window_bounds = array<i64: 512, 16>}, {transform_indices = @transform_23, window_bounds = array<i64: 512, 4>}]} {
    %c0 = arith.constant 0 : index
    %c0_0 = arith.constant 0 : index
    %0 = vector.load %arg1[%c0, %c0_0] : memref<512x4xf32, #tpu.memory_space<vmem>>, vector<512x4xf32>
    %c0_1 = arith.constant 0 : index
    %c0_2 = arith.constant 0 : index
    %1 = vector.load %arg2[%c0_1, %c0_2] : memref<4x32xf32, #tpu.memory_space<vmem>>, vector<4x32xf32>
    %cst = arith.constant dense<0.000000e+00> : vector<512x32xf32>
    %2 = tpu.matmul %0, %1, %cst {dimension_numbers = #tpu.dot_dimension_numbers<[1], [0], [0], [1], [0, 0, 1, 1], [], []>} : vector<512x4xf32>, vector<4x32xf32>, vector<512x32xf32> -> vector<512x32xf32>
    %c0_3 = arith.constant 0 : index
    %c0_4 = arith.constant 0 : index
    %3 = vector.load %arg3[%c0_3, %c0_4] : memref<1x32xf32, #tpu.memory_space<vmem>>, vector<1x32xf32>
    %4 = vector.broadcast %3 : vector<1x32xf32> to vector<512x32xf32>
    %5 = arith.addf %2, %4 : vector<512x32xf32>
    %cst_5 = arith.constant 0.000000e+00 : f32
    %6 = vector.broadcast %cst_5 : f32 to vector<512x32xf32>
    %7 = arith.maximumf %5, %6 : vector<512x32xf32>
    %c0_6 = arith.constant 0 : index
    %c0_7 = arith.constant 0 : index
    %8 = vector.load %arg4[%c0_6, %c0_7] : memref<32x32xf32, #tpu.memory_space<vmem>>, vector<32x32xf32>
    %c0_8 = arith.constant 0 : index
    %c0_9 = arith.constant 0 : index
    %9 = vector.load %arg5[%c0_8, %c0_9] : memref<1x32xf32, #tpu.memory_space<vmem>>, vector<1x32xf32>
    %cst_10 = arith.constant dense<0.000000e+00> : vector<512x32xf32>
    %10 = tpu.matmul %7, %8, %cst_10 {dimension_numbers = #tpu.dot_dimension_numbers<[1], [0], [0], [1], [0, 0, 1, 1], [], []>} : vector<512x32xf32>, vector<32x32xf32>, vector<512x32xf32> -> vector<512x32xf32>
    %11 = vector.broadcast %9 : vector<1x32xf32> to vector<512x32xf32>
    %12 = arith.addf %10, %11 : vector<512x32xf32>
    %cst_11 = arith.constant 0.000000e+00 : f32
    %13 = vector.broadcast %cst_11 : f32 to vector<512x32xf32>
    %14 = arith.maximumf %12, %13 : vector<512x32xf32>
    %15 = arith.addf %7, %14 : vector<512x32xf32>
    %c0_12 = arith.constant 0 : index
    %c0_13 = arith.constant 0 : index
    %16 = vector.load %arg6[%c0_12, %c0_13] : memref<32x32xf32, #tpu.memory_space<vmem>>, vector<32x32xf32>
    %c0_14 = arith.constant 0 : index
    %c0_15 = arith.constant 0 : index
    %17 = vector.load %arg7[%c0_14, %c0_15] : memref<1x32xf32, #tpu.memory_space<vmem>>, vector<1x32xf32>
    %cst_16 = arith.constant dense<0.000000e+00> : vector<512x32xf32>
    %18 = tpu.matmul %15, %16, %cst_16 {dimension_numbers = #tpu.dot_dimension_numbers<[1], [0], [0], [1], [0, 0, 1, 1], [], []>} : vector<512x32xf32>, vector<32x32xf32>, vector<512x32xf32> -> vector<512x32xf32>
    %19 = vector.broadcast %17 : vector<1x32xf32> to vector<512x32xf32>
    %20 = arith.addf %18, %19 : vector<512x32xf32>
    %cst_17 = arith.constant 0.000000e+00 : f32
    %21 = vector.broadcast %cst_17 : f32 to vector<512x32xf32>
    %22 = arith.maximumf %20, %21 : vector<512x32xf32>
    %23 = arith.addf %15, %22 : vector<512x32xf32>
    %c0_18 = arith.constant 0 : index
    %c0_19 = arith.constant 0 : index
    %24 = vector.load %arg8[%c0_18, %c0_19] : memref<32x16xf32, #tpu.memory_space<vmem>>, vector<32x16xf32>
    %cst_20 = arith.constant dense<0.000000e+00> : vector<512x16xf32>
    %25 = tpu.matmul %23, %24, %cst_20 {dimension_numbers = #tpu.dot_dimension_numbers<[1], [0], [0], [1], [0, 0, 1, 1], [], []>} : vector<512x32xf32>, vector<32x16xf32>, vector<512x16xf32> -> vector<512x16xf32>
    %c0_21 = arith.constant 0 : index
    %c0_22 = arith.constant 0 : index
    %26 = vector.load %arg9[%c0_21, %c0_22] : memref<1x16xf32, #tpu.memory_space<vmem>>, vector<1x16xf32>
    %27 = vector.broadcast %26 : vector<1x16xf32> to vector<512x16xf32>
    %28 = arith.addf %25, %27 : vector<512x16xf32>
    %c0_23 = arith.constant 0 : index
    %c0_24 = arith.constant 0 : index
    %29 = vector.load %arg21[%c0_23, %c0_24] : memref<512x16xf32, #tpu.memory_space<vmem>>, vector<512x16xf32>
    tpu.vector_store %arg21[%c0_23, %c0_24], %28 {strides = array<i32>} : memref<512x16xf32, #tpu.memory_space<vmem>>, vector<512x16xf32>,
    %c0_25 = arith.constant 0 : index
    %c0_26 = arith.constant 0 : index
    %30 = vector.load %arg10[%c0_25, %c0_26] : memref<128x16xf32, #tpu.memory_space<vmem>>, vector<128x16xf32>
    %c0_27 = arith.constant 0 : index
    %c0_28 = arith.constant 0 : index
    %31 = vector.load %arg11[%c0_27, %c0_28] : memref<16x128xf32, #tpu.memory_space<vmem>>, vector<16x128xf32>
    %cst_29 = arith.constant dense<0.000000e+00> : vector<512x128xf32>
    %32 = tpu.matmul %28, %31, %cst_29 {dimension_numbers = #tpu.dot_dimension_numbers<[1], [0], [0], [1], [0, 0, 1, 1], [], []>} : vector<512x16xf32>, vector<16x128xf32>, vector<512x128xf32> -> vector<512x128xf32>
    %c0_30 = arith.constant 0 : index
    %c0_31 = arith.constant 0 : index
    %33 = vector.load %arg12[%c0_30, %c0_31] : memref<1x128xf32, #tpu.memory_space<vmem>>, vector<1x128xf32>
    %cst_32 = arith.constant 2.000000e+00 : f32
    %34 = vector.broadcast %cst_32 : f32 to vector<512x128xf32>
    %35 = arith.mulf %34, %32 : vector<512x128xf32>
    %36 = vector.broadcast %33 : vector<1x128xf32> to vector<512x128xf32>
    %37 = arith.subf %36, %35 : vector<512x128xf32>
    %cst_33 = arith.constant dense<0x7F800000> : vector<512xf32>
    %38 = vector.multi_reduction <minimumf>, %37, %cst_33 [1] : vector<512x128xf32> to vector<512xf32>
    %39 = vector.shape_cast %38 : vector<512xf32> to vector<512x1xf32>
    %40 = tpu.iota {dimensions = array<i32: 1>} : vector<512x128xi32>
    %41 = vector.broadcast %39 : vector<512x1xf32> to vector<512x128xf32>
    %42 = arith.cmpf ole, %37, %41 : vector<512x128xf32>
    %c128_i32 = arith.constant 128 : i32
    %43 = vector.broadcast %c128_i32 : i32 to vector<512x128xi32>
    %44 = arith.select %42, %40, %43 : vector<512x128xi1>, vector<512x128xi32>
    %cst_34 = arith.constant dense<2147483647> : vector<512xi32>
    %45 = vector.multi_reduction <minsi>, %44, %cst_34 [1] : vector<512x128xi32> to vector<512xi32>
    %46 = vector.shape_cast %45 : vector<512xi32> to vector<512x1xi32>
    %c127_i32 = arith.constant 127 : i32
    %47 = vector.broadcast %c127_i32 : i32 to vector<512x1xi32>
    %48 = arith.minsi %46, %47 : vector<512x1xi32>
    %49 = vector.broadcast %48 : vector<512x1xi32> to vector<512x128xi32>
    %50 = arith.cmpi eq, %40, %49 : vector<512x128xi32>
    %51 = arith.extui %50 : vector<512x128xi1> to vector<512x128xi32>
    %52 = arith.sitofp %51 : vector<512x128xi32> to vector<512x128xf32>
    %cst_35 = arith.constant dense<0.000000e+00> : vector<512x16xf32>
    %53 = tpu.matmul %52, %30, %cst_35 {dimension_numbers = #tpu.dot_dimension_numbers<[1], [0], [0], [1], [0, 0, 1, 1], [], []>} : vector<512x128xf32>, vector<128x16xf32>, vector<512x16xf32> -> vector<512x16xf32>
    %c0_36 = arith.constant 0 : index
    %c0_37 = arith.constant 0 : index
    %54 = vector.load %arg23[%c0_36, %c0_37] : memref<512x16xf32, #tpu.memory_space<vmem>>, vector<512x16xf32>
    tpu.vector_store %arg23[%c0_36, %c0_37], %53 {strides = array<i32>} : memref<512x16xf32, #tpu.memory_space<vmem>>, vector<512x16xf32>,
    %55 = tpu.iota {dimensions = array<i32: 1>} : vector<1x128xi32>
    %56 = arith.sitofp %55 : vector<1x128xi32> to vector<1x128xf32>
    %cst_38 = arith.constant dense<0.000000e+00> : vector<1x512xf32>
    %57 = tpu.matmul %56, %52, %cst_38 {dimension_numbers = #tpu.dot_dimension_numbers<[1], [1], [0], [0], [0, 0, 1, 0], [], []>} : vector<1x128xf32>, vector<512x128xf32>, vector<1x512xf32> -> vector<1x512xf32>
    %58 = arith.fptosi %57 : vector<1x512xf32> to vector<1x512xi32>
    %59 = vector.shape_cast %58 : vector<1x512xi32> to vector<1x1x512xi32>
    %c0_39 = arith.constant 0 : index
    %c0_40 = arith.constant 0 : index
    %c0_41 = arith.constant 0 : index
    %60 = vector.load %arg22[%c0_39, %c0_40, %c0_41] : memref<1x1x512xi32, #tpu.memory_space<vmem>>, vector<1x1x512xi32>
    tpu.vector_store %arg22[%c0_39, %c0_40, %c0_41], %59 {strides = array<i32>} : memref<1x1x512xi32, #tpu.memory_space<vmem>>, vector<1x1x512xi32>,
    %c0_42 = arith.constant 0 : index
    %c0_43 = arith.constant 0 : index
    %61 = vector.load %arg13[%c0_42, %c0_43] : memref<16x32xf32, #tpu.memory_space<vmem>>, vector<16x32xf32>
    %cst_44 = arith.constant dense<0.000000e+00> : vector<512x32xf32>
    %62 = tpu.matmul %53, %61, %cst_44 {dimension_numbers = #tpu.dot_dimension_numbers<[1], [0], [0], [1], [0, 0, 1, 1], [], []>} : vector<512x16xf32>, vector<16x32xf32>, vector<512x32xf32> -> vector<512x32xf32>
    %c0_45 = arith.constant 0 : index
    %c0_46 = arith.constant 0 : index
    %63 = vector.load %arg14[%c0_45, %c0_46] : memref<1x32xf32, #tpu.memory_space<vmem>>, vector<1x32xf32>
    %64 = vector.broadcast %63 : vector<1x32xf32> to vector<512x32xf32>
    %65 = arith.addf %62, %64 : vector<512x32xf32>
    %cst_47 = arith.constant 0.000000e+00 : f32
    %66 = vector.broadcast %cst_47 : f32 to vector<512x32xf32>
    %67 = arith.maximumf %65, %66 : vector<512x32xf32>
    %c0_48 = arith.constant 0 : index
    %c0_49 = arith.constant 0 : index
    %68 = vector.load %arg15[%c0_48, %c0_49] : memref<32x32xf32, #tpu.memory_space<vmem>>, vector<32x32xf32>
    %c0_50 = arith.constant 0 : index
    %c0_51 = arith.constant 0 : index
    %69 = vector.load %arg16[%c0_50, %c0_51] : memref<1x32xf32, #tpu.memory_space<vmem>>, vector<1x32xf32>
    %cst_52 = arith.constant dense<0.000000e+00> : vector<512x32xf32>
    %70 = tpu.matmul %67, %68, %cst_52 {dimension_numbers = #tpu.dot_dimension_numbers<[1], [0], [0], [1], [0, 0, 1, 1], [], []>} : vector<512x32xf32>, vector<32x32xf32>, vector<512x32xf32> -> vector<512x32xf32>
    %71 = vector.broadcast %69 : vector<1x32xf32> to vector<512x32xf32>
    %72 = arith.addf %70, %71 : vector<512x32xf32>
    %cst_53 = arith.constant 0.000000e+00 : f32
    %73 = vector.broadcast %cst_53 : f32 to vector<512x32xf32>
    %74 = arith.maximumf %72, %73 : vector<512x32xf32>
    %75 = arith.addf %67, %74 : vector<512x32xf32>
    %c0_54 = arith.constant 0 : index
    %c0_55 = arith.constant 0 : index
    %76 = vector.load %arg17[%c0_54, %c0_55] : memref<32x32xf32, #tpu.memory_space<vmem>>, vector<32x32xf32>
    %c0_56 = arith.constant 0 : index
    %c0_57 = arith.constant 0 : index
    %77 = vector.load %arg18[%c0_56, %c0_57] : memref<1x32xf32, #tpu.memory_space<vmem>>, vector<1x32xf32>
    %cst_58 = arith.constant dense<0.000000e+00> : vector<512x32xf32>
    %78 = tpu.matmul %75, %76, %cst_58 {dimension_numbers = #tpu.dot_dimension_numbers<[1], [0], [0], [1], [0, 0, 1, 1], [], []>} : vector<512x32xf32>, vector<32x32xf32>, vector<512x32xf32> -> vector<512x32xf32>
    %79 = vector.broadcast %77 : vector<1x32xf32> to vector<512x32xf32>
    %80 = arith.addf %78, %79 : vector<512x32xf32>
    %cst_59 = arith.constant 0.000000e+00 : f32
    %81 = vector.broadcast %cst_59 : f32 to vector<512x32xf32>
    %82 = arith.maximumf %80, %81 : vector<512x32xf32>
    %83 = arith.addf %75, %82 : vector<512x32xf32>
    %c0_60 = arith.constant 0 : index
    %c0_61 = arith.constant 0 : index
    %84 = vector.load %arg19[%c0_60, %c0_61] : memref<32x4xf32, #tpu.memory_space<vmem>>, vector<32x4xf32>
    %cst_62 = arith.constant dense<0.000000e+00> : vector<512x4xf32>
    %85 = tpu.matmul %83, %84, %cst_62 {dimension_numbers = #tpu.dot_dimension_numbers<[1], [0], [0], [1], [0, 0, 1, 1], [], []>} : vector<512x32xf32>, vector<32x4xf32>, vector<512x4xf32> -> vector<512x4xf32>
    %c0_63 = arith.constant 0 : index
    %c0_64 = arith.constant 0 : index
    %86 = vector.load %arg20[%c0_63, %c0_64] : memref<1x4xf32, #tpu.memory_space<vmem>>, vector<1x4xf32>
    %87 = vector.broadcast %86 : vector<1x4xf32> to vector<512x4xf32>
    %88 = arith.addf %85, %87 : vector<512x4xf32>
    %c0_65 = arith.constant 0 : index
    %c0_66 = arith.constant 0 : index
    %89 = vector.load %arg24[%c0_65, %c0_66] : memref<512x4xf32, #tpu.memory_space<vmem>>, vector<512x4xf32>
    tpu.vector_store %arg24[%c0_65, %c0_66], %88 {strides = array<i32>} : memref<512x4xf32, #tpu.memory_space<vmem>>, vector<512x4xf32>,
    return
  }
  func.func @transform_0(%arg0: i32) -> (i32, i32) {
    %c0_i32 = arith.constant 0 : i32
    %c0_i32_0 = arith.constant 0 : i32
    return %arg0, %c0_i32 : i32, i32
  }
  func.func @transform_1(%arg0: i32) -> (i32, i32) {
    %c0_i32 = arith.constant 0 : i32
    %c0_i32_0 = arith.constant 0 : i32
    %c0_i32_1 = arith.constant 0 : i32
    return %c0_i32, %c0_i32_0 : i32, i32
  }
  func.func @transform_2(%arg0: i32) -> (i32, i32) {
    %c0_i32 = arith.constant 0 : i32
    %c0_i32_0 = arith.constant 0 : i32
    %c0_i32_1 = arith.constant 0 : i32
    return %c0_i32, %c0_i32_0 : i32, i32
  }
  func.func @transform_3(%arg0: i32) -> (i32, i32) {
    %c0_i32 = arith.constant 0 : i32
    %c0_i32_0 = arith.constant 0 : i32
    %c0_i32_1 = arith.constant 0 : i32
    return %c0_i32, %c0_i32_0 : i32, i32
  }
  func.func @transform_4(%arg0: i32) -> (i32, i32) {
    %c0_i32 = arith.constant 0 : i32
    %c0_i32_0 = arith.constant 0 : i32
    %c0_i32_1 = arith.constant 0 : i32
    return %c0_i32, %c0_i32_0 : i32, i32
  }
  func.func @transform_5(%arg0: i32) -> (i32, i32) {
    %c0_i32 = arith.constant 0 : i32
    %c0_i32_0 = arith.constant 0 : i32
    %c0_i32_1 = arith.constant 0 : i32
    return %c0_i32, %c0_i32_0 : i32, i32
  }
  func.func @transform_6(%arg0: i32) -> (i32, i32) {
    %c0_i32 = arith.constant 0 : i32
    %c0_i32_0 = arith.constant 0 : i32
    %c0_i32_1 = arith.constant 0 : i32
    return %c0_i32, %c0_i32_0 : i32, i32
  }
  func.func @transform_7(%arg0: i32) -> (i32, i32) {
    %c0_i32 = arith.constant 0 : i32
    %c0_i32_0 = arith.constant 0 : i32
    %c0_i32_1 = arith.constant 0 : i32
    return %c0_i32, %c0_i32_0 : i32, i32
  }
  func.func @transform_8(%arg0: i32) -> (i32, i32) {
    %c0_i32 = arith.constant 0 : i32
    %c0_i32_0 = arith.constant 0 : i32
    %c0_i32_1 = arith.constant 0 : i32
    return %c0_i32, %c0_i32_0 : i32, i32
  }
  func.func @transform_9(%arg0: i32) -> (i32, i32) {
    %c0_i32 = arith.constant 0 : i32
    %c0_i32_0 = arith.constant 0 : i32
    %c0_i32_1 = arith.constant 0 : i32
    return %c0_i32, %c0_i32_0 : i32, i32
  }
  func.func @transform_10(%arg0: i32) -> (i32, i32) {
    %c0_i32 = arith.constant 0 : i32
    %c0_i32_0 = arith.constant 0 : i32
    %c0_i32_1 = arith.constant 0 : i32
    return %c0_i32, %c0_i32_0 : i32, i32
  }
  func.func @transform_11(%arg0: i32) -> (i32, i32) {
    %c0_i32 = arith.constant 0 : i32
    %c0_i32_0 = arith.constant 0 : i32
    %c0_i32_1 = arith.constant 0 : i32
    return %c0_i32, %c0_i32_0 : i32, i32
  }
  func.func @transform_12(%arg0: i32) -> (i32, i32) {
    %c0_i32 = arith.constant 0 : i32
    %c0_i32_0 = arith.constant 0 : i32
    %c0_i32_1 = arith.constant 0 : i32
    return %c0_i32, %c0_i32_0 : i32, i32
  }
  func.func @transform_13(%arg0: i32) -> (i32, i32) {
    %c0_i32 = arith.constant 0 : i32
    %c0_i32_0 = arith.constant 0 : i32
    %c0_i32_1 = arith.constant 0 : i32
    return %c0_i32, %c0_i32_0 : i32, i32
  }
  func.func @transform_14(%arg0: i32) -> (i32, i32) {
    %c0_i32 = arith.constant 0 : i32
    %c0_i32_0 = arith.constant 0 : i32
    %c0_i32_1 = arith.constant 0 : i32
    return %c0_i32, %c0_i32_0 : i32, i32
  }
  func.func @transform_15(%arg0: i32) -> (i32, i32) {
    %c0_i32 = arith.constant 0 : i32
    %c0_i32_0 = arith.constant 0 : i32
    %c0_i32_1 = arith.constant 0 : i32
    return %c0_i32, %c0_i32_0 : i32, i32
  }
  func.func @transform_16(%arg0: i32) -> (i32, i32) {
    %c0_i32 = arith.constant 0 : i32
    %c0_i32_0 = arith.constant 0 : i32
    %c0_i32_1 = arith.constant 0 : i32
    return %c0_i32, %c0_i32_0 : i32, i32
  }
  func.func @transform_17(%arg0: i32) -> (i32, i32) {
    %c0_i32 = arith.constant 0 : i32
    %c0_i32_0 = arith.constant 0 : i32
    %c0_i32_1 = arith.constant 0 : i32
    return %c0_i32, %c0_i32_0 : i32, i32
  }
  func.func @transform_18(%arg0: i32) -> (i32, i32) {
    %c0_i32 = arith.constant 0 : i32
    %c0_i32_0 = arith.constant 0 : i32
    %c0_i32_1 = arith.constant 0 : i32
    return %c0_i32, %c0_i32_0 : i32, i32
  }
  func.func @transform_19(%arg0: i32) -> (i32, i32) {
    %c0_i32 = arith.constant 0 : i32
    %c0_i32_0 = arith.constant 0 : i32
    %c0_i32_1 = arith.constant 0 : i32
    return %c0_i32, %c0_i32_0 : i32, i32
  }
  func.func @transform_20(%arg0: i32) -> (i32, i32) {
    %c0_i32 = arith.constant 0 : i32
    %c0_i32_0 = arith.constant 0 : i32
    return %arg0, %c0_i32 : i32, i32
  }
  func.func @transform_21(%arg0: i32) -> (i32, i32, i32) {
    %c0_i32 = arith.constant 0 : i32
    %c0_i32_0 = arith.constant 0 : i32
    %c0_i32_1 = arith.constant 0 : i32
    return %arg0, %c0_i32, %c0_i32_0 : i32, i32, i32
  }
  func.func @transform_22(%arg0: i32) -> (i32, i32) {
    %c0_i32 = arith.constant 0 : i32
    %c0_i32_0 = arith.constant 0 : i32
    return %arg0, %c0_i32 : i32, i32
  }
  func.func @transform_23(%arg0: i32) -> (i32, i32) {
    %c0_i32 = arith.constant 0 : i32
    %c0_i32_0 = arith.constant 0 : i32
    return %arg0, %c0_i32 : i32, i32
  }
}

</mosaic_0001>

<llo_original>
// kernel: vqvae_forward.1
$region0: #{vqvae_forward.1}
  #allocation0 [shape = 'u32[]', space=smem, size = 0x4, offset = 0x4, fixed_abs, tag = 'smem constant byte address 0x4 - core index']
  #allocation1 [shape = 'u32[72,128]{1,0:T(1,128)}', space=vmem, size = 0x9000, scoped, tag = 'internal scratch']
  %s0 = inlined_call_operand.vmem [shape: f32[512,4], index: 0, kind: input, shape index: {}]
  %s1 = inlined_call_operand.vmem [shape: f32[4,32], index: 1, kind: input, shape index: {}]
  %s2 = inlined_call_operand.vmem [shape: f32[1,32], index: 2, kind: input, shape index: {}]
  %s3 = inlined_call_operand.vmem [shape: f32[32,32], index: 3, kind: input, shape index: {}]
  %s4 = inlined_call_operand.vmem [shape: f32[1,32], index: 4, kind: input, shape index: {}]
  %s5 = inlined_call_operand.vmem [shape: f32[32,32], index: 5, kind: input, shape index: {}]
  %s6 = inlined_call_operand.vmem [shape: f32[1,32], index: 6, kind: input, shape index: {}]
  %s7 = inlined_call_operand.vmem [shape: f32[32,16], index: 7, kind: input, shape index: {}]
  %s8 = inlined_call_operand.vmem [shape: f32[1,16], index: 8, kind: input, shape index: {}]
  %s9 = inlined_call_operand.vmem [shape: f32[128,16], index: 9, kind: input, shape index: {}]
  %s10 = inlined_call_operand.vmem [shape: f32[16,128], index: 10, kind: input, shape index: {}]
  %s11 = inlined_call_operand.vmem [shape: f32[1,128], index: 11, kind: input, shape index: {}]
  %s12 = inlined_call_operand.vmem [shape: f32[16,32], index: 12, kind: input, shape index: {}]
  %s13 = inlined_call_operand.vmem [shape: f32[1,32], index: 13, kind: input, shape index: {}]
  %s14 = inlined_call_operand.vmem [shape: f32[32,32], index: 14, kind: input, shape index: {}]
  %s15 = inlined_call_operand.vmem [shape: f32[1,32], index: 15, kind: input, shape index: {}]
  %s16 = inlined_call_operand.vmem [shape: f32[32,32], index: 16, kind: input, shape index: {}]
  %s17 = inlined_call_operand.vmem [shape: f32[1,32], index: 17, kind: input, shape index: {}]
  %s18 = inlined_call_operand.vmem [shape: f32[32,4], index: 18, kind: input, shape index: {}]
  %s19 = inlined_call_operand.vmem [shape: f32[1,4], index: 19, kind: input, shape index: {}]
  %s20 = inlined_call_operand.vmem [shape: f32[512,16], index: 20, kind: output, shape index: {0}]
  %s21 = inlined_call_operand.hbm [shape: s32[1,1,512], index: 21, kind: output, shape index: {1}]
  %s22 = inlined_call_operand.vmem [shape: f32[512,16], index: 22, kind: output, shape index: {2}]
  %s23 = inlined_call_operand.vmem [shape: f32[512,4], index: 23, kind: output, shape index: {3}]
  %24 = xla_tuple %s20, %s21, %s22, %s23
  %s25 = sld [smem:[#allocation0]]
  $region114: #{vqvae_forward.1} parent=0
    _
  %s27 = ssub.s32 1, %s25
  %s28 = scalar_select 0, %s27, %s25
  $region1: #{vqvae_forward.1} parent=0
    #allocation2 [shape = 'u8[2048]{0}', space=vmem, size = 0x800, scoped, tag = 'output window, operand 1, single buffered']
    #allocation3 [shape = 's32[1]{0}', space=sflag, size = 0x4, scoped, tag = 'scoped memory for vqvae_forward.1']
    %29 = vsyncpa [#allocation3], 0
    // Predicated region
    $region2: #{vqvae_forward.1} parent=1 // pred_check
      _
    $region3: #{vqvae_forward.1} parent=1 // pred_check_branch
      %31 = sbr.rel (0) target = $region5
    $region4: #{vqvae_forward.1} parent=1 // pred_region
      _
    $region5: #{vqvae_forward.1} parent=1 // pred_fallthru
      _
    // Predicated region
    $region6: #{vqvae_forward.1} parent=1 // pred_check
      _
    $region7: #{vqvae_forward.1} parent=1 // pred_check_branch
      %33 = sbr.rel (0) target = $region9
    $region8: #{vqvae_forward.1} parent=1 // pred_region
      _
    $region9: #{vqvae_forward.1} parent=1 // pred_fallthru
      _
    // Predicated region
    $region10: #{vqvae_forward.1} parent=1 // pred_check
      _
    $region11: #{vqvae_forward.1} parent=1 // pred_check_branch
      %35 = sbr.rel (0) target = $region13
    $region12: #{vqvae_forward.1} parent=1 // pred_region
      _
    $region13: #{vqvae_forward.1} parent=1 // pred_fallthru
      _
    // Predicated region
    $region14: #{vqvae_forward.1} parent=1 // pred_check
      _
    $region15: #{vqvae_forward.1} parent=1 // pred_check_branch
      %37 = sbr.rel (0) target = $region17
    $region16: #{vqvae_forward.1} parent=1 // pred_region
      _
    $region17: #{vqvae_forward.1} parent=1 // pred_fallthru
      _
    // Predicated region
    $region18: #{vqvae_forward.1} parent=1 // pred_check
      _
    $region19: #{vqvae_forward.1} parent=1 // pred_check_branch
      %39 = sbr.rel (0) target = $region21
    $region20: #{vqvae_forward.1} parent=1 // pred_region
      _
    $region21: #{vqvae_forward.1} parent=1 // pred_fallthru
      _
    // Predicated region
    $region22: #{vqvae_forward.1} parent=1 // pred_check
      _
    $region23: #{vqvae_forward.1} parent=1 // pred_check_branch
      %41 = sbr.rel (0) target = $region25
    $region24: #{vqvae_forward.1} parent=1 // pred_region
      _
    $region25: #{vqvae_forward.1} parent=1 // pred_fallthru
      _
    // Predicated region
    $region26: #{vqvae_forward.1} parent=1 // pred_check
      _
    $region27: #{vqvae_forward.1} parent=1 // pred_check_branch
      %43 = sbr.rel (0) target = $region29
    $region28: #{vqvae_forward.1} parent=1 // pred_region
      _
    $region29: #{vqvae_forward.1} parent=1 // pred_fallthru
      _
    // Predicated region
    $region30: #{vqvae_forward.1} parent=1 // pred_check
      _
    $region31: #{vqvae_forward.1} parent=1 // pred_check_branch
      %45 = sbr.rel (0) target = $region33
    $region32: #{vqvae_forward.1} parent=1 // pred_region
      _
    $region33: #{vqvae_forward.1} parent=1 // pred_fallthru
      _
    // Predicated region
    $region34: #{vqvae_forward.1} parent=1 // pred_check
      _
    $region35: #{vqvae_forward.1} parent=1 // pred_check_branch
      %47 = sbr.rel (0) target = $region37
    $region36: #{vqvae_forward.1} parent=1 // pred_region
      _
    $region37: #{vqvae_forward.1} parent=1 // pred_fallthru
      _
    // Predicated region
    $region38: #{vqvae_forward.1} parent=1 // pred_check
      _
    $region39: #{vqvae_forward.1} parent=1 // pred_check_branch
      %49 = sbr.rel (0) target = $region41
    $region40: #{vqvae_forward.1} parent=1 // pred_region
      _
    $region41: #{vqvae_forward.1} parent=1 // pred_fallthru
      _
    // Predicated region
    $region42: #{vqvae_forward.1} parent=1 // pred_check
      _
    $region43: #{vqvae_forward.1} parent=1 // pred_check_branch
      %51 = sbr.rel (0) target = $region45
    $region44: #{vqvae_forward.1} parent=1 // pred_region
      _
    $region45: #{vqvae_forward.1} parent=1 // pred_fallthru
      _
    // Predicated region
    $region46: #{vqvae_forward.1} parent=1 // pred_check
      _
    $region47: #{vqvae_forward.1} parent=1 // pred_check_branch
      %53 = sbr.rel (0) target = $region49
    $region48: #{vqvae_forward.1} parent=1 // pred_region
      _
    $region49: #{vqvae_forward.1} parent=1 // pred_fallthru
      _
    // Predicated region
    $region50: #{vqvae_forward.1} parent=1 // pred_check
      _
    $region51: #{vqvae_forward.1} parent=1 // pred_check_branch
      %55 = sbr.rel (0) target = $region53
    $region52: #{vqvae_forward.1} parent=1 // pred_region
      _
    $region53: #{vqvae_forward.1} parent=1 // pred_fallthru
      _
    // Predicated region
    $region54: #{vqvae_forward.1} parent=1 // pred_check
      _
    $region55: #{vqvae_forward.1} parent=1 // pred_check_branch
      %57 = sbr.rel (0) target = $region57
    $region56: #{vqvae_forward.1} parent=1 // pred_region
      _
    $region57: #{vqvae_forward.1} parent=1 // pred_fallthru
      _
    // Predicated region
    $region58: #{vqvae_forward.1} parent=1 // pred_check
      _
    $region59: #{vqvae_forward.1} parent=1 // pred_check_branch
      %59 = sbr.rel (0) target = $region61
    $region60: #{vqvae_forward.1} parent=1 // pred_region
      _
    $region61: #{vqvae_forward.1} parent=1 // pred_fallthru
      _
    // Predicated region
    $region62: #{vqvae_forward.1} parent=1 // pred_check
      _
    $region63: #{vqvae_forward.1} parent=1 // pred_check_branch
      %61 = sbr.rel (0) target = $region65
    $region64: #{vqvae_forward.1} parent=1 // pred_region
      _
    $region65: #{vqvae_forward.1} parent=1 // pred_fallthru
      _
    // Predicated region
    $region66: #{vqvae_forward.1} parent=1 // pred_check
      _
    $region67: #{vqvae_forward.1} parent=1 // pred_check_branch
      %63 = sbr.rel (0) target = $region69
    $region68: #{vqvae_forward.1} parent=1 // pred_region
      _
    $region69: #{vqvae_forward.1} parent=1 // pred_fallthru
      _
    // Predicated region
    $region70: #{vqvae_forward.1} parent=1 // pred_check
      _
    $region71: #{vqvae_forward.1} parent=1 // pred_check_branch
      %65 = sbr.rel (0) target = $region73
    $region72: #{vqvae_forward.1} parent=1 // pred_region
      _
    $region73: #{vqvae_forward.1} parent=1 // pred_fallthru
      _
    // Predicated region
    $region74: #{vqvae_forward.1} parent=1 // pred_check
      _
    $region75: #{vqvae_forward.1} parent=1 // pred_check_branch
      %67 = sbr.rel (0) target = $region77
    $region76: #{vqvae_forward.1} parent=1 // pred_region
      _
    $region77: #{vqvae_forward.1} parent=1 // pred_fallthru
      _
    // Predicated region
    $region78: #{vqvae_forward.1} parent=1 // pred_check
      _
    $region79: #{vqvae_forward.1} parent=1 // pred_check_branch
      %69 = sbr.rel (0) target = $region81
    $region80: #{vqvae_forward.1} parent=1 // pred_region
      _
    $region81: #{vqvae_forward.1} parent=1 // pred_fallthru
      _
    %v70 = vld [vmem:[%s0] sm:$0xff]
    %v71 = vld [vmem:[%s0 + $0x8] sm:$0xff]
    %v72 = vld [vmem:[%s0 + $0x10] sm:$0xff]
    %v73 = vld [vmem:[%s0 + $0x18] sm:$0xff]
    %v74 = vld [vmem:[%s0 + $0x20] sm:$0xff]
    %v75 = vld [vmem:[%s0 + $0x28] sm:$0xff]
    %v76 = vld [vmem:[%s0 + $0x30] sm:$0xff]
    %v77 = vld [vmem:[%s0 + $0x38] sm:$0xff]
    %v78 = vld [vmem:[%s0 + $0x40] sm:$0xff]
    %v79 = vld [vmem:[%s0 + $0x48] sm:$0xff]
    %v80 = vld [vmem:[%s0 + $0x50] sm:$0xff]
    %v81 = vld [vmem:[%s0 + $0x58] sm:$0xff]
    %v82 = vld [vmem:[%s0 + $0x60] sm:$0xff]
    %v83 = vld [vmem:[%s0 + $0x68] sm:$0xff]
    %v84 = vld [vmem:[%s0 + $0x70] sm:$0xff]
    %v85 = vld [vmem:[%s0 + $0x78] sm:$0xff]
    %v86 = vld [vmem:[%s0 + $0x80] sm:$0xff]
    %v87 = vld [vmem:[%s0 + $0x88] sm:$0xff]
    %v88 = vld [vmem:[%s0 + $0x90] sm:$0xff]
    %v89 = vld [vmem:[%s0 + $0x98] sm:$0xff]
    %v90 = vld [vmem:[%s0 + $0xa0] sm:$0xff]
    %v91 = vld [vmem:[%s0 + $0xa8] sm:$0xff]
    %v92 = vld [vmem:[%s0 + $0xb0] sm:$0xff]
    %v93 = vld [vmem:[%s0 + $0xb8] sm:$0xff]
    %v94 = vld [vmem:[%s0 + $0xc0] sm:$0xff]
    %v95 = vld [vmem:[%s0 + $0xc8] sm:$0xff]
    %v96 = vld [vmem:[%s0 + $0xd0] sm:$0xff]
    %v97 = vld [vmem:[%s0 + $0xd8] sm:$0xff]
    %v98 = vld [vmem:[%s0 + $0xe0] sm:$0xff]
    %v99 = vld [vmem:[%s0 + $0xe8] sm:$0xff]
    %v100 = vld [vmem:[%s0 + $0xf0] sm:$0xff]
    %v101 = vld [vmem:[%s0 + $0xf8] sm:$0xff]
    %v102 = vld [vmem:[%s0 + $0x100] sm:$0xff]
    %v103 = vld [vmem:[%s0 + $0x108] sm:$0xff]
    %v104 = vld [vmem:[%s0 + $0x110] sm:$0xff]
    %v105 = vld [vmem:[%s0 + $0x118] sm:$0xff]
    %v106 = vld [vmem:[%s0 + $0x120] sm:$0xff]
    %v107 = vld [vmem:[%s0 + $0x128] sm:$0xff]
    %v108 = vld [vmem:[%s0 + $0x130] sm:$0xff]
    %v109 = vld [vmem:[%s0 + $0x138] sm:$0xff]
    %v110 = vld [vmem:[%s0 + $0x140] sm:$0xff]
    %v111 = vld [vmem:[%s0 + $0x148] sm:$0xff]
    %v112 = vld [vmem:[%s0 + $0x150] sm:$0xff]
    %v113 = vld [vmem:[%s0 + $0x158] sm:$0xff]
    %v114 = vld [vmem:[%s0 + $0x160] sm:$0xff]
    %v115 = vld [vmem:[%s0 + $0x168] sm:$0xff]
    %v116 = vld [vmem:[%s0 + $0x170] sm:$0xff]
    %v117 = vld [vmem:[%s0 + $0x178] sm:$0xff]
    %v118 = vld [vmem:[%s0 + $0x180] sm:$0xff]
    %v119 = vld [vmem:[%s0 + $0x188] sm:$0xff]
    %v120 = vld [vmem:[%s0 + $0x190] sm:$0xff]
    %v121 = vld [vmem:[%s0 + $0x198] sm:$0xff]
    %v122 = vld [vmem:[%s0 + $0x1a0] sm:$0xff]
    %v123 = vld [vmem:[%s0 + $0x1a8] sm:$0xff]
    %v124 = vld [vmem:[%s0 + $0x1b0] sm:$0xff]
    %v125 = vld [vmem:[%s0 + $0x1b8] sm:$0xff]
    %v126 = vld [vmem:[%s0 + $0x1c0] sm:$0xff]
    %v127 = vld [vmem:[%s0 + $0x1c8] sm:$0xff]
    %v128 = vld [vmem:[%s0 + $0x1d0] sm:$0xff]
    %v129 = vld [vmem:[%s0 + $0x1d8] sm:$0xff]
    %v130 = vld [vmem:[%s0 + $0x1e0] sm:$0xff]
    %v131 = vld [vmem:[%s0 + $0x1e8] sm:$0xff]
    %v132 = vld [vmem:[%s0 + $0x1f0] sm:$0xff]
    %v133 = vld [vmem:[%s0 + $0x1f8] sm:$0xff]
    %v134 = vld [vmem:[%s1] sm:$0xf]
    %v135 = vld [vmem:[%s2] sm:$0x1]
    %v137 = vperm.slane %v135, 0
    %vm139 = vcmask 31744
    %v141 = vsel %vm139, %v70, 0
    %v144 = vsel %vm139, %v71, 0
    %v147 = vsel %vm139, %v72, 0
    %v150 = vsel %vm139, %v73, 0
    %v153 = vsel %vm139, %v74, 0
    %v156 = vsel %vm139, %v75, 0
    %v159 = vsel %vm139, %v76, 0
    %v162 = vsel %vm139, %v77, 0
    %v165 = vsel %vm139, %v78, 0
    %v168 = vsel %vm139, %v79, 0
    %v171 = vsel %vm139, %v80, 0
    %v174 = vsel %vm139, %v81, 0
    %v177 = vsel %vm139, %v82, 0
    %v180 = vsel %vm139, %v83, 0
    %v183 = vsel %vm139, %v84, 0
    %v186 = vsel %vm139, %v85, 0
    %v189 = vsel %vm139, %v86, 0
    %v192 = vsel %vm139, %v87, 0
    %v195 = vsel %vm139, %v88, 0
    %v198 = vsel %vm139, %v89, 0
    %v201 = vsel %vm139, %v90, 0
    %v204 = vsel %vm139, %v91, 0
    %v207 = vsel %vm139, %v92, 0
    %v210 = vsel %vm139, %v93, 0
    %v213 = vsel %vm139, %v94, 0
    %v216 = vsel %vm139, %v95, 0
    %v219 = vsel %vm139, %v96, 0
    %v222 = vsel %vm139, %v97, 0
    %v225 = vsel %vm139, %v98, 0
    %v228 = vsel %vm139, %v99, 0
    %v231 = vsel %vm139, %v100, 0
    %v234 = vsel %vm139, %v101, 0
    %v237 = vsel %vm139, %v102, 0
    %v240 = vsel %vm139, %v103, 0
    %v243 = vsel %vm139, %v104, 0
    %v246 = vsel %vm139, %v105, 0
    %v249 = vsel %vm139, %v106, 0
    %v252 = vsel %vm139, %v107, 0
    %v255 = vsel %vm139, %v108, 0
    %v258 = vsel %vm139, %v109, 0
    %v261 = vsel %vm139, %v110, 0
    %v264 = vsel %vm139, %v111, 0
    %v267 = vsel %vm139, %v112, 0
    %v270 = vsel %vm139, %v113, 0
    %v273 = vsel %vm139, %v114, 0
    %v276 = vsel %vm139, %v115, 0
    %v279 = vsel %vm139, %v116, 0
    %v282 = vsel %vm139, %v117, 0
    %v285 = vsel %vm139, %v118, 0
    %v288 = vsel %vm139, %v119, 0
    %v291 = vsel %vm139, %v120, 0
    %v294 = vsel %vm139, %v121, 0
    %v297 = vsel %vm139, %v122, 0
    %v300 = vsel %vm139, %v123, 0
    %v303 = vsel %vm139, %v124, 0
    %v306 = vsel %vm139, %v125, 0
    %v309 = vsel %vm139, %v126, 0
    %v312 = vsel %vm139, %v127, 0
    %v315 = vsel %vm139, %v128, 0
    %v318 = vsel %vm139, %v129, 0
    %v321 = vsel %vm139, %v130, 0
    %v324 = vsel %vm139, %v131, 0
    %v327 = vsel %vm139, %v132, 0
    %v330 = vsel %vm139, %v133, 0
    %vm332 = vcmask 1043456
    %v334 = vsel %vm332, %v134, 0
    %336 = vmatpush.msra.mxu0 0.0
    %337 = vmatpush.msra.mxu0 0.0
    %338 = vmatpush.msra.mxu0 0.0
    %339 = vmatpush.msra.mxu0 0.0
    %340 = vmatpush.msra.mxu0 0.0
    %341 = vmatpush.msra.mxu0 0.0
    %342 = vmatpush.msra.mxu0 0.0
    %343 = vmatpush.msra.mxu0 0.0
    %344 = vmatpush.msra.mxu0 0.0
    %345 = vmatpush.msra.mxu0 0.0
    %346 = vmatpush.msra.mxu0 0.0
    %347 = vmatpush.msra.mxu0 0.0
    %348 = vmatpush.msra.mxu0 0.0
    %349 = vmatpush.msra.mxu0 0.0
    %350 = vmatpush.msra.mxu0 0.0
    %351 = vmatpush.msra.mxu0 %v334
    %352 = vmatmul.f32.gmra.mxu0 %v141
    %v353 = vpop.f32.mrf.mxu0
    %v354 = vadd.f32 %v137, %v353
    %355 = vmatmul.f32.gmra.mxu0 %v144
    %v356 = vpop.f32.mrf.mxu0
    %v357 = vadd.f32 %v137, %v356
    %358 = vmatmul.f32.gmra.mxu0 %v147
    %v359 = vpop.f32.mrf.mxu0
    %v360 = vadd.f32 %v137, %v359
    %361 = vmatmul.f32.gmra.mxu0 %v150
    %v362 = vpop.f32.mrf.mxu0
    %v363 = vadd.f32 %v137, %v362
    %364 = vmatmul.f32.gmra.mxu0 %v153
    %v365 = vpop.f32.mrf.mxu0
    %v366 = vadd.f32 %v137, %v365
    %367 = vmatmul.f32.gmra.mxu0 %v156
    %v368 = vpop.f32.mrf.mxu0
    %v369 = vadd.f32 %v137, %v368
    %370 = vmatmul.f32.gmra.mxu0 %v159
    %v371 = vpop.f32.mrf.mxu0
    %v372 = vadd.f32 %v137, %v371
    %373 = vmatmul.f32.gmra.mxu0 %v162
    %v374 = vpop.f32.mrf.mxu0
    %v375 = vadd.f32 %v137, %v374
    %376 = vmatmul.f32.gmra.mxu0 %v165
    %v377 = vpop.f32.mrf.mxu0
    %v378 = vadd.f32 %v137, %v377
    %379 = vmatmul.f32.gmra.mxu0 %v168
    %v380 = vpop.f32.mrf.mxu0
    %v381 = vadd.f32 %v137, %v380
    %382 = vmatmul.f32.gmra.mxu0 %v171
    %v383 = vpop.f32.mrf.mxu0
    %v384 = vadd.f32 %v137, %v383
    %385 = vmatmul.f32.gmra.mxu0 %v174
    %v386 = vpop.f32.mrf.mxu0
    %v387 = vadd.f32 %v137, %v386
    %388 = vmatmul.f32.gmra.mxu0 %v177
    %v389 = vpop.f32.mrf.mxu0
    %v390 = vadd.f32 %v137, %v389
    %391 = vmatmul.f32.gmra.mxu0 %v180
    %v392 = vpop.f32.mrf.mxu0
    %v393 = vadd.f32 %v137, %v392
    %394 = vmatmul.f32.gmra.mxu0 %v183
    %v395 = vpop.f32.mrf.mxu0
    %v396 = vadd.f32 %v137, %v395
    %397 = vmatmul.f32.gmra.mxu0 %v186
    %v398 = vpop.f32.mrf.mxu0
    %v399 = vadd.f32 %v137, %v398
    %400 = vmatmul.f32.gmra.mxu0 %v189
    %v401 = vpop.f32.mrf.mxu0
    %v402 = vadd.f32 %v137, %v401
    %403 = vmatmul.f32.gmra.mxu0 %v192
    %v404 = vpop.f32.mrf.mxu0
    %v405 = vadd.f32 %v137, %v404
    %406 = vmatmul.f32.gmra.mxu0 %v195
    %v407 = vpop.f32.mrf.mxu0
    %v408 = vadd.f32 %v137, %v407
    %409 = vmatmul.f32.gmra.mxu0 %v198
    %v410 = vpop.f32.mrf.mxu0
    %v411 = vadd.f32 %v137, %v410
    %412 = vmatmul.f32.gmra.mxu0 %v201
    %v413 = vpop.f32.mrf.mxu0
    %v414 = vadd.f32 %v137, %v413
    %415 = vmatmul.f32.gmra.mxu0 %v204
    %v416 = vpop.f32.mrf.mxu0
    %v417 = vadd.f32 %v137, %v416
    %418 = vmatmul.f32.gmra.mxu0 %v207
    %v419 = vpop.f32.mrf.mxu0
    %v420 = vadd.f32 %v137, %v419
    %421 = vmatmul.f32.gmra.mxu0 %v210
    %v422 = vpop.f32.mrf.mxu0
    %v423 = vadd.f32 %v137, %v422
    %424 = vmatmul.f32.gmra.mxu0 %v213
    %v425 = vpop.f32.mrf.mxu0
    %v426 = vadd.f32 %v137, %v425
    %427 = vmatmul.f32.gmra.mxu0 %v216
    %v428 = vpop.f32.mrf.mxu0
    %v429 = vadd.f32 %v137, %v428
    %430 = vmatmul.f32.gmra.mxu0 %v219
    %v431 = vpop.f32.mrf.mxu0
    %v432 = vadd.f32 %v137, %v431
    %433 = vmatmul.f32.gmra.mxu0 %v222
    %v434 = vpop.f32.mrf.mxu0
    %v435 = vadd.f32 %v137, %v434
    %436 = vmatmul.f32.gmra.mxu0 %v225
    %v437 = vpop.f32.mrf.mxu0
    %v438 = vadd.f32 %v137, %v437
    %439 = vmatmul.f32.gmra.mxu0 %v228
    %v440 = vpop.f32.mrf.mxu0
    %v441 = vadd.f32 %v137, %v440
    %442 = vmatmul.f32.gmra.mxu0 %v231
    %v443 = vpop.f32.mrf.mxu0
    %v444 = vadd.f32 %v137, %v443
    %445 = vmatmul.f32.gmra.mxu0 %v234
    %v446 = vpop.f32.mrf.mxu0
    %v447 = vadd.f32 %v137, %v446
    %448 = vmatmul.f32.gmra.mxu0 %v237
    %v449 = vpop.f32.mrf.mxu0
    %v450 = vadd.f32 %v137, %v449
    %451 = vmatmul.f32.gmra.mxu0 %v240
    %v452 = vpop.f32.mrf.mxu0
    %v453 = vadd.f32 %v137, %v452
    %454 = vmatmul.f32.gmra.mxu0 %v243
    %v455 = vpop.f32.mrf.mxu0
    %v456 = vadd.f32 %v137, %v455
    %457 = vmatmul.f32.gmra.mxu0 %v246
    %v458 = vpop.f32.mrf.mxu0
    %v459 = vadd.f32 %v137, %v458
    %460 = vmatmul.f32.gmra.mxu0 %v249
    %v461 = vpop.f32.mrf.mxu0
    %v462 = vadd.f32 %v137, %v461
    %463 = vmatmul.f32.gmra.mxu0 %v252
    %v464 = vpop.f32.mrf.mxu0
    %v465 = vadd.f32 %v137, %v464
    %466 = vmatmul.f32.gmra.mxu0 %v255
    %v467 = vpop.f32.mrf.mxu0
    %v468 = vadd.f32 %v137, %v467
    %469 = vmatmul.f32.gmra.mxu0 %v258
    %v470 = vpop.f32.mrf.mxu0
    %v471 = vadd.f32 %v137, %v470
    %472 = vmatmul.f32.gmra.mxu0 %v261
    %v473 = vpop.f32.mrf.mxu0
    %v474 = vadd.f32 %v137, %v473
    %475 = vmatmul.f32.gmra.mxu0 %v264
    %v476 = vpop.f32.mrf.mxu0
    %v477 = vadd.f32 %v137, %v476
    %478 = vmatmul.f32.gmra.mxu0 %v267
    %v479 = vpop.f32.mrf.mxu0
    %v480 = vadd.f32 %v137, %v479
    %481 = vmatmul.f32.gmra.mxu0 %v270
    %v482 = vpop.f32.mrf.mxu0
    %v483 = vadd.f32 %v137, %v482
    %484 = vmatmul.f32.gmra.mxu0 %v273
    %v485 = vpop.f32.mrf.mxu0
    %v486 = vadd.f32 %v137, %v485
    %487 = vmatmul.f32.gmra.mxu0 %v276
    %v488 = vpop.f32.mrf.mxu0
    %v489 = vadd.f32 %v137, %v488
    %490 = vmatmul.f32.gmra.mxu0 %v279
    %v491 = vpop.f32.mrf.mxu0
    %v492 = vadd.f32 %v137, %v491
    %493 = vmatmul.f32.gmra.mxu0 %v282
    %v494 = vpop.f32.mrf.mxu0
    %v495 = vadd.f32 %v137, %v494
    %496 = vmatmul.f32.gmra.mxu0 %v285
    %v497 = vpop.f32.mrf.mxu0
    %v498 = vadd.f32 %v137, %v497
    %499 = vmatmul.f32.gmra.mxu0 %v288
    %v500 = vpop.f32.mrf.mxu0
    %v501 = vadd.f32 %v137, %v500
    %502 = vmatmul.f32.gmra.mxu0 %v291
    %v503 = vpop.f32.mrf.mxu0
    %v504 = vadd.f32 %v137, %v503
    %505 = vmatmul.f32.gmra.mxu0 %v294
    %v506 = vpop.f32.mrf.mxu0
    %v507 = vadd.f32 %v137, %v506
    %508 = vmatmul.f32.gmra.mxu0 %v297
    %v509 = vpop.f32.mrf.mxu0
    %v510 = vadd.f32 %v137, %v509
    %511 = vmatmul.f32.gmra.mxu0 %v300
    %v512 = vpop.f32.mrf.mxu0
    %v513 = vadd.f32 %v137, %v512
    %514 = vmatmul.f32.gmra.mxu0 %v303
    %v515 = vpop.f32.mrf.mxu0
    %v516 = vadd.f32 %v137, %v515
    %517 = vmatmul.f32.gmra.mxu0 %v306
    %v518 = vpop.f32.mrf.mxu0
    %v519 = vadd.f32 %v137, %v518
    %520 = vmatmul.f32.gmra.mxu0 %v309
    %v521 = vpop.f32.mrf.mxu0
    %v522 = vadd.f32 %v137, %v521
    %523 = vmatmul.f32.gmra.mxu0 %v312
    %v524 = vpop.f32.mrf.mxu0
    %v525 = vadd.f32 %v137, %v524
    %526 = vmatmul.f32.gmra.mxu0 %v315
    %v527 = vpop.f32.mrf.mxu0
    %v528 = vadd.f32 %v137, %v527
    %529 = vmatmul.f32.gmra.mxu0 %v318
    %v530 = vpop.f32.mrf.mxu0
    %v531 = vadd.f32 %v137, %v530
    %532 = vmatmul.f32.gmra.mxu0 %v321
    %v533 = vpop.f32.mrf.mxu0
    %v534 = vadd.f32 %v137, %v533
    %535 = vmatmul.f32.gmra.mxu0 %v324
    %v536 = vpop.f32.mrf.mxu0
    %v537 = vadd.f32 %v137, %v536
    %538 = vmatmul.f32.gmra.mxu0 %v327
    %v539 = vpop.f32.mrf.mxu0
    %v540 = vadd.f32 %v137, %v539
    %541 = vmatmul.f32.gmra.mxu0 %v330
    %v542 = vpop.f32.mrf.mxu0
    %v543 = vadd.f32 %v137, %v542
    %544 = vdwg.mxu0
    %v545 = vmax.f32 %v354, 0.0
    %v546 = vmax.f32 %v357, 0.0
    %v547 = vmax.f32 %v360, 0.0
    %v548 = vmax.f32 %v363, 0.0
    %v549 = vmax.f32 %v366, 0.0
    %v550 = vmax.f32 %v369, 0.0
    %v551 = vmax.f32 %v372, 0.0
    %v552 = vmax.f32 %v375, 0.0
    %v553 = vmax.f32 %v378, 0.0
    %v554 = vmax.f32 %v381, 0.0
    %v555 = vmax.f32 %v384, 0.0
    %v556 = vmax.f32 %v387, 0.0
    %v557 = vmax.f32 %v390, 0.0
    %v558 = vmax.f32 %v393, 0.0
    %v559 = vmax.f32 %v396, 0.0
    %v560 = vmax.f32 %v399, 0.0
    %v561 = vmax.f32 %v402, 0.0
    %v562 = vmax.f32 %v405, 0.0
    %v563 = vmax.f32 %v408, 0.0
    %v564 = vmax.f32 %v411, 0.0
    %v565 = vmax.f32 %v414, 0.0
    %v566 = vmax.f32 %v417, 0.0
    %v567 = vmax.f32 %v420, 0.0
    %v568 = vmax.f32 %v423, 0.0
    %v569 = vmax.f32 %v426, 0.0
    %v570 = vmax.f32 %v429, 0.0
    %v571 = vmax.f32 %v432, 0.0
    %v572 = vmax.f32 %v435, 0.0
    %v573 = vmax.f32 %v438, 0.0
    %v574 = vmax.f32 %v441, 0.0
    %v575 = vmax.f32 %v444, 0.0
    %v576 = vmax.f32 %v447, 0.0
    %v577 = vmax.f32 %v450, 0.0
    %v578 = vmax.f32 %v453, 0.0
    %v579 = vmax.f32 %v456, 0.0
    %v580 = vmax.f32 %v459, 0.0
    %v581 = vmax.f32 %v462, 0.0
    %v582 = vmax.f32 %v465, 0.0
    %v583 = vmax.f32 %v468, 0.0
    %v584 = vmax.f32 %v471, 0.0
    %v585 = vmax.f32 %v474, 0.0
    %v586 = vmax.f32 %v477, 0.0
    %v587 = vmax.f32 %v480, 0.0
    %v588 = vmax.f32 %v483, 0.0
    %v589 = vmax.f32 %v486, 0.0
    %v590 = vmax.f32 %v489, 0.0
    %v591 = vmax.f32 %v492, 0.0
    %v592 = vmax.f32 %v495, 0.0
    %v593 = vmax.f32 %v498, 0.0
    %v594 = vmax.f32 %v501, 0.0
    %v595 = vmax.f32 %v504, 0.0
    %v596 = vmax.f32 %v507, 0.0
    %v597 = vmax.f32 %v510, 0.0
    %v598 = vmax.f32 %v513, 0.0
    %v599 = vmax.f32 %v516, 0.0
    %v600 = vmax.f32 %v519, 0.0
    %v601 = vmax.f32 %v522, 0.0
    %v602 = vmax.f32 %v525, 0.0
    %v603 = vmax.f32 %v528, 0.0
    %v604 = vmax.f32 %v531, 0.0
    %v605 = vmax.f32 %v534, 0.0
    %v606 = vmax.f32 %v537, 0.0
    %v607 = vmax.f32 %v540, 0.0
    %v608 = vmax.f32 %v543, 0.0
    %v609 = vld [vmem:[%s3] sm:$0xff]
    %v610 = vld [vmem:[%s3 + $0x8] sm:$0xff]
    %v611 = vld [vmem:[%s3 + $0x10] sm:$0xff]
    %v612 = vld [vmem:[%s3 + $0x18] sm:$0xff]
    %v613 = vld [vmem:[%s4] sm:$0x1]
    %v615 = vperm.slane %v613, 0
    %vm617 = vcmask 261120
    %v619 = vsel %vm617, %v545, 0
    %v622 = vsel %vm617, %v546, 0
    %v625 = vsel %vm617, %v547, 0
    %v628 = vsel %vm617, %v548, 0
    %v631 = vsel %vm617, %v549, 0
    %v634 = vsel %vm617, %v550, 0
    %v637 = vsel %vm617, %v551, 0
    %v640 = vsel %vm617, %v552, 0
    %v643 = vsel %vm617, %v553, 0
    %v646 = vsel %vm617, %v554, 0
    %v649 = vsel %vm617, %v555, 0
    %v652 = vsel %vm617, %v556, 0
    %v655 = vsel %vm617, %v557, 0
    %v658 = vsel %vm617, %v558, 0
    %v661 = vsel %vm617, %v559, 0
    %v664 = vsel %vm617, %v560, 0
    %v667 = vsel %vm617, %v561, 0
    %v670 = vsel %vm617, %v562, 0
    %v673 = vsel %vm617, %v563, 0
    %v676 = vsel %vm617, %v564, 0
    %v679 = vsel %vm617, %v565, 0
    %v682 = vsel %vm617, %v566, 0
    %v685 = vsel %vm617, %v567, 0
    %v688 = vsel %vm617, %v568, 0
    %v691 = vsel %vm617, %v569, 0
    %v694 = vsel %vm617, %v570, 0
    %v697 = vsel %vm617, %v571, 0
    %v700 = vsel %vm617, %v572, 0
    %v703 = vsel %vm617, %v573, 0
    %v706 = vsel %vm617, %v574, 0
    %v709 = vsel %vm617, %v575, 0
    %v712 = vsel %vm617, %v576, 0
    %v715 = vsel %vm617, %v577, 0
    %v718 = vsel %vm617, %v578, 0
    %v721 = vsel %vm617, %v579, 0
    %v724 = vsel %vm617, %v580, 0
    %v727 = vsel %vm617, %v581, 0
    %v730 = vsel %vm617, %v582, 0
    %v733 = vsel %vm617, %v583, 0
    %v736 = vsel %vm617, %v584, 0
    %v739 = vsel %vm617, %v585, 0
    %v742 = vsel %vm617, %v586, 0
    %v745 = vsel %vm617, %v587, 0
    %v748 = vsel %vm617, %v588, 0
    %v751 = vsel %vm617, %v589, 0
    %v754 = vsel %vm617, %v590, 0
    %v757 = vsel %vm617, %v591, 0
    %v760 = vsel %vm617, %v592, 0
    %v763 = vsel %vm617, %v593, 0
    %v766 = vsel %vm617, %v594, 0
    %v769 = vsel %vm617, %v595, 0
    %v772 = vsel %vm617, %v596, 0
    %v775 = vsel %vm617, %v597, 0
    %v778 = vsel %vm617, %v598, 0
    %v781 = vsel %vm617, %v599, 0
    %v784 = vsel %vm617, %v600, 0
    %v787 = vsel %vm617, %v601, 0
    %v790 = vsel %vm617, %v602, 0
    %v793 = vsel %vm617, %v603, 0
    %v796 = vsel %vm617, %v604, 0
    %v799 = vsel %vm617, %v605, 0
    %v802 = vsel %vm617, %v606, 0
    %v805 = vsel %vm617, %v607, 0
    %v808 = vsel %vm617, %v608, 0
    %810 = vmatpush.msra.mxu0 0.0
    %811 = vmatpush.msra.mxu0 0.0
    %812 = vmatpush.msra.mxu0 0.0
    %813 = vmatpush.msra.mxu0 0.0
    %814 = vmatpush.msra.mxu0 0.0
    %815 = vmatpush.msra.mxu0 0.0
    %816 = vmatpush.msra.mxu0 0.0
    %817 = vmatpush.msra.mxu0 0.0
    %818 = vmatpush.msra.mxu0 0.0
    %819 = vmatpush.msra.mxu0 0.0
    %820 = vmatpush.msra.mxu0 0.0
    %821 = vmatpush.msra.mxu0 0.0
    %822 = vmatpush.msra.mxu0 %v612
    %823 = vmatpush.msra.mxu0 %v611
    %824 = vmatpush.msra.mxu0 %v610
    %825 = vmatpush.msra.mxu0 %v609
    %826 = vmatmul.f32.gmra.mxu0 %v619
    %v827 = vpop.f32.mrf.mxu0
    %v828 = vadd.f32 %v615, %v827
    %829 = vmatmul.f32.gmra.mxu0 %v622
    %v830 = vpop.f32.mrf.mxu0
    %v831 = vadd.f32 %v615, %v830
    %832 = vmatmul.f32.gmra.mxu0 %v625
    %v833 = vpop.f32.mrf.mxu0
    %v834 = vadd.f32 %v615, %v833
    %835 = vmatmul.f32.gmra.mxu0 %v628
    %v836 = vpop.f32.mrf.mxu0
    %v837 = vadd.f32 %v615, %v836
    %838 = vmatmul.f32.gmra.mxu0 %v631
    %v839 = vpop.f32.mrf.mxu0
    %v840 = vadd.f32 %v615, %v839
    %841 = vmatmul.f32.gmra.mxu0 %v634
    %v842 = vpop.f32.mrf.mxu0
    %v843 = vadd.f32 %v615, %v842
    %844 = vmatmul.f32.gmra.mxu0 %v637
    %v845 = vpop.f32.mrf.mxu0
    %v846 = vadd.f32 %v615, %v845
    %847 = vmatmul.f32.gmra.mxu0 %v640
    %v848 = vpop.f32.mrf.mxu0
    %v849 = vadd.f32 %v615, %v848
    %850 = vmatmul.f32.gmra.mxu0 %v643
    %v851 = vpop.f32.mrf.mxu0
    %v852 = vadd.f32 %v615, %v851
    %853 = vmatmul.f32.gmra.mxu0 %v646
    %v854 = vpop.f32.mrf.mxu0
    %v855 = vadd.f32 %v615, %v854
    %856 = vmatmul.f32.gmra.mxu0 %v649
    %v857 = vpop.f32.mrf.mxu0
    %v858 = vadd.f32 %v615, %v857
    %859 = vmatmul.f32.gmra.mxu0 %v652
    %v860 = vpop.f32.mrf.mxu0
    %v861 = vadd.f32 %v615, %v860
    %862 = vmatmul.f32.gmra.mxu0 %v655
    %v863 = vpop.f32.mrf.mxu0
    %v864 = vadd.f32 %v615, %v863
    %865 = vmatmul.f32.gmra.mxu0 %v658
    %v866 = vpop.f32.mrf.mxu0
    %v867 = vadd.f32 %v615, %v866
    %868 = vmatmul.f32.gmra.mxu0 %v661
    %v869 = vpop.f32.mrf.mxu0
    %v870 = vadd.f32 %v615, %v869
    %871 = vmatmul.f32.gmra.mxu0 %v664
    %v872 = vpop.f32.mrf.mxu0
    %v873 = vadd.f32 %v615, %v872
    %874 = vmatmul.f32.gmra.mxu0 %v667
    %v875 = vpop.f32.mrf.mxu0
    %v876 = vadd.f32 %v615, %v875
    %877 = vmatmul.f32.gmra.mxu0 %v670
    %v878 = vpop.f32.mrf.mxu0
    %v879 = vadd.f32 %v615, %v878
    %880 = vmatmul.f32.gmra.mxu0 %v673
    %v881 = vpop.f32.mrf.mxu0
    %v882 = vadd.f32 %v615, %v881
    %883 = vmatmul.f32.gmra.mxu0 %v676
    %v884 = vpop.f32.mrf.mxu0
    %v885 = vadd.f32 %v615, %v884
    %886 = vmatmul.f32.gmra.mxu0 %v679
    %v887 = vpop.f32.mrf.mxu0
    %v888 = vadd.f32 %v615, %v887
    %889 = vmatmul.f32.gmra.mxu0 %v682
    %v890 = vpop.f32.mrf.mxu0
    %v891 = vadd.f32 %v615, %v890
    %892 = vmatmul.f32.gmra.mxu0 %v685
    %v893 = vpop.f32.mrf.mxu0
    %v894 = vadd.f32 %v615, %v893
    %895 = vmatmul.f32.gmra.mxu0 %v688
    %v896 = vpop.f32.mrf.mxu0
    %v897 = vadd.f32 %v615, %v896
    %898 = vmatmul.f32.gmra.mxu0 %v691
    %v899 = vpop.f32.mrf.mxu0
    %v900 = vadd.f32 %v615, %v899
    %901 = vmatmul.f32.gmra.mxu0 %v694
    %v902 = vpop.f32.mrf.mxu0
    %v903 = vadd.f32 %v615, %v902
    %904 = vmatmul.f32.gmra.mxu0 %v697
    %v905 = vpop.f32.mrf.mxu0
    %v906 = vadd.f32 %v615, %v905
    %907 = vmatmul.f32.gmra.mxu0 %v700
    %v908 = vpop.f32.mrf.mxu0
    %v909 = vadd.f32 %v615, %v908
    %910 = vmatmul.f32.gmra.mxu0 %v703
    %v911 = vpop.f32.mrf.mxu0
    %v912 = vadd.f32 %v615, %v911
    %913 = vmatmul.f32.gmra.mxu0 %v706
    %v914 = vpop.f32.mrf.mxu0
    %v915 = vadd.f32 %v615, %v914
    %916 = vmatmul.f32.gmra.mxu0 %v709
    %v917 = vpop.f32.mrf.mxu0
    %v918 = vadd.f32 %v615, %v917
    %919 = vmatmul.f32.gmra.mxu0 %v712
    %v920 = vpop.f32.mrf.mxu0
    %v921 = vadd.f32 %v615, %v920
    %922 = vmatmul.f32.gmra.mxu0 %v715
    %v923 = vpop.f32.mrf.mxu0
    %v924 = vadd.f32 %v615, %v923
    %925 = vmatmul.f32.gmra.mxu0 %v718
    %v926 = vpop.f32.mrf.mxu0
    %v927 = vadd.f32 %v615, %v926
    %928 = vmatmul.f32.gmra.mxu0 %v721
    %v929 = vpop.f32.mrf.mxu0
    %v930 = vadd.f32 %v615, %v929
    %931 = vmatmul.f32.gmra.mxu0 %v724
    %v932 = vpop.f32.mrf.mxu0
    %v933 = vadd.f32 %v615, %v932
    %934 = vmatmul.f32.gmra.mxu0 %v727
    %v935 = vpop.f32.mrf.mxu0
    %v936 = vadd.f32 %v615, %v935
    %937 = vmatmul.f32.gmra.mxu0 %v730
    %v938 = vpop.f32.mrf.mxu0
    %v939 = vadd.f32 %v615, %v938
    %940 = vmatmul.f32.gmra.mxu0 %v733
    %v941 = vpop.f32.mrf.mxu0
    %v942 = vadd.f32 %v615, %v941
    %943 = vmatmul.f32.gmra.mxu0 %v736
    %v944 = vpop.f32.mrf.mxu0
    %v945 = vadd.f32 %v615, %v944
    %946 = vmatmul.f32.gmra.mxu0 %v739
    %v947 = vpop.f32.mrf.mxu0
    %v948 = vadd.f32 %v615, %v947
    %949 = vmatmul.f32.gmra.mxu0 %v742
    %v950 = vpop.f32.mrf.mxu0
    %v951 = vadd.f32 %v615, %v950
    %952 = vmatmul.f32.gmra.mxu0 %v745
    %v953 = vpop.f32.mrf.mxu0
    %v954 = vadd.f32 %v615, %v953
    %955 = vmatmul.f32.gmra.mxu0 %v748
    %v956 = vpop.f32.mrf.mxu0
    %v957 = vadd.f32 %v615, %v956
    %958 = vmatmul.f32.gmra.mxu0 %v751
    %v959 = vpop.f32.mrf.mxu0
    %v960 = vadd.f32 %v615, %v959
    %961 = vmatmul.f32.gmra.mxu0 %v754
    %v962 = vpop.f32.mrf.mxu0
    %v963 = vadd.f32 %v615, %v962
    %964 = vmatmul.f32.gmra.mxu0 %v757
    %v965 = vpop.f32.mrf.mxu0
    %v966 = vadd.f32 %v615, %v965
    %967 = vmatmul.f32.gmra.mxu0 %v760
    %v968 = vpop.f32.mrf.mxu0
    %v969 = vadd.f32 %v615, %v968
    %970 = vmatmul.f32.gmra.mxu0 %v763
    %v971 = vpop.f32.mrf.mxu0
    %v972 = vadd.f32 %v615, %v971
    %973 = vmatmul.f32.gmra.mxu0 %v766
    %v974 = vpop.f32.mrf.mxu0
    %v975 = vadd.f32 %v615, %v974
    %976 = vmatmul.f32.gmra.mxu0 %v769
    %v977 = vpop.f32.mrf.mxu0
    %v978 = vadd.f32 %v615, %v977
    %979 = vmatmul.f32.gmra.mxu0 %v772
    %v980 = vpop.f32.mrf.mxu0
    %v981 = vadd.f32 %v615, %v980
    %982 = vmatmul.f32.gmra.mxu0 %v775
    %v983 = vpop.f32.mrf.mxu0
    %v984 = vadd.f32 %v615, %v983
    %985 = vmatmul.f32.gmra.mxu0 %v778
    %v986 = vpop.f32.mrf.mxu0
    %v987 = vadd.f32 %v615, %v986
    %988 = vmatmul.f32.gmra.mxu0 %v781
    %v989 = vpop.f32.mrf.mxu0
    %v990 = vadd.f32 %v615, %v989
    %991 = vmatmul.f32.gmra.mxu0 %v784
    %v992 = vpop.f32.mrf.mxu0
    %v993 = vadd.f32 %v615, %v992
    %994 = vmatmul.f32.gmra.mxu0 %v787
    %v995 = vpop.f32.mrf.mxu0
    %v996 = vadd.f32 %v615, %v995
    %997 = vmatmul.f32.gmra.mxu0 %v790
    %v998 = vpop.f32.mrf.mxu0
    %v999 = vadd.f32 %v615, %v998
    %1000 = vmatmul.f32.gmra.mxu0 %v793
    %v1001 = vpop.f32.mrf.mxu0
    %v1002 = vadd.f32 %v615, %v1001
    %1003 = vmatmul.f32.gmra.mxu0 %v796
    %v1004 = vpop.f32.mrf.mxu0
    %v1005 = vadd.f32 %v615, %v1004
    %1006 = vmatmul.f32.gmra.mxu0 %v799
    %v1007 = vpop.f32.mrf.mxu0
    %v1008 = vadd.f32 %v615, %v1007
    %1009 = vmatmul.f32.gmra.mxu0 %v802
    %v1010 = vpop.f32.mrf.mxu0
    %v1011 = vadd.f32 %v615, %v1010
    %1012 = vmatmul.f32.gmra.mxu0 %v805
    %v1013 = vpop.f32.mrf.mxu0
    %v1014 = vadd.f32 %v615, %v1013
    %1015 = vmatmul.f32.gmra.mxu0 %v808
    %v1016 = vpop.f32.mrf.mxu0
    %v1017 = vadd.f32 %v615, %v1016
    %1018 = vdwg.mxu0
    %v1019 = vmax.f32 %v828, 0.0
    %v1020 = vmax.f32 %v831, 0.0
    %v1021 = vmax.f32 %v834, 0.0
    %v1022 = vmax.f32 %v837, 0.0
    %v1023 = vmax.f32 %v840, 0.0
    %v1024 = vmax.f32 %v843, 0.0
    %v1025 = vmax.f32 %v846, 0.0
    %v1026 = vmax.f32 %v849, 0.0
    %v1027 = vmax.f32 %v852, 0.0
    %v1028 = vmax.f32 %v855, 0.0
    %v1029 = vmax.f32 %v858, 0.0
    %v1030 = vmax.f32 %v861, 0.0
    %v1031 = vmax.f32 %v864, 0.0
    %v1032 = vmax.f32 %v867, 0.0
    %v1033 = vmax.f32 %v870, 0.0
    %v1034 = vmax.f32 %v873, 0.0
    %v1035 = vmax.f32 %v876, 0.0
    %v1036 = vmax.f32 %v879, 0.0
    %v1037 = vmax.f32 %v882, 0.0
    %v1038 = vmax.f32 %v885, 0.0
    %v1039 = vmax.f32 %v888, 0.0
    %v1040 = vmax.f32 %v891, 0.0
    %v1041 = vmax.f32 %v894, 0.0
    %v1042 = vmax.f32 %v897, 0.0
    %v1043 = vmax.f32 %v900, 0.0
    %v1044 = vmax.f32 %v903, 0.0
    %v1045 = vmax.f32 %v906, 0.0
    %v1046 = vmax.f32 %v909, 0.0
    %v1047 = vmax.f32 %v912, 0.0
    %v1048 = vmax.f32 %v915, 0.0
    %v1049 = vmax.f32 %v918, 0.0
    %v1050 = vmax.f32 %v921, 0.0
    %v1051 = vmax.f32 %v924, 0.0
    %v1052 = vmax.f32 %v927, 0.0
    %v1053 = vmax.f32 %v930, 0.0
    %v1054 = vmax.f32 %v933, 0.0
    %v1055 = vmax.f32 %v936, 0.0
    %v1056 = vmax.f32 %v939, 0.0
    %v1057 = vmax.f32 %v942, 0.0
    %v1058 = vmax.f32 %v945, 0.0
    %v1059 = vmax.f32 %v948, 0.0
    %v1060 = vmax.f32 %v951, 0.0
    %v1061 = vmax.f32 %v954, 0.0
    %v1062 = vmax.f32 %v957, 0.0
    %v1063 = vmax.f32 %v960, 0.0
    %v1064 = vmax.f32 %v963, 0.0
    %v1065 = vmax.f32 %v966, 0.0
    %v1066 = vmax.f32 %v969, 0.0
    %v1067 = vmax.f32 %v972, 0.0
    %v1068 = vmax.f32 %v975, 0.0
    %v1069 = vmax.f32 %v978, 0.0
    %v1070 = vmax.f32 %v981, 0.0
    %v1071 = vmax.f32 %v984, 0.0
    %v1072 = vmax.f32 %v987, 0.0
    %v1073 = vmax.f32 %v990, 0.0
    %v1074 = vmax.f32 %v993, 0.0
    %v1075 = vmax.f32 %v996, 0.0
    %v1076 = vmax.f32 %v999, 0.0
    %v1077 = vmax.f32 %v1002, 0.0
    %v1078 = vmax.f32 %v1005, 0.0
    %v1079 = vmax.f32 %v1008, 0.0
    %v1080 = vmax.f32 %v1011, 0.0
    %v1081 = vmax.f32 %v1014, 0.0
    %v1082 = vmax.f32 %v1017, 0.0
    %v1083 = vadd.f32 %v545, %v1019
    %v1084 = vadd.f32 %v546, %v1020
    %v1085 = vadd.f32 %v547, %v1021
    %v1086 = vadd.f32 %v548, %v1022
    %v1087 = vadd.f32 %v549, %v1023
    %v1088 = vadd.f32 %v550, %v1024
    %v1089 = vadd.f32 %v551, %v1025
    %v1090 = vadd.f32 %v552, %v1026
    %v1091 = vadd.f32 %v553, %v1027
    %v1092 = vadd.f32 %v554, %v1028
    %v1093 = vadd.f32 %v555, %v1029
    %v1094 = vadd.f32 %v556, %v1030
    %v1095 = vadd.f32 %v557, %v1031
    %v1096 = vadd.f32 %v558, %v1032
    %v1097 = vadd.f32 %v559, %v1033
    %v1098 = vadd.f32 %v560, %v1034
    %v1099 = vadd.f32 %v561, %v1035
    %v1100 = vadd.f32 %v562, %v1036
    %v1101 = vadd.f32 %v563, %v1037
    %v1102 = vadd.f32 %v564, %v1038
    %v1103 = vadd.f32 %v565, %v1039
    %v1104 = vadd.f32 %v566, %v1040
    %v1105 = vadd.f32 %v567, %v1041
    %v1106 = vadd.f32 %v568, %v1042
    %v1107 = vadd.f32 %v569, %v1043
    %v1108 = vadd.f32 %v570, %v1044
    %v1109 = vadd.f32 %v571, %v1045
    %v1110 = vadd.f32 %v572, %v1046
    %v1111 = vadd.f32 %v573, %v1047
    %v1112 = vadd.f32 %v574, %v1048
    %v1113 = vadd.f32 %v575, %v1049
    %v1114 = vadd.f32 %v576, %v1050
    %v1115 = vadd.f32 %v577, %v1051
    %v1116 = vadd.f32 %v578, %v1052
    %v1117 = vadd.f32 %v579, %v1053
    %v1118 = vadd.f32 %v580, %v1054
    %v1119 = vadd.f32 %v581, %v1055
    %v1120 = vadd.f32 %v582, %v1056
    %v1121 = vadd.f32 %v583, %v1057
    %v1122 = vadd.f32 %v584, %v1058
    %v1123 = vadd.f32 %v585, %v1059
    %v1124 = vadd.f32 %v586, %v1060
    %v1125 = vadd.f32 %v587, %v1061
    %v1126 = vadd.f32 %v588, %v1062
    %v1127 = vadd.f32 %v589, %v1063
    %v1128 = vadd.f32 %v590, %v1064
    %v1129 = vadd.f32 %v591, %v1065
    %v1130 = vadd.f32 %v592, %v1066
    %v1131 = vadd.f32 %v593, %v1067
    %v1132 = vadd.f32 %v594, %v1068
    %v1133 = vadd.f32 %v595, %v1069
    %v1134 = vadd.f32 %v596, %v1070
    %v1135 = vadd.f32 %v597, %v1071
    %v1136 = vadd.f32 %v598, %v1072
    %v1137 = vadd.f32 %v599, %v1073
    %v1138 = vadd.f32 %v600, %v1074
    %v1139 = vadd.f32 %v601, %v1075
    %v1140 = vadd.f32 %v602, %v1076
    %v1141 = vadd.f32 %v603, %v1077
    %v1142 = vadd.f32 %v604, %v1078
    %v1143 = vadd.f32 %v605, %v1079
    %v1144 = vadd.f32 %v606, %v1080
    %v1145 = vadd.f32 %v607, %v1081
    %v1146 = vadd.f32 %v608, %v1082
    %v1147 = vld [vmem:[%s5] sm:$0xff]
    %v1148 = vld [vmem:[%s5 + $0x8] sm:$0xff]
    %v1149 = vld [vmem:[%s5 + $0x10] sm:$0xff]
    %v1150 = vld [vmem:[%s5 + $0x18] sm:$0xff]
    %v1151 = vld [vmem:[%s6] sm:$0x1]
    %v1153 = vperm.slane %v1151, 0
    %v1156 = vsel %vm617, %v1083, 0
    %v1159 = vsel %vm617, %v1084, 0
    %v1162 = vsel %vm617, %v1085, 0
    %v1165 = vsel %vm617, %v1086, 0
    %v1168 = vsel %vm617, %v1087, 0
    %v1171 = vsel %vm617, %v1088, 0
    %v1174 = vsel %vm617, %v1089, 0
    %v1177 = vsel %vm617, %v1090, 0
    %v1180 = vsel %vm617, %v1091, 0
    %v1183 = vsel %vm617, %v1092, 0
    %v1186 = vsel %vm617, %v1093, 0
    %v1189 = vsel %vm617, %v1094, 0
    %v1192 = vsel %vm617, %v1095, 0
    %v1195 = vsel %vm617, %v1096, 0
    %v1198 = vsel %vm617, %v1097, 0
    %v1201 = vsel %vm617, %v1098, 0
    %v1204 = vsel %vm617, %v1099, 0
    %v1207 = vsel %vm617, %v1100, 0
    %v1210 = vsel %vm617, %v1101, 0
    %v1213 = vsel %vm617, %v1102, 0
    %v1216 = vsel %vm617, %v1103, 0
    %v1219 = vsel %vm617, %v1104, 0
    %v1222 = vsel %vm617, %v1105, 0
    %v1225 = vsel %vm617, %v1106, 0
    %v1228 = vsel %vm617, %v1107, 0
    %v1231 = vsel %vm617, %v1108, 0
    %v1234 = vsel %vm617, %v1109, 0
    %v1237 = vsel %vm617, %v1110, 0
    %v1240 = vsel %vm617, %v1111, 0
    %v1243 = vsel %vm617, %v1112, 0
    %v1246 = vsel %vm617, %v1113, 0
    %v1249 = vsel %vm617, %v1114, 0
    %v1252 = vsel %vm617, %v1115, 0
    %v1255 = vsel %vm617, %v1116, 0
    %v1258 = vsel %vm617, %v1117, 0
    %v1261 = vsel %vm617, %v1118, 0
    %v1264 = vsel %vm617, %v1119, 0
    %v1267 = vsel %vm617, %v1120, 0
    %v1270 = vsel %vm617, %v1121, 0
    %v1273 = vsel %vm617, %v1122, 0
    %v1276 = vsel %vm617, %v1123, 0
    %v1279 = vsel %vm617, %v1124, 0
    %v1282 = vsel %vm617, %v1125, 0
    %v1285 = vsel %vm617, %v1126, 0
    %v1288 = vsel %vm617, %v1127, 0
    %v1291 = vsel %vm617, %v1128, 0
    %v1294 = vsel %vm617, %v1129, 0
    %v1297 = vsel %vm617, %v1130, 0
    %v1300 = vsel %vm617, %v1131, 0
    %v1303 = vsel %vm617, %v1132, 0
    %v1306 = vsel %vm617, %v1133, 0
    %v1309 = vsel %vm617, %v1134, 0
    %v1312 = vsel %vm617, %v1135, 0
    %v1315 = vsel %vm617, %v1136, 0
    %v1318 = vsel %vm617, %v1137, 0
    %v1321 = vsel %vm617, %v1138, 0
    %v1324 = vsel %vm617, %v1139, 0
    %v1327 = vsel %vm617, %v1140, 0
    %v1330 = vsel %vm617, %v1141, 0
    %v1333 = vsel %vm617, %v1142, 0
    %v1336 = vsel %vm617, %v1143, 0
    %v1339 = vsel %vm617, %v1144, 0
    %v1342 = vsel %vm617, %v1145, 0
    %v1345 = vsel %vm617, %v1146, 0
    %1347 = vmatpush.msra.mxu0 0.0
    %1348 = vmatpush.msra.mxu0 0.0
    %1349 = vmatpush.msra.mxu0 0.0
    %1350 = vmatpush.msra.mxu0 0.0
    %1351 = vmatpush.msra.mxu0 0.0
    %1352 = vmatpush.msra.mxu0 0.0
    %1353 = vmatpush.msra.mxu0 0.0
    %1354 = vmatpush.msra.mxu0 0.0
    %1355 = vmatpush.msra.mxu0 0.0
    %1356 = vmatpush.msra.mxu0 0.0
    %1357 = vmatpush.msra.mxu0 0.0
    %1358 = vmatpush.msra.mxu0 0.0
    %1359 = vmatpush.msra.mxu0 %v1150
    %1360 = vmatpush.msra.mxu0 %v1149
    %1361 = vmatpush.msra.mxu0 %v1148
    %1362 = vmatpush.msra.mxu0 %v1147
    %1363 = vmatmul.f32.gmra.mxu0 %v1156
    %v1364 = vpop.f32.mrf.mxu0
    %v1365 = vadd.f32 %v1153, %v1364
    %1366 = vmatmul.f32.gmra.mxu0 %v1159
    %v1367 = vpop.f32.mrf.mxu0
    %v1368 = vadd.f32 %v1153, %v1367
    %1369 = vmatmul.f32.gmra.mxu0 %v1162
    %v1370 = vpop.f32.mrf.mxu0
    %v1371 = vadd.f32 %v1153, %v1370
    %1372 = vmatmul.f32.gmra.mxu0 %v1165
    %v1373 = vpop.f32.mrf.mxu0
    %v1374 = vadd.f32 %v1153, %v1373
    %1375 = vmatmul.f32.gmra.mxu0 %v1168
    %v1376 = vpop.f32.mrf.mxu0
    %v1377 = vadd.f32 %v1153, %v1376
    %1378 = vmatmul.f32.gmra.mxu0 %v1171
    %v1379 = vpop.f32.mrf.mxu0
    %v1380 = vadd.f32 %v1153, %v1379
    %1381 = vmatmul.f32.gmra.mxu0 %v1174
    %v1382 = vpop.f32.mrf.mxu0
    %v1383 = vadd.f32 %v1153, %v1382
    %1384 = vmatmul.f32.gmra.mxu0 %v1177
    %v1385 = vpop.f32.mrf.mxu0
    %v1386 = vadd.f32 %v1153, %v1385
    %1387 = vmatmul.f32.gmra.mxu0 %v1180
    %v1388 = vpop.f32.mrf.mxu0
    %v1389 = vadd.f32 %v1153, %v1388
    %1390 = vmatmul.f32.gmra.mxu0 %v1183
    %v1391 = vpop.f32.mrf.mxu0
    %v1392 = vadd.f32 %v1153, %v1391
    %1393 = vmatmul.f32.gmra.mxu0 %v1186
    %v1394 = vpop.f32.mrf.mxu0
    %v1395 = vadd.f32 %v1153, %v1394
    %1396 = vmatmul.f32.gmra.mxu0 %v1189
    %v1397 = vpop.f32.mrf.mxu0
    %v1398 = vadd.f32 %v1153, %v1397
    %1399 = vmatmul.f32.gmra.mxu0 %v1192
    %v1400 = vpop.f32.mrf.mxu0
    %v1401 = vadd.f32 %v1153, %v1400
    %1402 = vmatmul.f32.gmra.mxu0 %v1195
    %v1403 = vpop.f32.mrf.mxu0
    %v1404 = vadd.f32 %v1153, %v1403
    %1405 = vmatmul.f32.gmra.mxu0 %v1198
    %v1406 = vpop.f32.mrf.mxu0
    %v1407 = vadd.f32 %v1153, %v1406
    %1408 = vmatmul.f32.gmra.mxu0 %v1201
    %v1409 = vpop.f32.mrf.mxu0
    %v1410 = vadd.f32 %v1153, %v1409
    %1411 = vmatmul.f32.gmra.mxu0 %v1204
    %v1412 = vpop.f32.mrf.mxu0
    %v1413 = vadd.f32 %v1153, %v1412
    %1414 = vmatmul.f32.gmra.mxu0 %v1207
    %v1415 = vpop.f32.mrf.mxu0
    %v1416 = vadd.f32 %v1153, %v1415
    %1417 = vmatmul.f32.gmra.mxu0 %v1210
    %v1418 = vpop.f32.mrf.mxu0
    %v1419 = vadd.f32 %v1153, %v1418
    %1420 = vmatmul.f32.gmra.mxu0 %v1213
    %v1421 = vpop.f32.mrf.mxu0
    %v1422 = vadd.f32 %v1153, %v1421
    %1423 = vmatmul.f32.gmra.mxu0 %v1216
    %v1424 = vpop.f32.mrf.mxu0
    %v1425 = vadd.f32 %v1153, %v1424
    %1426 = vmatmul.f32.gmra.mxu0 %v1219
    %v1427 = vpop.f32.mrf.mxu0
    %v1428 = vadd.f32 %v1153, %v1427
    %1429 = vmatmul.f32.gmra.mxu0 %v1222
    %v1430 = vpop.f32.mrf.mxu0
    %v1431 = vadd.f32 %v1153, %v1430
    %1432 = vmatmul.f32.gmra.mxu0 %v1225
    %v1433 = vpop.f32.mrf.mxu0
    %v1434 = vadd.f32 %v1153, %v1433
    %1435 = vmatmul.f32.gmra.mxu0 %v1228
    %v1436 = vpop.f32.mrf.mxu0
    %v1437 = vadd.f32 %v1153, %v1436
    %1438 = vmatmul.f32.gmra.mxu0 %v1231
    %v1439 = vpop.f32.mrf.mxu0
    %v1440 = vadd.f32 %v1153, %v1439
    %1441 = vmatmul.f32.gmra.mxu0 %v1234
    %v1442 = vpop.f32.mrf.mxu0
    %v1443 = vadd.f32 %v1153, %v1442
    %1444 = vmatmul.f32.gmra.mxu0 %v1237
    %v1445 = vpop.f32.mrf.mxu0
    %v1446 = vadd.f32 %v1153, %v1445
    %1447 = vmatmul.f32.gmra.mxu0 %v1240
    %v1448 = vpop.f32.mrf.mxu0
    %v1449 = vadd.f32 %v1153, %v1448
    %1450 = vmatmul.f32.gmra.mxu0 %v1243
    %v1451 = vpop.f32.mrf.mxu0
    %v1452 = vadd.f32 %v1153, %v1451
    %1453 = vmatmul.f32.gmra.mxu0 %v1246
    %v1454 = vpop.f32.mrf.mxu0
    %v1455 = vadd.f32 %v1153, %v1454
    %1456 = vmatmul.f32.gmra.mxu0 %v1249
    %v1457 = vpop.f32.mrf.mxu0
    %v1458 = vadd.f32 %v1153, %v1457
    %1459 = vmatmul.f32.gmra.mxu0 %v1252
    %v1460 = vpop.f32.mrf.mxu0
    %v1461 = vadd.f32 %v1153, %v1460
    %1462 = vmatmul.f32.gmra.mxu0 %v1255
    %v1463 = vpop.f32.mrf.mxu0
    %v1464 = vadd.f32 %v1153, %v1463
    %1465 = vmatmul.f32.gmra.mxu0 %v1258
    %v1466 = vpop.f32.mrf.mxu0
    %v1467 = vadd.f32 %v1153, %v1466
    %1468 = vmatmul.f32.gmra.mxu0 %v1261
    %v1469 = vpop.f32.mrf.mxu0
    %v1470 = vadd.f32 %v1153, %v1469
    %1471 = vmatmul.f32.gmra.mxu0 %v1264
    %v1472 = vpop.f32.mrf.mxu0
    %v1473 = vadd.f32 %v1153, %v1472
    %1474 = vmatmul.f32.gmra.mxu0 %v1267
    %v1475 = vpop.f32.mrf.mxu0
    %v1476 = vadd.f32 %v1153, %v1475
    %1477 = vmatmul.f32.gmra.mxu0 %v1270
    %v1478 = vpop.f32.mrf.mxu0
    %v1479 = vadd.f32 %v1153, %v1478
    %1480 = vmatmul.f32.gmra.mxu0 %v1273
    %v1481 = vpop.f32.mrf.mxu0
    %v1482 = vadd.f32 %v1153, %v1481
    %1483 = vmatmul.f32.gmra.mxu0 %v1276
    %v1484 = vpop.f32.mrf.mxu0
    %v1485 = vadd.f32 %v1153, %v1484
    %1486 = vmatmul.f32.gmra.mxu0 %v1279
    %v1487 = vpop.f32.mrf.mxu0
    %v1488 = vadd.f32 %v1153, %v1487
    %1489 = vmatmul.f32.gmra.mxu0 %v1282
    %v1490 = vpop.f32.mrf.mxu0
    %v1491 = vadd.f32 %v1153, %v1490
    %1492 = vmatmul.f32.gmra.mxu0 %v1285
    %v1493 = vpop.f32.mrf.mxu0
    %v1494 = vadd.f32 %v1153, %v1493
    %1495 = vmatmul.f32.gmra.mxu0 %v1288
    %v1496 = vpop.f32.mrf.mxu0
    %v1497 = vadd.f32 %v1153, %v1496
    %1498 = vmatmul.f32.gmra.mxu0 %v1291
    %v1499 = vpop.f32.mrf.mxu0
    %v1500 = vadd.f32 %v1153, %v1499
    %1501 = vmatmul.f32.gmra.mxu0 %v1294
    %v1502 = vpop.f32.mrf.mxu0
    %v1503 = vadd.f32 %v1153, %v1502
    %1504 = vmatmul.f32.gmra.mxu0 %v1297
    %v1505 = vpop.f32.mrf.mxu0
    %v1506 = vadd.f32 %v1153, %v1505
    %1507 = vmatmul.f32.gmra.mxu0 %v1300
    %v1508 = vpop.f32.mrf.mxu0
    %v1509 = vadd.f32 %v1153, %v1508
    %1510 = vmatmul.f32.gmra.mxu0 %v1303
    %v1511 = vpop.f32.mrf.mxu0
    %v1512 = vadd.f32 %v1153, %v1511
    %1513 = vmatmul.f32.gmra.mxu0 %v1306
    %v1514 = vpop.f32.mrf.mxu0
    %v1515 = vadd.f32 %v1153, %v1514
    %1516 = vmatmul.f32.gmra.mxu0 %v1309
    %v1517 = vpop.f32.mrf.mxu0
    %v1518 = vadd.f32 %v1153, %v1517
    %1519 = vmatmul.f32.gmra.mxu0 %v1312
    %v1520 = vpop.f32.mrf.mxu0
    %v1521 = vadd.f32 %v1153, %v1520
    %1522 = vmatmul.f32.gmra.mxu0 %v1315
    %v1523 = vpop.f32.mrf.mxu0
    %v1524 = vadd.f32 %v1153, %v1523
    %1525 = vmatmul.f32.gmra.mxu0 %v1318
    %v1526 = vpop.f32.mrf.mxu0
    %v1527 = vadd.f32 %v1153, %v1526
    %1528 = vmatmul.f32.gmra.mxu0 %v1321
    %v1529 = vpop.f32.mrf.mxu0
    %v1530 = vadd.f32 %v1153, %v1529
    %1531 = vmatmul.f32.gmra.mxu0 %v1324
    %v1532 = vpop.f32.mrf.mxu0
    %v1533 = vadd.f32 %v1153, %v1532
    %1534 = vmatmul.f32.gmra.mxu0 %v1327
    %v1535 = vpop.f32.mrf.mxu0
    %v1536 = vadd.f32 %v1153, %v1535
    %1537 = vmatmul.f32.gmra.mxu0 %v1330
    %v1538 = vpop.f32.mrf.mxu0
    %v1539 = vadd.f32 %v1153, %v1538
    %1540 = vmatmul.f32.gmra.mxu0 %v1333
    %v1541 = vpop.f32.mrf.mxu0
    %v1542 = vadd.f32 %v1153, %v1541
    %1543 = vmatmul.f32.gmra.mxu0 %v1336
    %v1544 = vpop.f32.mrf.mxu0
    %v1545 = vadd.f32 %v1153, %v1544
    %1546 = vmatmul.f32.gmra.mxu0 %v1339
    %v1547 = vpop.f32.mrf.mxu0
    %v1548 = vadd.f32 %v1153, %v1547
    %1549 = vmatmul.f32.gmra.mxu0 %v1342
    %v1550 = vpop.f32.mrf.mxu0
    %v1551 = vadd.f32 %v1153, %v1550
    %1552 = vmatmul.f32.gmra.mxu0 %v1345
    %v1553 = vpop.f32.mrf.mxu0
    %v1554 = vadd.f32 %v1153, %v1553
    %1555 = vdwg.mxu0
    %v1556 = vmax.f32 %v1365, 0.0
    %v1557 = vmax.f32 %v1368, 0.0
    %v1558 = vmax.f32 %v1371, 0.0
    %v1559 = vmax.f32 %v1374, 0.0
    %v1560 = vmax.f32 %v1377, 0.0
    %v1561 = vmax.f32 %v1380, 0.0
    %v1562 = vmax.f32 %v1383, 0.0
    %v1563 = vmax.f32 %v1386, 0.0
    %v1564 = vmax.f32 %v1389, 0.0
    %v1565 = vmax.f32 %v1392, 0.0
    %v1566 = vmax.f32 %v1395, 0.0
    %v1567 = vmax.f32 %v1398, 0.0
    %v1568 = vmax.f32 %v1401, 0.0
    %v1569 = vmax.f32 %v1404, 0.0
    %v1570 = vmax.f32 %v1407, 0.0
    %v1571 = vmax.f32 %v1410, 0.0
    %v1572 = vmax.f32 %v1413, 0.0
    %v1573 = vmax.f32 %v1416, 0.0
    %v1574 = vmax.f32 %v1419, 0.0
    %v1575 = vmax.f32 %v1422, 0.0
    %v1576 = vmax.f32 %v1425, 0.0
    %v1577 = vmax.f32 %v1428, 0.0
    %v1578 = vmax.f32 %v1431, 0.0
    %v1579 = vmax.f32 %v1434, 0.0
    %v1580 = vmax.f32 %v1437, 0.0
    %v1581 = vmax.f32 %v1440, 0.0
    %v1582 = vmax.f32 %v1443, 0.0
    %v1583 = vmax.f32 %v1446, 0.0
    %v1584 = vmax.f32 %v1449, 0.0
    %v1585 = vmax.f32 %v1452, 0.0
    %v1586 = vmax.f32 %v1455, 0.0
    %v1587 = vmax.f32 %v1458, 0.0
    %v1588 = vmax.f32 %v1461, 0.0
    %v1589 = vmax.f32 %v1464, 0.0
    %v1590 = vmax.f32 %v1467, 0.0
    %v1591 = vmax.f32 %v1470, 0.0
    %v1592 = vmax.f32 %v1473, 0.0
    %v1593 = vmax.f32 %v1476, 0.0
    %v1594 = vmax.f32 %v1479, 0.0
    %v1595 = vmax.f32 %v1482, 0.0
    %v1596 = vmax.f32 %v1485, 0.0
    %v1597 = vmax.f32 %v1488, 0.0
    %v1598 = vmax.f32 %v1491, 0.0
    %v1599 = vmax.f32 %v1494, 0.0
    %v1600 = vmax.f32 %v1497, 0.0
    %v1601 = vmax.f32 %v1500, 0.0
    %v1602 = vmax.f32 %v1503, 0.0
    %v1603 = vmax.f32 %v1506, 0.0
    %v1604 = vmax.f32 %v1509, 0.0
    %v1605 = vmax.f32 %v1512, 0.0
    %v1606 = vmax.f32 %v1515, 0.0
    %v1607 = vmax.f32 %v1518, 0.0
    %v1608 = vmax.f32 %v1521, 0.0
    %v1609 = vmax.f32 %v1524, 0.0
    %v1610 = vmax.f32 %v1527, 0.0
    %v1611 = vmax.f32 %v1530, 0.0
    %v1612 = vmax.f32 %v1533, 0.0
    %v1613 = vmax.f32 %v1536, 0.0
    %v1614 = vmax.f32 %v1539, 0.0
    %v1615 = vmax.f32 %v1542, 0.0
    %v1616 = vmax.f32 %v1545, 0.0
    %v1617 = vmax.f32 %v1548, 0.0
    %v1618 = vmax.f32 %v1551, 0.0
    %v1619 = vmax.f32 %v1554, 0.0
    %v1620 = vadd.f32 %v1083, %v1556
    %v1621 = vadd.f32 %v1084, %v1557
    %v1622 = vadd.f32 %v1085, %v1558
    %v1623 = vadd.f32 %v1086, %v1559
    %v1624 = vadd.f32 %v1087, %v1560
    %v1625 = vadd.f32 %v1088, %v1561
    %v1626 = vadd.f32 %v1089, %v1562
    %v1627 = vadd.f32 %v1090, %v1563
    %v1628 = vadd.f32 %v1091, %v1564
    %v1629 = vadd.f32 %v1092, %v1565
    %v1630 = vadd.f32 %v1093, %v1566
    %v1631 = vadd.f32 %v1094, %v1567
    %v1632 = vadd.f32 %v1095, %v1568
    %v1633 = vadd.f32 %v1096, %v1569
    %v1634 = vadd.f32 %v1097, %v1570
    %v1635 = vadd.f32 %v1098, %v1571
    %v1636 = vadd.f32 %v1099, %v1572
    %v1637 = vadd.f32 %v1100, %v1573
    %v1638 = vadd.f32 %v1101, %v1574
    %v1639 = vadd.f32 %v1102, %v1575
    %v1640 = vadd.f32 %v1103, %v1576
    %v1641 = vadd.f32 %v1104, %v1577
    %v1642 = vadd.f32 %v1105, %v1578
    %v1643 = vadd.f32 %v1106, %v1579
    %v1644 = vadd.f32 %v1107, %v1580
    %v1645 = vadd.f32 %v1108, %v1581
    %v1646 = vadd.f32 %v1109, %v1582
    %v1647 = vadd.f32 %v1110, %v1583
    %v1648 = vadd.f32 %v1111, %v1584
    %v1649 = vadd.f32 %v1112, %v1585
    %v1650 = vadd.f32 %v1113, %v1586
    %v1651 = vadd.f32 %v1114, %v1587
    %v1652 = vadd.f32 %v1115, %v1588
    %v1653 = vadd.f32 %v1116, %v1589
    %v1654 = vadd.f32 %v1117, %v1590
    %v1655 = vadd.f32 %v1118, %v1591
    %v1656 = vadd.f32 %v1119, %v1592
    %v1657 = vadd.f32 %v1120, %v1593
    %v1658 = vadd.f32 %v1121, %v1594
    %v1659 = vadd.f32 %v1122, %v1595
    %v1660 = vadd.f32 %v1123, %v1596
    %v1661 = vadd.f32 %v1124, %v1597
    %v1662 = vadd.f32 %v1125, %v1598
    %v1663 = vadd.f32 %v1126, %v1599
    %v1664 = vadd.f32 %v1127, %v1600
    %v1665 = vadd.f32 %v1128, %v1601
    %v1666 = vadd.f32 %v1129, %v1602
    %v1667 = vadd.f32 %v1130, %v1603
    %v1668 = vadd.f32 %v1131, %v1604
    %v1669 = vadd.f32 %v1132, %v1605
    %v1670 = vadd.f32 %v1133, %v1606
    %v1671 = vadd.f32 %v1134, %v1607
    %v1672 = vadd.f32 %v1135, %v1608
    %v1673 = vadd.f32 %v1136, %v1609
    %v1674 = vadd.f32 %v1137, %v1610
    %v1675 = vadd.f32 %v1138, %v1611
    %v1676 = vadd.f32 %v1139, %v1612
    %v1677 = vadd.f32 %v1140, %v1613
    %v1678 = vadd.f32 %v1141, %v1614
    %v1679 = vadd.f32 %v1142, %v1615
    %v1680 = vadd.f32 %v1143, %v1616
    %v1681 = vadd.f32 %v1144, %v1617
    %v1682 = vadd.f32 %v1145, %v1618
    %v1683 = vadd.f32 %v1146, %v1619
    %v1684 = vld [vmem:[%s7] sm:$0xff]
    %v1685 = vld [vmem:[%s7 + $0x8] sm:$0xff]
    %v1686 = vld [vmem:[%s7 + $0x10] sm:$0xff]
    %v1687 = vld [vmem:[%s7 + $0x18] sm:$0xff]
    %v1688 = vld [vmem:[%s8] sm:$0x1]
    %v1690 = vperm.slane %v1688, 0
    %v1693 = vsel %vm617, %v1620, 0
    %v1696 = vsel %vm617, %v1621, 0
    %v1699 = vsel %vm617, %v1622, 0
    %v1702 = vsel %vm617, %v1623, 0
    %v1705 = vsel %vm617, %v1624, 0
    %v1708 = vsel %vm617, %v1625, 0
    %v1711 = vsel %vm617, %v1626, 0
    %v1714 = vsel %vm617, %v1627, 0
    %v1717 = vsel %vm617, %v1628, 0
    %v1720 = vsel %vm617, %v1629, 0
    %v1723 = vsel %vm617, %v1630, 0
    %v1726 = vsel %vm617, %v1631, 0
    %v1729 = vsel %vm617, %v1632, 0
    %v1732 = vsel %vm617, %v1633, 0
    %v1735 = vsel %vm617, %v1634, 0
    %v1738 = vsel %vm617, %v1635, 0
    %v1741 = vsel %vm617, %v1636, 0
    %v1744 = vsel %vm617, %v1637, 0
    %v1747 = vsel %vm617, %v1638, 0
    %v1750 = vsel %vm617, %v1639, 0
    %v1753 = vsel %vm617, %v1640, 0
    %v1756 = vsel %vm617, %v1641, 0
    %v1759 = vsel %vm617, %v1642, 0
    %v1762 = vsel %vm617, %v1643, 0
    %v1765 = vsel %vm617, %v1644, 0
    %v1768 = vsel %vm617, %v1645, 0
    %v1771 = vsel %vm617, %v1646, 0
    %v1774 = vsel %vm617, %v1647, 0
    %v1777 = vsel %vm617, %v1648, 0
    %v1780 = vsel %vm617, %v1649, 0
    %v1783 = vsel %vm617, %v1650, 0
    %v1786 = vsel %vm617, %v1651, 0
    %v1789 = vsel %vm617, %v1652, 0
    %v1792 = vsel %vm617, %v1653, 0
    %v1795 = vsel %vm617, %v1654, 0
    %v1798 = vsel %vm617, %v1655, 0
    %v1801 = vsel %vm617, %v1656, 0
    %v1804 = vsel %vm617, %v1657, 0
    %v1807 = vsel %vm617, %v1658, 0
    %v1810 = vsel %vm617, %v1659, 0
    %v1813 = vsel %vm617, %v1660, 0
    %v1816 = vsel %vm617, %v1661, 0
    %v1819 = vsel %vm617, %v1662, 0
    %v1822 = vsel %vm617, %v1663, 0
    %v1825 = vsel %vm617, %v1664, 0
    %v1828 = vsel %vm617, %v1665, 0
    %v1831 = vsel %vm617, %v1666, 0
    %v1834 = vsel %vm617, %v1667, 0
    %v1837 = vsel %vm617, %v1668, 0
    %v1840 = vsel %vm617, %v1669, 0
    %v1843 = vsel %vm617, %v1670, 0
    %v1846 = vsel %vm617, %v1671, 0
    %v1849 = vsel %vm617, %v1672, 0
    %v1852 = vsel %vm617, %v1673, 0
    %v1855 = vsel %vm617, %v1674, 0
    %v1858 = vsel %vm617, %v1675, 0
    %v1861 = vsel %vm617, %v1676, 0
    %v1864 = vsel %vm617, %v1677, 0
    %v1867 = vsel %vm617, %v1678, 0
    %v1870 = vsel %vm617, %v1679, 0
    %v1873 = vsel %vm617, %v1680, 0
    %v1876 = vsel %vm617, %v1681, 0
    %v1879 = vsel %vm617, %v1682, 0
    %v1882 = vsel %vm617, %v1683, 0
    %1884 = vmatpush.msra.mxu0 0.0
    %1885 = vmatpush.msra.mxu0 0.0
    %1886 = vmatpush.msra.mxu0 0.0
    %1887 = vmatpush.msra.mxu0 0.0
    %1888 = vmatpush.msra.mxu0 0.0
    %1889 = vmatpush.msra.mxu0 0.0
    %1890 = vmatpush.msra.mxu0 0.0
    %1891 = vmatpush.msra.mxu0 0.0
    %1892 = vmatpush.msra.mxu0 0.0
    %1893 = vmatpush.msra.mxu0 0.0
    %1894 = vmatpush.msra.mxu0 0.0
    %1895 = vmatpush.msra.mxu0 0.0
    %1896 = vmatpush.msra.mxu0 %v1687
    %1897 = vmatpush.msra.mxu0 %v1686
    %1898 = vmatpush.msra.mxu0 %v1685
    %1899 = vmatpush.msra.mxu0 %v1684
    %1900 = vmatmul.f32.gmra.mxu0 %v1693
    %v1901 = vpop.f32.mrf.mxu0
    %v1902 = vadd.f32 %v1690, %v1901
    %1903 = vmatmul.f32.gmra.mxu0 %v1696
    %v1904 = vpop.f32.mrf.mxu0
    %v1905 = vadd.f32 %v1690, %v1904
    %1906 = vmatmul.f32.gmra.mxu0 %v1699
    %v1907 = vpop.f32.mrf.mxu0
    %v1908 = vadd.f32 %v1690, %v1907
    %1909 = vmatmul.f32.gmra.mxu0 %v1702
    %v1910 = vpop.f32.mrf.mxu0
    %v1911 = vadd.f32 %v1690, %v1910
    %1912 = vmatmul.f32.gmra.mxu0 %v1705
    %v1913 = vpop.f32.mrf.mxu0
    %v1914 = vadd.f32 %v1690, %v1913
    %1915 = vmatmul.f32.gmra.mxu0 %v1708
    %v1916 = vpop.f32.mrf.mxu0
    %v1917 = vadd.f32 %v1690, %v1916
    %1918 = vmatmul.f32.gmra.mxu0 %v1711
    %v1919 = vpop.f32.mrf.mxu0
    %v1920 = vadd.f32 %v1690, %v1919
    %1921 = vmatmul.f32.gmra.mxu0 %v1714
    %v1922 = vpop.f32.mrf.mxu0
    %v1923 = vadd.f32 %v1690, %v1922
    %1924 = vmatmul.f32.gmra.mxu0 %v1717
    %v1925 = vpop.f32.mrf.mxu0
    %v1926 = vadd.f32 %v1690, %v1925
    %1927 = vmatmul.f32.gmra.mxu0 %v1720
    %v1928 = vpop.f32.mrf.mxu0
    %v1929 = vadd.f32 %v1690, %v1928
    %1930 = vmatmul.f32.gmra.mxu0 %v1723
    %v1931 = vpop.f32.mrf.mxu0
    %v1932 = vadd.f32 %v1690, %v1931
    %1933 = vmatmul.f32.gmra.mxu0 %v1726
    %v1934 = vpop.f32.mrf.mxu0
    %v1935 = vadd.f32 %v1690, %v1934
    %1936 = vmatmul.f32.gmra.mxu0 %v1729
    %v1937 = vpop.f32.mrf.mxu0
    %v1938 = vadd.f32 %v1690, %v1937
    %1939 = vmatmul.f32.gmra.mxu0 %v1732
    %v1940 = vpop.f32.mrf.mxu0
    %v1941 = vadd.f32 %v1690, %v1940
    %1942 = vmatmul.f32.gmra.mxu0 %v1735
    %v1943 = vpop.f32.mrf.mxu0
    %v1944 = vadd.f32 %v1690, %v1943
    %1945 = vmatmul.f32.gmra.mxu0 %v1738
    %v1946 = vpop.f32.mrf.mxu0
    %v1947 = vadd.f32 %v1690, %v1946
    %1948 = vmatmul.f32.gmra.mxu0 %v1741
    %v1949 = vpop.f32.mrf.mxu0
    %v1950 = vadd.f32 %v1690, %v1949
    %1951 = vmatmul.f32.gmra.mxu0 %v1744
    %v1952 = vpop.f32.mrf.mxu0
    %v1953 = vadd.f32 %v1690, %v1952
    %1954 = vmatmul.f32.gmra.mxu0 %v1747
    %v1955 = vpop.f32.mrf.mxu0
    %v1956 = vadd.f32 %v1690, %v1955
    %1957 = vmatmul.f32.gmra.mxu0 %v1750
    %v1958 = vpop.f32.mrf.mxu0
    %v1959 = vadd.f32 %v1690, %v1958
    %1960 = vmatmul.f32.gmra.mxu0 %v1753
    %v1961 = vpop.f32.mrf.mxu0
    %v1962 = vadd.f32 %v1690, %v1961
    %1963 = vmatmul.f32.gmra.mxu0 %v1756
    %v1964 = vpop.f32.mrf.mxu0
    %v1965 = vadd.f32 %v1690, %v1964
    %1966 = vmatmul.f32.gmra.mxu0 %v1759
    %v1967 = vpop.f32.mrf.mxu0
    %v1968 = vadd.f32 %v1690, %v1967
    %1969 = vmatmul.f32.gmra.mxu0 %v1762
    %v1970 = vpop.f32.mrf.mxu0
    %v1971 = vadd.f32 %v1690, %v1970
    %1972 = vmatmul.f32.gmra.mxu0 %v1765
    %v1973 = vpop.f32.mrf.mxu0
    %v1974 = vadd.f32 %v1690, %v1973
    %1975 = vmatmul.f32.gmra.mxu0 %v1768
    %v1976 = vpop.f32.mrf.mxu0
    %v1977 = vadd.f32 %v1690, %v1976
    %1978 = vmatmul.f32.gmra.mxu0 %v1771
    %v1979 = vpop.f32.mrf.mxu0
    %v1980 = vadd.f32 %v1690, %v1979
    %1981 = vmatmul.f32.gmra.mxu0 %v1774
    %v1982 = vpop.f32.mrf.mxu0
    %v1983 = vadd.f32 %v1690, %v1982
    %1984 = vmatmul.f32.gmra.mxu0 %v1777
    %v1985 = vpop.f32.mrf.mxu0
    %v1986 = vadd.f32 %v1690, %v1985
    %1987 = vmatmul.f32.gmra.mxu0 %v1780
    %v1988 = vpop.f32.mrf.mxu0
    %v1989 = vadd.f32 %v1690, %v1988
    %1990 = vmatmul.f32.gmra.mxu0 %v1783
    %v1991 = vpop.f32.mrf.mxu0
    %v1992 = vadd.f32 %v1690, %v1991
    %1993 = vmatmul.f32.gmra.mxu0 %v1786
    %v1994 = vpop.f32.mrf.mxu0
    %v1995 = vadd.f32 %v1690, %v1994
    %1996 = vmatmul.f32.gmra.mxu0 %v1789
    %v1997 = vpop.f32.mrf.mxu0
    %v1998 = vadd.f32 %v1690, %v1997
    %1999 = vmatmul.f32.gmra.mxu0 %v1792
    %v2000 = vpop.f32.mrf.mxu0
    %v2001 = vadd.f32 %v1690, %v2000
    %2002 = vmatmul.f32.gmra.mxu0 %v1795
    %v2003 = vpop.f32.mrf.mxu0
    %v2004 = vadd.f32 %v1690, %v2003
    %2005 = vmatmul.f32.gmra.mxu0 %v1798
    %v2006 = vpop.f32.mrf.mxu0
    %v2007 = vadd.f32 %v1690, %v2006
    %2008 = vmatmul.f32.gmra.mxu0 %v1801
    %v2009 = vpop.f32.mrf.mxu0
    %v2010 = vadd.f32 %v1690, %v2009
    %2011 = vmatmul.f32.gmra.mxu0 %v1804
    %v2012 = vpop.f32.mrf.mxu0
    %v2013 = vadd.f32 %v1690, %v2012
    %2014 = vmatmul.f32.gmra.mxu0 %v1807
    %v2015 = vpop.f32.mrf.mxu0
    %v2016 = vadd.f32 %v1690, %v2015
    %2017 = vmatmul.f32.gmra.mxu0 %v1810
    %v2018 = vpop.f32.mrf.mxu0
    %v2019 = vadd.f32 %v1690, %v2018
    %2020 = vmatmul.f32.gmra.mxu0 %v1813
    %v2021 = vpop.f32.mrf.mxu0
    %v2022 = vadd.f32 %v1690, %v2021
    %2023 = vmatmul.f32.gmra.mxu0 %v1816
    %v2024 = vpop.f32.mrf.mxu0
    %v2025 = vadd.f32 %v1690, %v2024
    %2026 = vmatmul.f32.gmra.mxu0 %v1819
    %v2027 = vpop.f32.mrf.mxu0
    %v2028 = vadd.f32 %v1690, %v2027
    %2029 = vmatmul.f32.gmra.mxu0 %v1822
    %v2030 = vpop.f32.mrf.mxu0
    %v2031 = vadd.f32 %v1690, %v2030
    %2032 = vmatmul.f32.gmra.mxu0 %v1825
    %v2033 = vpop.f32.mrf.mxu0
    %v2034 = vadd.f32 %v1690, %v2033
    %2035 = vmatmul.f32.gmra.mxu0 %v1828
    %v2036 = vpop.f32.mrf.mxu0
    %v2037 = vadd.f32 %v1690, %v2036
    %2038 = vmatmul.f32.gmra.mxu0 %v1831
    %v2039 = vpop.f32.mrf.mxu0
    %v2040 = vadd.f32 %v1690, %v2039
    %2041 = vmatmul.f32.gmra.mxu0 %v1834
    %v2042 = vpop.f32.mrf.mxu0
    %v2043 = vadd.f32 %v1690, %v2042
    %2044 = vmatmul.f32.gmra.mxu0 %v1837
    %v2045 = vpop.f32.mrf.mxu0
    %v2046 = vadd.f32 %v1690, %v2045
    %2047 = vmatmul.f32.gmra.mxu0 %v1840
    %v2048 = vpop.f32.mrf.mxu0
    %v2049 = vadd.f32 %v1690, %v2048
    %2050 = vmatmul.f32.gmra.mxu0 %v1843
    %v2051 = vpop.f32.mrf.mxu0
    %v2052 = vadd.f32 %v1690, %v2051
    %2053 = vmatmul.f32.gmra.mxu0 %v1846
    %v2054 = vpop.f32.mrf.mxu0
    %v2055 = vadd.f32 %v1690, %v2054
    %2056 = vmatmul.f32.gmra.mxu0 %v1849
    %v2057 = vpop.f32.mrf.mxu0
    %v2058 = vadd.f32 %v1690, %v2057
    %2059 = vmatmul.f32.gmra.mxu0 %v1852
    %v2060 = vpop.f32.mrf.mxu0
    %v2061 = vadd.f32 %v1690, %v2060
    %2062 = vmatmul.f32.gmra.mxu0 %v1855
    %v2063 = vpop.f32.mrf.mxu0
    %v2064 = vadd.f32 %v1690, %v2063
    %2065 = vmatmul.f32.gmra.mxu0 %v1858
    %v2066 = vpop.f32.mrf.mxu0
    %v2067 = vadd.f32 %v1690, %v2066
    %2068 = vmatmul.f32.gmra.mxu0 %v1861
    %v2069 = vpop.f32.mrf.mxu0
    %v2070 = vadd.f32 %v1690, %v2069
    %2071 = vmatmul.f32.gmra.mxu0 %v1864
    %v2072 = vpop.f32.mrf.mxu0
    %v2073 = vadd.f32 %v1690, %v2072
    %2074 = vmatmul.f32.gmra.mxu0 %v1867
    %v2075 = vpop.f32.mrf.mxu0
    %v2076 = vadd.f32 %v1690, %v2075
    %2077 = vmatmul.f32.gmra.mxu0 %v1870
    %v2078 = vpop.f32.mrf.mxu0
    %v2079 = vadd.f32 %v1690, %v2078
    %2080 = vmatmul.f32.gmra.mxu0 %v1873
    %v2081 = vpop.f32.mrf.mxu0
    %v2082 = vadd.f32 %v1690, %v2081
    %2083 = vmatmul.f32.gmra.mxu0 %v1876
    %v2084 = vpop.f32.mrf.mxu0
    %v2085 = vadd.f32 %v1690, %v2084
    %2086 = vmatmul.f32.gmra.mxu0 %v1879
    %v2087 = vpop.f32.mrf.mxu0
    %v2088 = vadd.f32 %v1690, %v2087
    %2089 = vmatmul.f32.gmra.mxu0 %v1882
    %v2090 = vpop.f32.mrf.mxu0
    %v2091 = vadd.f32 %v1690, %v2090
    %2092 = vdwg.mxu0
    %vm2093 = vcmask 130048
    %2094 = vst.msk [vmem:[%s20] sm:$0xff] %vm2093, %v1902
    %2095 = vst.msk [vmem:[%s20 + $0x8] sm:$0xff] %vm2093, %v1905
    %2096 = vst.msk [vmem:[%s20 + $0x10] sm:$0xff] %vm2093, %v1908
    %2097 = vst.msk [vmem:[%s20 + $0x18] sm:$0xff] %vm2093, %v1911
    %2098 = vst.msk [vmem:[%s20 + $0x20] sm:$0xff] %vm2093, %v1914
    %2099 = vst.msk [vmem:[%s20 + $0x28] sm:$0xff] %vm2093, %v1917
    %2100 = vst.msk [vmem:[%s20 + $0x30] sm:$0xff] %vm2093, %v1920
    %2101 = vst.msk [vmem:[%s20 + $0x38] sm:$0xff] %vm2093, %v1923
    %2102 = vst.msk [vmem:[%s20 + $0x40] sm:$0xff] %vm2093, %v1926
    %2103 = vst.msk [vmem:[%s20 + $0x48] sm:$0xff] %vm2093, %v1929
    %2104 = vst.msk [vmem:[%s20 + $0x50] sm:$0xff] %vm2093, %v1932
    %2105 = vst.msk [vmem:[%s20 + $0x58] sm:$0xff] %vm2093, %v1935
    %2106 = vst.msk [vmem:[%s20 + $0x60] sm:$0xff] %vm2093, %v1938
    %2107 = vst.msk [vmem:[%s20 + $0x68] sm:$0xff] %vm2093, %v1941
    %2108 = vst.msk [vmem:[%s20 + $0x70] sm:$0xff] %vm2093, %v1944
    %2109 = vst.msk [vmem:[%s20 + $0x78] sm:$0xff] %vm2093, %v1947
    %2110 = vst.msk [vmem:[%s20 + $0x80] sm:$0xff] %vm2093, %v1950
    %2111 = vst.msk [vmem:[%s20 + $0x88] sm:$0xff] %vm2093, %v1953
    %2112 = vst.msk [vmem:[%s20 + $0x90] sm:$0xff] %vm2093, %v1956
    %2113 = vst.msk [vmem:[%s20 + $0x98] sm:$0xff] %vm2093, %v1959
    %2114 = vst.msk [vmem:[%s20 + $0xa0] sm:$0xff] %vm2093, %v1962
    %2115 = vst.msk [vmem:[%s20 + $0xa8] sm:$0xff] %vm2093, %v1965
    %2116 = vst.msk [vmem:[%s20 + $0xb0] sm:$0xff] %vm2093, %v1968
    %2117 = vst.msk [vmem:[%s20 + $0xb8] sm:$0xff] %vm2093, %v1971
    %2118 = vst.msk [vmem:[%s20 + $0xc0] sm:$0xff] %vm2093, %v1974
    %2119 = vst.msk [vmem:[%s20 + $0xc8] sm:$0xff] %vm2093, %v1977
    %2120 = vst.msk [vmem:[%s20 + $0xd0] sm:$0xff] %vm2093, %v1980
    %2121 = vst.msk [vmem:[%s20 + $0xd8] sm:$0xff] %vm2093, %v1983
    %2122 = vst.msk [vmem:[%s20 + $0xe0] sm:$0xff] %vm2093, %v1986
    %2123 = vst.msk [vmem:[%s20 + $0xe8] sm:$0xff] %vm2093, %v1989
    %2124 = vst.msk [vmem:[%s20 + $0xf0] sm:$0xff] %vm2093, %v1992
    %2125 = vst.msk [vmem:[%s20 + $0xf8] sm:$0xff] %vm2093, %v1995
    %2126 = vst.msk [vmem:[%s20 + $0x100] sm:$0xff] %vm2093, %v1998
    %2127 = vst.msk [vmem:[%s20 + $0x108] sm:$0xff] %vm2093, %v2001
    %2128 = vst.msk [vmem:[%s20 + $0x110] sm:$0xff] %vm2093, %v2004
    %2129 = vst.msk [vmem:[%s20 + $0x118] sm:$0xff] %vm2093, %v2007
    %2130 = vst.msk [vmem:[%s20 + $0x120] sm:$0xff] %vm2093, %v2010
    %2131 = vst.msk [vmem:[%s20 + $0x128] sm:$0xff] %vm2093, %v2013
    %2132 = vst.msk [vmem:[%s20 + $0x130] sm:$0xff] %vm2093, %v2016
    %2133 = vst.msk [vmem:[%s20 + $0x138] sm:$0xff] %vm2093, %v2019
    %2134 = vst.msk [vmem:[%s20 + $0x140] sm:$0xff] %vm2093, %v2022
    %2135 = vst.msk [vmem:[%s20 + $0x148] sm:$0xff] %vm2093, %v2025
    %2136 = vst.msk [vmem:[%s20 + $0x150] sm:$0xff] %vm2093, %v2028
    %2137 = vst.msk [vmem:[%s20 + $0x158] sm:$0xff] %vm2093, %v2031
    %2138 = vst.msk [vmem:[%s20 + $0x160] sm:$0xff] %vm2093, %v2034
    %2139 = vst.msk [vmem:[%s20 + $0x168] sm:$0xff] %vm2093, %v2037
    %2140 = vst.msk [vmem:[%s20 + $0x170] sm:$0xff] %vm2093, %v2040
    %2141 = vst.msk [vmem:[%s20 + $0x178] sm:$0xff] %vm2093, %v2043
    %2142 = vst.msk [vmem:[%s20 + $0x180] sm:$0xff] %vm2093, %v2046
    %2143 = vst.msk [vmem:[%s20 + $0x188] sm:$0xff] %vm2093, %v2049
    %2144 = vst.msk [vmem:[%s20 + $0x190] sm:$0xff] %vm2093, %v2052
    %2145 = vst.msk [vmem:[%s20 + $0x198] sm:$0xff] %vm2093, %v2055
    %2146 = vst.msk [vmem:[%s20 + $0x1a0] sm:$0xff] %vm2093, %v2058
    %2147 = vst.msk [vmem:[%s20 + $0x1a8] sm:$0xff] %vm2093, %v2061
    %2148 = vst.msk [vmem:[%s20 + $0x1b0] sm:$0xff] %vm2093, %v2064
    %2149 = vst.msk [vmem:[%s20 + $0x1b8] sm:$0xff] %vm2093, %v2067
    %2150 = vst.msk [vmem:[%s20 + $0x1c0] sm:$0xff] %vm2093, %v2070
    %2151 = vst.msk [vmem:[%s20 + $0x1c8] sm:$0xff] %vm2093, %v2073
    %2152 = vst.msk [vmem:[%s20 + $0x1d0] sm:$0xff] %vm2093, %v2076
    %2153 = vst.msk [vmem:[%s20 + $0x1d8] sm:$0xff] %vm2093, %v2079
    %2154 = vst.msk [vmem:[%s20 + $0x1e0] sm:$0xff] %vm2093, %v2082
    %2155 = vst.msk [vmem:[%s20 + $0x1e8] sm:$0xff] %vm2093, %v2085
    %2156 = vst.msk [vmem:[%s20 + $0x1f0] sm:$0xff] %vm2093, %v2088
    %2157 = vst.msk [vmem:[%s20 + $0x1f8] sm:$0xff] %vm2093, %v2091
    %v2158 = vld [vmem:[%s9] sm:$0xff]
    %v2159 = vld [vmem:[%s9 + $0x8] sm:$0xff]
    %v2160 = vld [vmem:[%s9 + $0x10] sm:$0xff]
    %v2161 = vld [vmem:[%s9 + $0x18] sm:$0xff]
    %v2162 = vld [vmem:[%s9 + $0x20] sm:$0xff]
    %v2163 = vld [vmem:[%s9 + $0x28] sm:$0xff]
    %v2164 = vld [vmem:[%s9 + $0x30] sm:$0xff]
    %v2165 = vld [vmem:[%s9 + $0x38] sm:$0xff]
    %v2166 = vld [vmem:[%s9 + $0x40] sm:$0xff]
    %v2167 = vld [vmem:[%s9 + $0x48] sm:$0xff]
    %v2168 = vld [vmem:[%s9 + $0x50] sm:$0xff]
    %v2169 = vld [vmem:[%s9 + $0x58] sm:$0xff]
    %v2170 = vld [vmem:[%s9 + $0x60] sm:$0xff]
    %v2171 = vld [vmem:[%s9 + $0x68] sm:$0xff]
    %v2172 = vld [vmem:[%s9 + $0x70] sm:$0xff]
    %v2173 = vld [vmem:[%s9 + $0x78] sm:$0xff]
    %v2174 = vld [vmem:[%s10] sm:$0xff]
    %v2175 = vld [vmem:[%s10 + $0x8] sm:$0xff]
    %v2177 = vsel %vm2093, %v1902, 0
    %v2180 = vsel %vm2093, %v1905, 0
    %v2183 = vsel %vm2093, %v1908, 0
    %v2186 = vsel %vm2093, %v1911, 0
    %v2189 = vsel %vm2093, %v1914, 0
    %v2192 = vsel %vm2093, %v1917, 0
    %v2195 = vsel %vm2093, %v1920, 0
    %v2198 = vsel %vm2093, %v1923, 0
    %v2201 = vsel %vm2093, %v1926, 0
    %v2204 = vsel %vm2093, %v1929, 0
    %v2207 = vsel %vm2093, %v1932, 0
    %v2210 = vsel %vm2093, %v1935, 0
    %v2213 = vsel %vm2093, %v1938, 0
    %v2216 = vsel %vm2093, %v1941, 0
    %v2219 = vsel %vm2093, %v1944, 0
    %v2222 = vsel %vm2093, %v1947, 0
    %v2225 = vsel %vm2093, %v1950, 0
    %v2228 = vsel %vm2093, %v1953, 0
    %v2231 = vsel %vm2093, %v1956, 0
    %v2234 = vsel %vm2093, %v1959, 0
    %v2237 = vsel %vm2093, %v1962, 0
    %v2240 = vsel %vm2093, %v1965, 0
    %v2243 = vsel %vm2093, %v1968, 0
    %v2246 = vsel %vm2093, %v1971, 0
    %v2249 = vsel %vm2093, %v1974, 0
    %v2252 = vsel %vm2093, %v1977, 0
    %v2255 = vsel %vm2093, %v1980, 0
    %v2258 = vsel %vm2093, %v1983, 0
    %v2261 = vsel %vm2093, %v1986, 0
    %v2264 = vsel %vm2093, %v1989, 0
    %v2267 = vsel %vm2093, %v1992, 0
    %v2270 = vsel %vm2093, %v1995, 0
    %v2273 = vsel %vm2093, %v1998, 0
    %v2276 = vsel %vm2093, %v2001, 0
    %v2279 = vsel %vm2093, %v2004, 0
    %v2282 = vsel %vm2093, %v2007, 0
    %v2285 = vsel %vm2093, %v2010, 0
    %v2288 = vsel %vm2093, %v2013, 0
    %v2291 = vsel %vm2093, %v2016, 0
    %v2294 = vsel %vm2093, %v2019, 0
    %v2297 = vsel %vm2093, %v2022, 0
    %v2300 = vsel %vm2093, %v2025, 0
    %v2303 = vsel %vm2093, %v2028, 0
    %v2306 = vsel %vm2093, %v2031, 0
    %v2309 = vsel %vm2093, %v2034, 0
    %v2312 = vsel %vm2093, %v2037, 0
    %v2315 = vsel %vm2093, %v2040, 0
    %v2318 = vsel %vm2093, %v2043, 0
    %v2321 = vsel %vm2093, %v2046, 0
    %v2324 = vsel %vm2093, %v2049, 0
    %v2327 = vsel %vm2093, %v2052, 0
    %v2330 = vsel %vm2093, %v2055, 0
    %v2333 = vsel %vm2093, %v2058, 0
    %v2336 = vsel %vm2093, %v2061, 0
    %v2339 = vsel %vm2093, %v2064, 0
    %v2342 = vsel %vm2093, %v2067, 0
    %v2345 = vsel %vm2093, %v2070, 0
    %v2348 = vsel %vm2093, %v2073, 0
    %v2351 = vsel %vm2093, %v2076, 0
    %v2354 = vsel %vm2093, %v2079, 0
    %v2357 = vsel %vm2093, %v2082, 0
    %v2360 = vsel %vm2093, %v2085, 0
    %v2363 = vsel %vm2093, %v2088, 0
    %v2366 = vsel %vm2093, %v2091, 0
    %2368 = vmatpush.msra.mxu0 0.0
    %2369 = vmatpush.msra.mxu0 0.0
    %2370 = vmatpush.msra.mxu0 0.0
    %2371 = vmatpush.msra.mxu0 0.0
    %2372 = vmatpush.msra.mxu0 0.0
    %2373 = vmatpush.msra.mxu0 0.0
    %2374 = vmatpush.msra.mxu0 0.0
    %2375 = vmatpush.msra.mxu0 0.0
    %2376 = vmatpush.msra.mxu0 0.0
    %2377 = vmatpush.msra.mxu0 0.0
    %2378 = vmatpush.msra.mxu0 0.0
    %2379 = vmatpush.msra.mxu0 0.0
    %2380 = vmatpush.msra.mxu0 0.0
    %2381 = vmatpush.msra.mxu0 0.0
    %2382 = vmatpush.msra.mxu0 %v2175
    %2383 = vmatpush.msra.mxu0 %v2174
    %2384 = vmatmul.f32.gmra.mxu0 %v2177
    %v2385 = vpop.f32.mrf.mxu0
    %v2386 = vadd.f32 0.0, %v2385
    %2387 = vmatmul.f32.gmra.mxu0 %v2180
    %v2388 = vpop.f32.mrf.mxu0
    %v2389 = vadd.f32 0.0, %v2388
    %2390 = vmatmul.f32.gmra.mxu0 %v2183
    %v2391 = vpop.f32.mrf.mxu0
    %v2392 = vadd.f32 0.0, %v2391
    %2393 = vmatmul.f32.gmra.mxu0 %v2186
    %v2394 = vpop.f32.mrf.mxu0
    %v2395 = vadd.f32 0.0, %v2394
    %2396 = vmatmul.f32.gmra.mxu0 %v2189
    %v2397 = vpop.f32.mrf.mxu0
    %v2398 = vadd.f32 0.0, %v2397
    %2399 = vmatmul.f32.gmra.mxu0 %v2192
    %v2400 = vpop.f32.mrf.mxu0
    %v2401 = vadd.f32 0.0, %v2400
    %2402 = vmatmul.f32.gmra.mxu0 %v2195
    %v2403 = vpop.f32.mrf.mxu0
    %v2404 = vadd.f32 0.0, %v2403
    %2405 = vmatmul.f32.gmra.mxu0 %v2198
    %v2406 = vpop.f32.mrf.mxu0
    %v2407 = vadd.f32 0.0, %v2406
    %2408 = vmatmul.f32.gmra.mxu0 %v2201
    %v2409 = vpop.f32.mrf.mxu0
    %v2410 = vadd.f32 0.0, %v2409
    %2411 = vmatmul.f32.gmra.mxu0 %v2204
    %v2412 = vpop.f32.mrf.mxu0
    %v2413 = vadd.f32 0.0, %v2412
    %2414 = vmatmul.f32.gmra.mxu0 %v2207
    %v2415 = vpop.f32.mrf.mxu0
    %v2416 = vadd.f32 0.0, %v2415
    %2417 = vmatmul.f32.gmra.mxu0 %v2210
    %v2418 = vpop.f32.mrf.mxu0
    %v2419 = vadd.f32 0.0, %v2418
    %2420 = vmatmul.f32.gmra.mxu0 %v2213
    %v2421 = vpop.f32.mrf.mxu0
    %v2422 = vadd.f32 0.0, %v2421
    %2423 = vmatmul.f32.gmra.mxu0 %v2216
    %v2424 = vpop.f32.mrf.mxu0
    %v2425 = vadd.f32 0.0, %v2424
    %2426 = vmatmul.f32.gmra.mxu0 %v2219
    %v2427 = vpop.f32.mrf.mxu0
    %v2428 = vadd.f32 0.0, %v2427
    %2429 = vmatmul.f32.gmra.mxu0 %v2222
    %v2430 = vpop.f32.mrf.mxu0
    %v2431 = vadd.f32 0.0, %v2430
    %2432 = vmatmul.f32.gmra.mxu0 %v2225
    %v2433 = vpop.f32.mrf.mxu0
    %v2434 = vadd.f32 0.0, %v2433
    %2435 = vmatmul.f32.gmra.mxu0 %v2228
    %v2436 = vpop.f32.mrf.mxu0
    %v2437 = vadd.f32 0.0, %v2436
    %2438 = vmatmul.f32.gmra.mxu0 %v2231
    %v2439 = vpop.f32.mrf.mxu0
    %v2440 = vadd.f32 0.0, %v2439
    %2441 = vmatmul.f32.gmra.mxu0 %v2234
    %v2442 = vpop.f32.mrf.mxu0
    %v2443 = vadd.f32 0.0, %v2442
    %2444 = vmatmul.f32.gmra.mxu0 %v2237
    %v2445 = vpop.f32.mrf.mxu0
    %v2446 = vadd.f32 0.0, %v2445
    %2447 = vmatmul.f32.gmra.mxu0 %v2240
    %v2448 = vpop.f32.mrf.mxu0
    %v2449 = vadd.f32 0.0, %v2448
    %2450 = vmatmul.f32.gmra.mxu0 %v2243
    %v2451 = vpop.f32.mrf.mxu0
    %v2452 = vadd.f32 0.0, %v2451
    %2453 = vmatmul.f32.gmra.mxu0 %v2246
    %v2454 = vpop.f32.mrf.mxu0
    %v2455 = vadd.f32 0.0, %v2454
    %2456 = vmatmul.f32.gmra.mxu0 %v2249
    %v2457 = vpop.f32.mrf.mxu0
    %v2458 = vadd.f32 0.0, %v2457
    %2459 = vmatmul.f32.gmra.mxu0 %v2252
    %v2460 = vpop.f32.mrf.mxu0
    %v2461 = vadd.f32 0.0, %v2460
    %2462 = vmatmul.f32.gmra.mxu0 %v2255
    %v2463 = vpop.f32.mrf.mxu0
    %v2464 = vadd.f32 0.0, %v2463
    %2465 = vmatmul.f32.gmra.mxu0 %v2258
    %v2466 = vpop.f32.mrf.mxu0
    %v2467 = vadd.f32 0.0, %v2466
    %2468 = vmatmul.f32.gmra.mxu0 %v2261
    %v2469 = vpop.f32.mrf.mxu0
    %v2470 = vadd.f32 0.0, %v2469
    %2471 = vmatmul.f32.gmra.mxu0 %v2264
    %v2472 = vpop.f32.mrf.mxu0
    %v2473 = vadd.f32 0.0, %v2472
    %2474 = vmatmul.f32.gmra.mxu0 %v2267
    %v2475 = vpop.f32.mrf.mxu0
    %v2476 = vadd.f32 0.0, %v2475
    %2477 = vmatmul.f32.gmra.mxu0 %v2270
    %v2478 = vpop.f32.mrf.mxu0
    %v2479 = vadd.f32 0.0, %v2478
    %2480 = vmatmul.f32.gmra.mxu0 %v2273
    %v2481 = vpop.f32.mrf.mxu0
    %v2482 = vadd.f32 0.0, %v2481
    %2483 = vmatmul.f32.gmra.mxu0 %v2276
    %v2484 = vpop.f32.mrf.mxu0
    %v2485 = vadd.f32 0.0, %v2484
    %2486 = vmatmul.f32.gmra.mxu0 %v2279
    %v2487 = vpop.f32.mrf.mxu0
    %v2488 = vadd.f32 0.0, %v2487
    %2489 = vmatmul.f32.gmra.mxu0 %v2282
    %v2490 = vpop.f32.mrf.mxu0
    %v2491 = vadd.f32 0.0, %v2490
    %2492 = vmatmul.f32.gmra.mxu0 %v2285
    %v2493 = vpop.f32.mrf.mxu0
    %v2494 = vadd.f32 0.0, %v2493
    %2495 = vmatmul.f32.gmra.mxu0 %v2288
    %v2496 = vpop.f32.mrf.mxu0
    %v2497 = vadd.f32 0.0, %v2496
    %2498 = vmatmul.f32.gmra.mxu0 %v2291
    %v2499 = vpop.f32.mrf.mxu0
    %v2500 = vadd.f32 0.0, %v2499
    %2501 = vmatmul.f32.gmra.mxu0 %v2294
    %v2502 = vpop.f32.mrf.mxu0
    %v2503 = vadd.f32 0.0, %v2502
    %2504 = vmatmul.f32.gmra.mxu0 %v2297
    %v2505 = vpop.f32.mrf.mxu0
    %v2506 = vadd.f32 0.0, %v2505
    %2507 = vmatmul.f32.gmra.mxu0 %v2300
    %v2508 = vpop.f32.mrf.mxu0
    %v2509 = vadd.f32 0.0, %v2508
    %2510 = vmatmul.f32.gmra.mxu0 %v2303
    %v2511 = vpop.f32.mrf.mxu0
    %v2512 = vadd.f32 0.0, %v2511
    %2513 = vmatmul.f32.gmra.mxu0 %v2306
    %v2514 = vpop.f32.mrf.mxu0
    %v2515 = vadd.f32 0.0, %v2514
    %2516 = vmatmul.f32.gmra.mxu0 %v2309
    %v2517 = vpop.f32.mrf.mxu0
    %v2518 = vadd.f32 0.0, %v2517
    %2519 = vmatmul.f32.gmra.mxu0 %v2312
    %v2520 = vpop.f32.mrf.mxu0
    %v2521 = vadd.f32 0.0, %v2520
    %2522 = vmatmul.f32.gmra.mxu0 %v2315
    %v2523 = vpop.f32.mrf.mxu0
    %v2524 = vadd.f32 0.0, %v2523
    %2525 = vmatmul.f32.gmra.mxu0 %v2318
    %v2526 = vpop.f32.mrf.mxu0
    %v2527 = vadd.f32 0.0, %v2526
    %2528 = vmatmul.f32.gmra.mxu0 %v2321
    %v2529 = vpop.f32.mrf.mxu0
    %v2530 = vadd.f32 0.0, %v2529
    %2531 = vmatmul.f32.gmra.mxu0 %v2324
    %v2532 = vpop.f32.mrf.mxu0
    %v2533 = vadd.f32 0.0, %v2532
    %2534 = vmatmul.f32.gmra.mxu0 %v2327
    %v2535 = vpop.f32.mrf.mxu0
    %v2536 = vadd.f32 0.0, %v2535
    %2537 = vmatmul.f32.gmra.mxu0 %v2330
    %v2538 = vpop.f32.mrf.mxu0
    %v2539 = vadd.f32 0.0, %v2538
    %2540 = vmatmul.f32.gmra.mxu0 %v2333
    %v2541 = vpop.f32.mrf.mxu0
    %v2542 = vadd.f32 0.0, %v2541
    %2543 = vmatmul.f32.gmra.mxu0 %v2336
    %v2544 = vpop.f32.mrf.mxu0
    %v2545 = vadd.f32 0.0, %v2544
    %2546 = vmatmul.f32.gmra.mxu0 %v2339
    %v2547 = vpop.f32.mrf.mxu0
    %v2548 = vadd.f32 0.0, %v2547
    %2549 = vmatmul.f32.gmra.mxu0 %v2342
    %v2550 = vpop.f32.mrf.mxu0
    %v2551 = vadd.f32 0.0, %v2550
    %2552 = vmatmul.f32.gmra.mxu0 %v2345
    %v2553 = vpop.f32.mrf.mxu0
    %v2554 = vadd.f32 0.0, %v2553
    %2555 = vmatmul.f32.gmra.mxu0 %v2348
    %v2556 = vpop.f32.mrf.mxu0
    %v2557 = vadd.f32 0.0, %v2556
    %2558 = vmatmul.f32.gmra.mxu0 %v2351
    %v2559 = vpop.f32.mrf.mxu0
    %v2560 = vadd.f32 0.0, %v2559
    %2561 = vmatmul.f32.gmra.mxu0 %v2354
    %v2562 = vpop.f32.mrf.mxu0
    %v2563 = vadd.f32 0.0, %v2562
    %2564 = vmatmul.f32.gmra.mxu0 %v2357
    %v2565 = vpop.f32.mrf.mxu0
    %v2566 = vadd.f32 0.0, %v2565
    %2567 = vmatmul.f32.gmra.mxu0 %v2360
    %v2568 = vpop.f32.mrf.mxu0
    %v2569 = vadd.f32 0.0, %v2568
    %2570 = vmatmul.f32.gmra.mxu0 %v2363
    %v2571 = vpop.f32.mrf.mxu0
    %v2572 = vadd.f32 0.0, %v2571
    %2573 = vmatmul.f32.gmra.mxu0 %v2366
    %v2574 = vpop.f32.mrf.mxu0
    %v2575 = vadd.f32 0.0, %v2574
    %2576 = vdwg.mxu0
    %v2577 = vld [vmem:[%s11] sm:$0x1]
    %v2578 = vmul.f32 %v2386, 2.0
    %v2579 = vmul.f32 %v2389, 2.0
    %v2580 = vmul.f32 %v2392, 2.0
    %v2581 = vmul.f32 %v2395, 2.0
    %v2582 = vmul.f32 %v2398, 2.0
    %v2583 = vmul.f32 %v2401, 2.0
    %v2584 = vmul.f32 %v2404, 2.0
    %v2585 = vmul.f32 %v2407, 2.0
    %v2586 = vmul.f32 %v2410, 2.0
    %v2587 = vmul.f32 %v2413, 2.0
    %v2588 = vmul.f32 %v2416, 2.0
    %v2589 = vmul.f32 %v2419, 2.0
    %v2590 = vmul.f32 %v2422, 2.0
    %v2591 = vmul.f32 %v2425, 2.0
    %v2592 = vmul.f32 %v2428, 2.0
    %v2593 = vmul.f32 %v2431, 2.0
    %v2594 = vmul.f32 %v2434, 2.0
    %v2595 = vmul.f32 %v2437, 2.0
    %v2596 = vmul.f32 %v2440, 2.0
    %v2597 = vmul.f32 %v2443, 2.0
    %v2598 = vmul.f32 %v2446, 2.0
    %v2599 = vmul.f32 %v2449, 2.0
    %v2600 = vmul.f32 %v2452, 2.0
    %v2601 = vmul.f32 %v2455, 2.0
    %v2602 = vmul.f32 %v2458, 2.0
    %v2603 = vmul.f32 %v2461, 2.0
    %v2604 = vmul.f32 %v2464, 2.0
    %v2605 = vmul.f32 %v2467, 2.0
    %v2606 = vmul.f32 %v2470, 2.0
    %v2607 = vmul.f32 %v2473, 2.0
    %v2608 = vmul.f32 %v2476, 2.0
    %v2609 = vmul.f32 %v2479, 2.0
    %v2610 = vmul.f32 %v2482, 2.0
    %v2611 = vmul.f32 %v2485, 2.0
    %v2612 = vmul.f32 %v2488, 2.0
    %v2613 = vmul.f32 %v2491, 2.0
    %v2614 = vmul.f32 %v2494, 2.0
    %v2615 = vmul.f32 %v2497, 2.0
    %v2616 = vmul.f32 %v2500, 2.0
    %v2617 = vmul.f32 %v2503, 2.0
    %v2618 = vmul.f32 %v2506, 2.0
    %v2619 = vmul.f32 %v2509, 2.0
    %v2620 = vmul.f32 %v2512, 2.0
    %v2621 = vmul.f32 %v2515, 2.0
    %v2622 = vmul.f32 %v2518, 2.0
    %v2623 = vmul.f32 %v2521, 2.0
    %v2624 = vmul.f32 %v2524, 2.0
    %v2625 = vmul.f32 %v2527, 2.0
    %v2626 = vmul.f32 %v2530, 2.0
    %v2627 = vmul.f32 %v2533, 2.0
    %v2628 = vmul.f32 %v2536, 2.0
    %v2629 = vmul.f32 %v2539, 2.0
    %v2630 = vmul.f32 %v2542, 2.0
    %v2631 = vmul.f32 %v2545, 2.0
    %v2632 = vmul.f32 %v2548, 2.0
    %v2633 = vmul.f32 %v2551, 2.0
    %v2634 = vmul.f32 %v2554, 2.0
    %v2635 = vmul.f32 %v2557, 2.0
    %v2636 = vmul.f32 %v2560, 2.0
    %v2637 = vmul.f32 %v2563, 2.0
    %v2638 = vmul.f32 %v2566, 2.0
    %v2639 = vmul.f32 %v2569, 2.0
    %v2640 = vmul.f32 %v2572, 2.0
    %v2641 = vmul.f32 %v2575, 2.0
    %v2643 = vperm.slane %v2577, 0
    %v2645 = vsub.f32 %v2643, %v2578
    %v2646 = vsub.f32 %v2643, %v2579
    %v2647 = vsub.f32 %v2643, %v2580
    %v2648 = vsub.f32 %v2643, %v2581
    %v2649 = vsub.f32 %v2643, %v2582
    %v2650 = vsub.f32 %v2643, %v2583
    %v2651 = vsub.f32 %v2643, %v2584
    %v2652 = vsub.f32 %v2643, %v2585
    %v2653 = vsub.f32 %v2643, %v2586
    %v2654 = vsub.f32 %v2643, %v2587
    %v2655 = vsub.f32 %v2643, %v2588
    %v2656 = vsub.f32 %v2643, %v2589
    %v2657 = vsub.f32 %v2643, %v2590
    %v2658 = vsub.f32 %v2643, %v2591
    %v2659 = vsub.f32 %v2643, %v2592
    %v2660 = vsub.f32 %v2643, %v2593
    %v2661 = vsub.f32 %v2643, %v2594
    %v2662 = vsub.f32 %v2643, %v2595
    %v2663 = vsub.f32 %v2643, %v2596
    %v2664 = vsub.f32 %v2643, %v2597
    %v2665 = vsub.f32 %v2643, %v2598
    %v2666 = vsub.f32 %v2643, %v2599
    %v2667 = vsub.f32 %v2643, %v2600
    %v2668 = vsub.f32 %v2643, %v2601
    %v2669 = vsub.f32 %v2643, %v2602
    %v2670 = vsub.f32 %v2643, %v2603
    %v2671 = vsub.f32 %v2643, %v2604
    %v2672 = vsub.f32 %v2643, %v2605
    %v2673 = vsub.f32 %v2643, %v2606
    %v2674 = vsub.f32 %v2643, %v2607
    %v2675 = vsub.f32 %v2643, %v2608
    %v2676 = vsub.f32 %v2643, %v2609
    %v2677 = vsub.f32 %v2643, %v2610
    %v2678 = vsub.f32 %v2643, %v2611
    %v2679 = vsub.f32 %v2643, %v2612
    %v2680 = vsub.f32 %v2643, %v2613
    %v2681 = vsub.f32 %v2643, %v2614
    %v2682 = vsub.f32 %v2643, %v2615
    %v2683 = vsub.f32 %v2643, %v2616
    %v2684 = vsub.f32 %v2643, %v2617
    %v2685 = vsub.f32 %v2643, %v2618
    %v2686 = vsub.f32 %v2643, %v2619
    %v2687 = vsub.f32 %v2643, %v2620
    %v2688 = vsub.f32 %v2643, %v2621
    %v2689 = vsub.f32 %v2643, %v2622
    %v2690 = vsub.f32 %v2643, %v2623
    %v2691 = vsub.f32 %v2643, %v2624
    %v2692 = vsub.f32 %v2643, %v2625
    %v2693 = vsub.f32 %v2643, %v2626
    %v2694 = vsub.f32 %v2643, %v2627
    %v2695 = vsub.f32 %v2643, %v2628
    %v2696 = vsub.f32 %v2643, %v2629
    %v2697 = vsub.f32 %v2643, %v2630
    %v2698 = vsub.f32 %v2643, %v2631
    %v2699 = vsub.f32 %v2643, %v2632
    %v2700 = vsub.f32 %v2643, %v2633
    %v2701 = vsub.f32 %v2643, %v2634
    %v2702 = vsub.f32 %v2643, %v2635
    %v2703 = vsub.f32 %v2643, %v2636
    %v2704 = vsub.f32 %v2643, %v2637
    %v2705 = vsub.f32 %v2643, %v2638
    %v2706 = vsub.f32 %v2643, %v2639
    %v2707 = vsub.f32 %v2643, %v2640
    %v2708 = vsub.f32 %v2643, %v2641
    %2709 = vmin.xlane.f32.xlu0 %v2645
    %v2710 = vpop.xlane.xlu0 %2709
    %2711 = vmin.xlane.f32.xlu0 %v2646
    %v2712 = vpop.xlane.xlu0 %2711
    %2713 = vmin.xlane.f32.xlu0 %v2647
    %v2714 = vpop.xlane.xlu0 %2713
    %2715 = vmin.xlane.f32.xlu0 %v2648
    %v2716 = vpop.xlane.xlu0 %2715
    %2717 = vmin.xlane.f32.xlu0 %v2649
    %v2718 = vpop.xlane.xlu0 %2717
    %2719 = vmin.xlane.f32.xlu0 %v2650
    %v2720 = vpop.xlane.xlu0 %2719
    %2721 = vmin.xlane.f32.xlu0 %v2651
    %v2722 = vpop.xlane.xlu0 %2721
    %2723 = vmin.xlane.f32.xlu0 %v2652
    %v2724 = vpop.xlane.xlu0 %2723
    %2725 = vmin.xlane.f32.xlu0 %v2653
    %v2726 = vpop.xlane.xlu0 %2725
    %2727 = vmin.xlane.f32.xlu0 %v2654
    %v2728 = vpop.xlane.xlu0 %2727
    %2729 = vmin.xlane.f32.xlu0 %v2655
    %v2730 = vpop.xlane.xlu0 %2729
    %2731 = vmin.xlane.f32.xlu0 %v2656
    %v2732 = vpop.xlane.xlu0 %2731
    %2733 = vmin.xlane.f32.xlu0 %v2657
    %v2734 = vpop.xlane.xlu0 %2733
    %2735 = vmin.xlane.f32.xlu0 %v2658
    %v2736 = vpop.xlane.xlu0 %2735
    %2737 = vmin.xlane.f32.xlu0 %v2659
    %v2738 = vpop.xlane.xlu0 %2737
    %2739 = vmin.xlane.f32.xlu0 %v2660
    %v2740 = vpop.xlane.xlu0 %2739
    %2741 = vmin.xlane.f32.xlu0 %v2661
    %v2742 = vpop.xlane.xlu0 %2741
    %2743 = vmin.xlane.f32.xlu0 %v2662
    %v2744 = vpop.xlane.xlu0 %2743
    %2745 = vmin.xlane.f32.xlu0 %v2663
    %v2746 = vpop.xlane.xlu0 %2745
    %2747 = vmin.xlane.f32.xlu0 %v2664
    %v2748 = vpop.xlane.xlu0 %2747
    %2749 = vmin.xlane.f32.xlu0 %v2665
    %v2750 = vpop.xlane.xlu0 %2749
    %2751 = vmin.xlane.f32.xlu0 %v2666
    %v2752 = vpop.xlane.xlu0 %2751
    %2753 = vmin.xlane.f32.xlu0 %v2667
    %v2754 = vpop.xlane.xlu0 %2753
    %2755 = vmin.xlane.f32.xlu0 %v2668
    %v2756 = vpop.xlane.xlu0 %2755
    %2757 = vmin.xlane.f32.xlu0 %v2669
    %v2758 = vpop.xlane.xlu0 %2757
    %2759 = vmin.xlane.f32.xlu0 %v2670
    %v2760 = vpop.xlane.xlu0 %2759
    %2761 = vmin.xlane.f32.xlu0 %v2671
    %v2762 = vpop.xlane.xlu0 %2761
    %2763 = vmin.xlane.f32.xlu0 %v2672
    %v2764 = vpop.xlane.xlu0 %2763
    %2765 = vmin.xlane.f32.xlu0 %v2673
    %v2766 = vpop.xlane.xlu0 %2765
    %2767 = vmin.xlane.f32.xlu0 %v2674
    %v2768 = vpop.xlane.xlu0 %2767
    %2769 = vmin.xlane.f32.xlu0 %v2675
    %v2770 = vpop.xlane.xlu0 %2769
    %2771 = vmin.xlane.f32.xlu0 %v2676
    %v2772 = vpop.xlane.xlu0 %2771
    %2773 = vmin.xlane.f32.xlu0 %v2677
    %v2774 = vpop.xlane.xlu0 %2773
    %2775 = vmin.xlane.f32.xlu0 %v2678
    %v2776 = vpop.xlane.xlu0 %2775
    %2777 = vmin.xlane.f32.xlu0 %v2679
    %v2778 = vpop.xlane.xlu0 %2777
    %2779 = vmin.xlane.f32.xlu0 %v2680
    %v2780 = vpop.xlane.xlu0 %2779
    %2781 = vmin.xlane.f32.xlu0 %v2681
    %v2782 = vpop.xlane.xlu0 %2781
    %2783 = vmin.xlane.f32.xlu0 %v2682
    %v2784 = vpop.xlane.xlu0 %2783
    %2785 = vmin.xlane.f32.xlu0 %v2683
    %v2786 = vpop.xlane.xlu0 %2785
    %2787 = vmin.xlane.f32.xlu0 %v2684
    %v2788 = vpop.xlane.xlu0 %2787
    %2789 = vmin.xlane.f32.xlu0 %v2685
    %v2790 = vpop.xlane.xlu0 %2789
    %2791 = vmin.xlane.f32.xlu0 %v2686
    %v2792 = vpop.xlane.xlu0 %2791
    %2793 = vmin.xlane.f32.xlu0 %v2687
    %v2794 = vpop.xlane.xlu0 %2793
    %2795 = vmin.xlane.f32.xlu0 %v2688
    %v2796 = vpop.xlane.xlu0 %2795
    %2797 = vmin.xlane.f32.xlu0 %v2689
    %v2798 = vpop.xlane.xlu0 %2797
    %2799 = vmin.xlane.f32.xlu0 %v2690
    %v2800 = vpop.xlane.xlu0 %2799
    %2801 = vmin.xlane.f32.xlu0 %v2691
    %v2802 = vpop.xlane.xlu0 %2801
    %2803 = vmin.xlane.f32.xlu0 %v2692
    %v2804 = vpop.xlane.xlu0 %2803
    %2805 = vmin.xlane.f32.xlu0 %v2693
    %v2806 = vpop.xlane.xlu0 %2805
    %2807 = vmin.xlane.f32.xlu0 %v2694
    %v2808 = vpop.xlane.xlu0 %2807
    %2809 = vmin.xlane.f32.xlu0 %v2695
    %v2810 = vpop.xlane.xlu0 %2809
    %2811 = vmin.xlane.f32.xlu0 %v2696
    %v2812 = vpop.xlane.xlu0 %2811
    %2813 = vmin.xlane.f32.xlu0 %v2697
    %v2814 = vpop.xlane.xlu0 %2813
    %2815 = vmin.xlane.f32.xlu0 %v2698
    %v2816 = vpop.xlane.xlu0 %2815
    %2817 = vmin.xlane.f32.xlu0 %v2699
    %v2818 = vpop.xlane.xlu0 %2817
    %2819 = vmin.xlane.f32.xlu0 %v2700
    %v2820 = vpop.xlane.xlu0 %2819
    %2821 = vmin.xlane.f32.xlu0 %v2701
    %v2822 = vpop.xlane.xlu0 %2821
    %2823 = vmin.xlane.f32.xlu0 %v2702
    %v2824 = vpop.xlane.xlu0 %2823
    %2825 = vmin.xlane.f32.xlu0 %v2703
    %v2826 = vpop.xlane.xlu0 %2825
    %2827 = vmin.xlane.f32.xlu0 %v2704
    %v2828 = vpop.xlane.xlu0 %2827
    %2829 = vmin.xlane.f32.xlu0 %v2705
    %v2830 = vpop.xlane.xlu0 %2829
    %2831 = vmin.xlane.f32.xlu0 %v2706
    %v2832 = vpop.xlane.xlu0 %2831
    %2833 = vmin.xlane.f32.xlu0 %v2707
    %v2834 = vpop.xlane.xlu0 %2833
    %2835 = vmin.xlane.f32.xlu0 %v2708
    %v2836 = vpop.xlane.xlu0 %2835
    %v2837 = vlaneseq
    %v2838 = vand.u32 %v2837, 127
    %vm2839 = vcmp.le.f32.partialorder %v2645, %v2710
    %vm2840 = vcmp.le.f32.partialorder %v2646, %v2712
    %vm2841 = vcmp.le.f32.partialorder %v2647, %v2714
    %vm2842 = vcmp.le.f32.partialorder %v2648, %v2716
    %vm2843 = vcmp.le.f32.partialorder %v2649, %v2718
    %vm2844 = vcmp.le.f32.partialorder %v2650, %v2720
    %vm2845 = vcmp.le.f32.partialorder %v2651, %v2722
    %vm2846 = vcmp.le.f32.partialorder %v2652, %v2724
    %vm2847 = vcmp.le.f32.partialorder %v2653, %v2726
    %vm2848 = vcmp.le.f32.partialorder %v2654, %v2728
    %vm2849 = vcmp.le.f32.partialorder %v2655, %v2730
    %vm2850 = vcmp.le.f32.partialorder %v2656, %v2732
    %vm2851 = vcmp.le.f32.partialorder %v2657, %v2734
    %vm2852 = vcmp.le.f32.partialorder %v2658, %v2736
    %vm2853 = vcmp.le.f32.partialorder %v2659, %v2738
    %vm2854 = vcmp.le.f32.partialorder %v2660, %v2740
    %vm2855 = vcmp.le.f32.partialorder %v2661, %v2742
    %vm2856 = vcmp.le.f32.partialorder %v2662, %v2744
    %vm2857 = vcmp.le.f32.partialorder %v2663, %v2746
    %vm2858 = vcmp.le.f32.partialorder %v2664, %v2748
    %vm2859 = vcmp.le.f32.partialorder %v2665, %v2750
    %vm2860 = vcmp.le.f32.partialorder %v2666, %v2752
    %vm2861 = vcmp.le.f32.partialorder %v2667, %v2754
    %vm2862 = vcmp.le.f32.partialorder %v2668, %v2756
    %vm2863 = vcmp.le.f32.partialorder %v2669, %v2758
    %vm2864 = vcmp.le.f32.partialorder %v2670, %v2760
    %vm2865 = vcmp.le.f32.partialorder %v2671, %v2762
    %vm2866 = vcmp.le.f32.partialorder %v2672, %v2764
    %vm2867 = vcmp.le.f32.partialorder %v2673, %v2766
    %vm2868 = vcmp.le.f32.partialorder %v2674, %v2768
    %vm2869 = vcmp.le.f32.partialorder %v2675, %v2770
    %vm2870 = vcmp.le.f32.partialorder %v2676, %v2772
    %vm2871 = vcmp.le.f32.partialorder %v2677, %v2774
    %vm2872 = vcmp.le.f32.partialorder %v2678, %v2776
    %vm2873 = vcmp.le.f32.partialorder %v2679, %v2778
    %vm2874 = vcmp.le.f32.partialorder %v2680, %v2780
    %vm2875 = vcmp.le.f32.partialorder %v2681, %v2782
    %vm2876 = vcmp.le.f32.partialorder %v2682, %v2784
    %vm2877 = vcmp.le.f32.partialorder %v2683, %v2786
    %vm2878 = vcmp.le.f32.partialorder %v2684, %v2788
    %vm2879 = vcmp.le.f32.partialorder %v2685, %v2790
    %vm2880 = vcmp.le.f32.partialorder %v2686, %v2792
    %vm2881 = vcmp.le.f32.partialorder %v2687, %v2794
    %vm2882 = vcmp.le.f32.partialorder %v2688, %v2796
    %vm2883 = vcmp.le.f32.partialorder %v2689, %v2798
    %vm2884 = vcmp.le.f32.partialorder %v2690, %v2800
    %vm2885 = vcmp.le.f32.partialorder %v2691, %v2802
    %vm2886 = vcmp.le.f32.partialorder %v2692, %v2804
    %vm2887 = vcmp.le.f32.partialorder %v2693, %v2806
    %vm2888 = vcmp.le.f32.partialorder %v2694, %v2808
    %vm2889 = vcmp.le.f32.partialorder %v2695, %v2810
    %vm2890 = vcmp.le.f32.partialorder %v2696, %v2812
    %vm2891 = vcmp.le.f32.partialorder %v2697, %v2814
    %vm2892 = vcmp.le.f32.partialorder %v2698, %v2816
    %vm2893 = vcmp.le.f32.partialorder %v2699, %v2818
    %vm2894 = vcmp.le.f32.partialorder %v2700, %v2820
    %vm2895 = vcmp.le.f32.partialorder %v2701, %v2822
    %vm2896 = vcmp.le.f32.partialorder %v2702, %v2824
    %vm2897 = vcmp.le.f32.partialorder %v2703, %v2826
    %vm2898 = vcmp.le.f32.partialorder %v2704, %v2828
    %vm2899 = vcmp.le.f32.partialorder %v2705, %v2830
    %vm2900 = vcmp.le.f32.partialorder %v2706, %v2832
    %vm2901 = vcmp.le.f32.partialorder %v2707, %v2834
    %vm2902 = vcmp.le.f32.partialorder %v2708, %v2836
    %v2903 = vsel %vm2839, %v2838, 128
    %v2904 = vsel %vm2840, %v2838, 128
    %v2905 = vsel %vm2841, %v2838, 128
    %v2906 = vsel %vm2842, %v2838, 128
    %v2907 = vsel %vm2843, %v2838, 128
    %v2908 = vsel %vm2844, %v2838, 128
    %v2909 = vsel %vm2845, %v2838, 128
    %v2910 = vsel %vm2846, %v2838, 128
    %v2911 = vsel %vm2847, %v2838, 128
    %v2912 = vsel %vm2848, %v2838, 128
    %v2913 = vsel %vm2849, %v2838, 128
    %v2914 = vsel %vm2850, %v2838, 128
    %v2915 = vsel %vm2851, %v2838, 128
    %v2916 = vsel %vm2852, %v2838, 128
    %v2917 = vsel %vm2853, %v2838, 128
    %v2918 = vsel %vm2854, %v2838, 128
    %v2919 = vsel %vm2855, %v2838, 128
    %v2920 = vsel %vm2856, %v2838, 128
    %v2921 = vsel %vm2857, %v2838, 128
    %v2922 = vsel %vm2858, %v2838, 128
    %v2923 = vsel %vm2859, %v2838, 128
    %v2924 = vsel %vm2860, %v2838, 128
    %v2925 = vsel %vm2861, %v2838, 128
    %v2926 = vsel %vm2862, %v2838, 128
    %v2927 = vsel %vm2863, %v2838, 128
    %v2928 = vsel %vm2864, %v2838, 128
    %v2929 = vsel %vm2865, %v2838, 128
    %v2930 = vsel %vm2866, %v2838, 128
    %v2931 = vsel %vm2867, %v2838, 128
    %v2932 = vsel %vm2868, %v2838, 128
    %v2933 = vsel %vm2869, %v2838, 128
    %v2934 = vsel %vm2870, %v2838, 128
    %v2935 = vsel %vm2871, %v2838, 128
    %v2936 = vsel %vm2872, %v2838, 128
    %v2937 = vsel %vm2873, %v2838, 128
    %v2938 = vsel %vm2874, %v2838, 128
    %v2939 = vsel %vm2875, %v2838, 128
    %v2940 = vsel %vm2876, %v2838, 128
    %v2941 = vsel %vm2877, %v2838, 128
    %v2942 = vsel %vm2878, %v2838, 128
    %v2943 = vsel %vm2879, %v2838, 128
    %v2944 = vsel %vm2880, %v2838, 128
    %v2945 = vsel %vm2881, %v2838, 128
    %v2946 = vsel %vm2882, %v2838, 128
    %v2947 = vsel %vm2883, %v2838, 128
    %v2948 = vsel %vm2884, %v2838, 128
    %v2949 = vsel %vm2885, %v2838, 128
    %v2950 = vsel %vm2886, %v2838, 128
    %v2951 = vsel %vm2887, %v2838, 128
    %v2952 = vsel %vm2888, %v2838, 128
    %v2953 = vsel %vm2889, %v2838, 128
    %v2954 = vsel %vm2890, %v2838, 128
    %v2955 = vsel %vm2891, %v2838, 128
    %v2956 = vsel %vm2892, %v2838, 128
    %v2957 = vsel %vm2893, %v2838, 128
    %v2958 = vsel %vm2894, %v2838, 128
    %v2959 = vsel %vm2895, %v2838, 128
    %v2960 = vsel %vm2896, %v2838, 128
    %v2961 = vsel %vm2897, %v2838, 128
    %v2962 = vsel %vm2898, %v2838, 128
    %v2963 = vsel %vm2899, %v2838, 128
    %v2964 = vsel %vm2900, %v2838, 128
    %v2965 = vsel %vm2901, %v2838, 128
    %v2966 = vsel %vm2902, %v2838, 128
    %v2967 = vand.u32 %v2903, 65535
    %v2968 = vshra.s32 %v2903, 16
    %v2969 = vcvt.s32.f32 %v2967
    %v2970 = vcvt.s32.f32 %v2968
    %2971 = vmin.xlane.f32.xlu0 %v2970
    %v2972 = vpop.xlane.xlu0 %2971
    %vm2973 = vcmp.eq.f32.partialorder %v2970, %v2972
    %v2974 = vsel %vm2973, %v2969, inf
    %2975 = vmin.xlane.f32.xlu0 %v2974
    %v2976 = vpop.xlane.xlu0 %2975
    %v2977 = vcvt.f32.s32 %v2976
    %v2978 = vcvt.f32.s32 %v2972
    %v2979 = vshll.u32 %v2978, 16
    %v2980 = vadd.s32 %v2979, %v2977
    %v2981 = vand.u32 %v2904, 65535
    %v2982 = vshra.s32 %v2904, 16
    %v2983 = vcvt.s32.f32 %v2981
    %v2984 = vcvt.s32.f32 %v2982
    %2985 = vmin.xlane.f32.xlu0 %v2984
    %v2986 = vpop.xlane.xlu0 %2985
    %vm2987 = vcmp.eq.f32.partialorder %v2984, %v2986
    %v2988 = vsel %vm2987, %v2983, inf
    %2989 = vmin.xlane.f32.xlu0 %v2988
    %v2990 = vpop.xlane.xlu0 %2989
    %v2991 = vcvt.f32.s32 %v2990
    %v2992 = vcvt.f32.s32 %v2986
    %v2993 = vshll.u32 %v2992, 16
    %v2994 = vadd.s32 %v2993, %v2991
    %v2995 = vand.u32 %v2905, 65535
    %v2996 = vshra.s32 %v2905, 16
    %v2997 = vcvt.s32.f32 %v2995
    %v2998 = vcvt.s32.f32 %v2996
    %2999 = vmin.xlane.f32.xlu0 %v2998
    %v3000 = vpop.xlane.xlu0 %2999
    %vm3001 = vcmp.eq.f32.partialorder %v2998, %v3000
    %v3002 = vsel %vm3001, %v2997, inf
    %3003 = vmin.xlane.f32.xlu0 %v3002
    %v3004 = vpop.xlane.xlu0 %3003
    %v3005 = vcvt.f32.s32 %v3004
    %v3006 = vcvt.f32.s32 %v3000
    %v3007 = vshll.u32 %v3006, 16
    %v3008 = vadd.s32 %v3007, %v3005
    %v3009 = vand.u32 %v2906, 65535
    %v3010 = vshra.s32 %v2906, 16
    %v3011 = vcvt.s32.f32 %v3009
    %v3012 = vcvt.s32.f32 %v3010
    %3013 = vmin.xlane.f32.xlu0 %v3012
    %v3014 = vpop.xlane.xlu0 %3013
    %vm3015 = vcmp.eq.f32.partialorder %v3012, %v3014
    %v3016 = vsel %vm3015, %v3011, inf
    %3017 = vmin.xlane.f32.xlu0 %v3016
    %v3018 = vpop.xlane.xlu0 %3017
    %v3019 = vcvt.f32.s32 %v3018
    %v3020 = vcvt.f32.s32 %v3014
    %v3021 = vshll.u32 %v3020, 16
    %v3022 = vadd.s32 %v3021, %v3019
    %v3023 = vand.u32 %v2907, 65535
    %v3024 = vshra.s32 %v2907, 16
    %v3025 = vcvt.s32.f32 %v3023
    %v3026 = vcvt.s32.f32 %v3024
    %3027 = vmin.xlane.f32.xlu0 %v3026
    %v3028 = vpop.xlane.xlu0 %3027
    %vm3029 = vcmp.eq.f32.partialorder %v3026, %v3028
    %v3030 = vsel %vm3029, %v3025, inf
    %3031 = vmin.xlane.f32.xlu0 %v3030
    %v3032 = vpop.xlane.xlu0 %3031
    %v3033 = vcvt.f32.s32 %v3032
    %v3034 = vcvt.f32.s32 %v3028
    %v3035 = vshll.u32 %v3034, 16
    %v3036 = vadd.s32 %v3035, %v3033
    %v3037 = vand.u32 %v2908, 65535
    %v3038 = vshra.s32 %v2908, 16
    %v3039 = vcvt.s32.f32 %v3037
    %v3040 = vcvt.s32.f32 %v3038
    %3041 = vmin.xlane.f32.xlu0 %v3040
    %v3042 = vpop.xlane.xlu0 %3041
    %vm3043 = vcmp.eq.f32.partialorder %v3040, %v3042
    %v3044 = vsel %vm3043, %v3039, inf
    %3045 = vmin.xlane.f32.xlu0 %v3044
    %v3046 = vpop.xlane.xlu0 %3045
    %v3047 = vcvt.f32.s32 %v3046
    %v3048 = vcvt.f32.s32 %v3042
    %v3049 = vshll.u32 %v3048, 16
    %v3050 = vadd.s32 %v3049, %v3047
    %v3051 = vand.u32 %v2909, 65535
    %v3052 = vshra.s32 %v2909, 16
    %v3053 = vcvt.s32.f32 %v3051
    %v3054 = vcvt.s32.f32 %v3052
    %3055 = vmin.xlane.f32.xlu0 %v3054
    %v3056 = vpop.xlane.xlu0 %3055
    %vm3057 = vcmp.eq.f32.partialorder %v3054, %v3056
    %v3058 = vsel %vm3057, %v3053, inf
    %3059 = vmin.xlane.f32.xlu0 %v3058
    %v3060 = vpop.xlane.xlu0 %3059
    %v3061 = vcvt.f32.s32 %v3060
    %v3062 = vcvt.f32.s32 %v3056
    %v3063 = vshll.u32 %v3062, 16
    %v3064 = vadd.s32 %v3063, %v3061
    %v3065 = vand.u32 %v2910, 65535
    %v3066 = vshra.s32 %v2910, 16
    %v3067 = vcvt.s32.f32 %v3065
    %v3068 = vcvt.s32.f32 %v3066
    %3069 = vmin.xlane.f32.xlu0 %v3068
    %v3070 = vpop.xlane.xlu0 %3069
    %vm3071 = vcmp.eq.f32.partialorder %v3068, %v3070
    %v3072 = vsel %vm3071, %v3067, inf
    %3073 = vmin.xlane.f32.xlu0 %v3072
    %v3074 = vpop.xlane.xlu0 %3073
    %v3075 = vcvt.f32.s32 %v3074
    %v3076 = vcvt.f32.s32 %v3070
    %v3077 = vshll.u32 %v3076, 16
    %v3078 = vadd.s32 %v3077, %v3075
    %v3079 = vand.u32 %v2911, 65535
    %v3080 = vshra.s32 %v2911, 16
    %v3081 = vcvt.s32.f32 %v3079
    %v3082 = vcvt.s32.f32 %v3080
    %3083 = vmin.xlane.f32.xlu0 %v3082
    %v3084 = vpop.xlane.xlu0 %3083
    %vm3085 = vcmp.eq.f32.partialorder %v3082, %v3084
    %v3086 = vsel %vm3085, %v3081, inf
    %3087 = vmin.xlane.f32.xlu0 %v3086
    %v3088 = vpop.xlane.xlu0 %3087
    %v3089 = vcvt.f32.s32 %v3088
    %v3090 = vcvt.f32.s32 %v3084
    %v3091 = vshll.u32 %v3090, 16
    %v3092 = vadd.s32 %v3091, %v3089
    %v3093 = vand.u32 %v2912, 65535
    %v3094 = vshra.s32 %v2912, 16
    %v3095 = vcvt.s32.f32 %v3093
    %v3096 = vcvt.s32.f32 %v3094
    %3097 = vmin.xlane.f32.xlu0 %v3096
    %v3098 = vpop.xlane.xlu0 %3097
    %vm3099 = vcmp.eq.f32.partialorder %v3096, %v3098
    %v3100 = vsel %vm3099, %v3095, inf
    %3101 = vmin.xlane.f32.xlu0 %v3100
    %v3102 = vpop.xlane.xlu0 %3101
    %v3103 = vcvt.f32.s32 %v3102
    %v3104 = vcvt.f32.s32 %v3098
    %v3105 = vshll.u32 %v3104, 16
    %v3106 = vadd.s32 %v3105, %v3103
    %v3107 = vand.u32 %v2913, 65535
    %v3108 = vshra.s32 %v2913, 16
    %v3109 = vcvt.s32.f32 %v3107
    %v3110 = vcvt.s32.f32 %v3108
    %3111 = vmin.xlane.f32.xlu0 %v3110
    %v3112 = vpop.xlane.xlu0 %3111
    %vm3113 = vcmp.eq.f32.partialorder %v3110, %v3112
    %v3114 = vsel %vm3113, %v3109, inf
    %3115 = vmin.xlane.f32.xlu0 %v3114
    %v3116 = vpop.xlane.xlu0 %3115
    %v3117 = vcvt.f32.s32 %v3116
    %v3118 = vcvt.f32.s32 %v3112
    %v3119 = vshll.u32 %v3118, 16
    %v3120 = vadd.s32 %v3119, %v3117
    %v3121 = vand.u32 %v2914, 65535
    %v3122 = vshra.s32 %v2914, 16
    %v3123 = vcvt.s32.f32 %v3121
    %v3124 = vcvt.s32.f32 %v3122
    %3125 = vmin.xlane.f32.xlu0 %v3124
    %v3126 = vpop.xlane.xlu0 %3125
    %vm3127 = vcmp.eq.f32.partialorder %v3124, %v3126
    %v3128 = vsel %vm3127, %v3123, inf
    %3129 = vmin.xlane.f32.xlu0 %v3128
    %v3130 = vpop.xlane.xlu0 %3129
    %v3131 = vcvt.f32.s32 %v3130
    %v3132 = vcvt.f32.s32 %v3126
    %v3133 = vshll.u32 %v3132, 16
    %v3134 = vadd.s32 %v3133, %v3131
    %v3135 = vand.u32 %v2915, 65535
    %v3136 = vshra.s32 %v2915, 16
    %v3137 = vcvt.s32.f32 %v3135
    %v3138 = vcvt.s32.f32 %v3136
    %3139 = vmin.xlane.f32.xlu0 %v3138
    %v3140 = vpop.xlane.xlu0 %3139
    %vm3141 = vcmp.eq.f32.partialorder %v3138, %v3140
    %v3142 = vsel %vm3141, %v3137, inf
    %3143 = vmin.xlane.f32.xlu0 %v3142
    %v3144 = vpop.xlane.xlu0 %3143
    %v3145 = vcvt.f32.s32 %v3144
    %v3146 = vcvt.f32.s32 %v3140
    %v3147 = vshll.u32 %v3146, 16
    %v3148 = vadd.s32 %v3147, %v3145
    %v3149 = vand.u32 %v2916, 65535
    %v3150 = vshra.s32 %v2916, 16
    %v3151 = vcvt.s32.f32 %v3149
    %v3152 = vcvt.s32.f32 %v3150
    %3153 = vmin.xlane.f32.xlu0 %v3152
    %v3154 = vpop.xlane.xlu0 %3153
    %vm3155 = vcmp.eq.f32.partialorder %v3152, %v3154
    %v3156 = vsel %vm3155, %v3151, inf
    %3157 = vmin.xlane.f32.xlu0 %v3156
    %v3158 = vpop.xlane.xlu0 %3157
    %v3159 = vcvt.f32.s32 %v3158
    %v3160 = vcvt.f32.s32 %v3154
    %v3161 = vshll.u32 %v3160, 16
    %v3162 = vadd.s32 %v3161, %v3159
    %v3163 = vand.u32 %v2917, 65535
    %v3164 = vshra.s32 %v2917, 16
    %v3165 = vcvt.s32.f32 %v3163
    %v3166 = vcvt.s32.f32 %v3164
    %3167 = vmin.xlane.f32.xlu0 %v3166
    %v3168 = vpop.xlane.xlu0 %3167
    %vm3169 = vcmp.eq.f32.partialorder %v3166, %v3168
    %v3170 = vsel %vm3169, %v3165, inf
    %3171 = vmin.xlane.f32.xlu0 %v3170
    %v3172 = vpop.xlane.xlu0 %3171
    %v3173 = vcvt.f32.s32 %v3172
    %v3174 = vcvt.f32.s32 %v3168
    %v3175 = vshll.u32 %v3174, 16
    %v3176 = vadd.s32 %v3175, %v3173
    %v3177 = vand.u32 %v2918, 65535
    %v3178 = vshra.s32 %v2918, 16
    %v3179 = vcvt.s32.f32 %v3177
    %v3180 = vcvt.s32.f32 %v3178
    %3181 = vmin.xlane.f32.xlu0 %v3180
    %v3182 = vpop.xlane.xlu0 %3181
    %vm3183 = vcmp.eq.f32.partialorder %v3180, %v3182
    %v3184 = vsel %vm3183, %v3179, inf
    %3185 = vmin.xlane.f32.xlu0 %v3184
    %v3186 = vpop.xlane.xlu0 %3185
    %v3187 = vcvt.f32.s32 %v3186
    %v3188 = vcvt.f32.s32 %v3182
    %v3189 = vshll.u32 %v3188, 16
    %v3190 = vadd.s32 %v3189, %v3187
    %v3191 = vand.u32 %v2919, 65535
    %v3192 = vshra.s32 %v2919, 16
    %v3193 = vcvt.s32.f32 %v3191
    %v3194 = vcvt.s32.f32 %v3192
    %3195 = vmin.xlane.f32.xlu0 %v3194
    %v3196 = vpop.xlane.xlu0 %3195
    %vm3197 = vcmp.eq.f32.partialorder %v3194, %v3196
    %v3198 = vsel %vm3197, %v3193, inf
    %3199 = vmin.xlane.f32.xlu0 %v3198
    %v3200 = vpop.xlane.xlu0 %3199
    %v3201 = vcvt.f32.s32 %v3200
    %v3202 = vcvt.f32.s32 %v3196
    %v3203 = vshll.u32 %v3202, 16
    %v3204 = vadd.s32 %v3203, %v3201
    %v3205 = vand.u32 %v2920, 65535
    %v3206 = vshra.s32 %v2920, 16
    %v3207 = vcvt.s32.f32 %v3205
    %v3208 = vcvt.s32.f32 %v3206
    %3209 = vmin.xlane.f32.xlu0 %v3208
    %v3210 = vpop.xlane.xlu0 %3209
    %vm3211 = vcmp.eq.f32.partialorder %v3208, %v3210
    %v3212 = vsel %vm3211, %v3207, inf
    %3213 = vmin.xlane.f32.xlu0 %v3212
    %v3214 = vpop.xlane.xlu0 %3213
    %v3215 = vcvt.f32.s32 %v3214
    %v3216 = vcvt.f32.s32 %v3210
    %v3217 = vshll.u32 %v3216, 16
    %v3218 = vadd.s32 %v3217, %v3215
    %v3219 = vand.u32 %v2921, 65535
    %v3220 = vshra.s32 %v2921, 16
    %v3221 = vcvt.s32.f32 %v3219
    %v3222 = vcvt.s32.f32 %v3220
    %3223 = vmin.xlane.f32.xlu0 %v3222
    %v3224 = vpop.xlane.xlu0 %3223
    %vm3225 = vcmp.eq.f32.partialorder %v3222, %v3224
    %v3226 = vsel %vm3225, %v3221, inf
    %3227 = vmin.xlane.f32.xlu0 %v3226
    %v3228 = vpop.xlane.xlu0 %3227
    %v3229 = vcvt.f32.s32 %v3228
    %v3230 = vcvt.f32.s32 %v3224
    %v3231 = vshll.u32 %v3230, 16
    %v3232 = vadd.s32 %v3231, %v3229
    %v3233 = vand.u32 %v2922, 65535
    %v3234 = vshra.s32 %v2922, 16
    %v3235 = vcvt.s32.f32 %v3233
    %v3236 = vcvt.s32.f32 %v3234
    %3237 = vmin.xlane.f32.xlu0 %v3236
    %v3238 = vpop.xlane.xlu0 %3237
    %vm3239 = vcmp.eq.f32.partialorder %v3236, %v3238
    %v3240 = vsel %vm3239, %v3235, inf
    %3241 = vmin.xlane.f32.xlu0 %v3240
    %v3242 = vpop.xlane.xlu0 %3241
    %v3243 = vcvt.f32.s32 %v3242
    %v3244 = vcvt.f32.s32 %v3238
    %v3245 = vshll.u32 %v3244, 16
    %v3246 = vadd.s32 %v3245, %v3243
    %v3247 = vand.u32 %v2923, 65535
    %v3248 = vshra.s32 %v2923, 16
    %v3249 = vcvt.s32.f32 %v3247
    %v3250 = vcvt.s32.f32 %v3248
    %3251 = vmin.xlane.f32.xlu0 %v3250
    %v3252 = vpop.xlane.xlu0 %3251
    %vm3253 = vcmp.eq.f32.partialorder %v3250, %v3252
    %v3254 = vsel %vm3253, %v3249, inf
    %3255 = vmin.xlane.f32.xlu0 %v3254
    %v3256 = vpop.xlane.xlu0 %3255
    %v3257 = vcvt.f32.s32 %v3256
    %v3258 = vcvt.f32.s32 %v3252
    %v3259 = vshll.u32 %v3258, 16
    %v3260 = vadd.s32 %v3259, %v3257
    %v3261 = vand.u32 %v2924, 65535
    %v3262 = vshra.s32 %v2924, 16
    %v3263 = vcvt.s32.f32 %v3261
    %v3264 = vcvt.s32.f32 %v3262
    %3265 = vmin.xlane.f32.xlu0 %v3264
    %v3266 = vpop.xlane.xlu0 %3265
    %vm3267 = vcmp.eq.f32.partialorder %v3264, %v3266
    %v3268 = vsel %vm3267, %v3263, inf
    %3269 = vmin.xlane.f32.xlu0 %v3268
    %v3270 = vpop.xlane.xlu0 %3269
    %v3271 = vcvt.f32.s32 %v3270
    %v3272 = vcvt.f32.s32 %v3266
    %v3273 = vshll.u32 %v3272, 16
    %v3274 = vadd.s32 %v3273, %v3271
    %v3275 = vand.u32 %v2925, 65535
    %v3276 = vshra.s32 %v2925, 16
    %v3277 = vcvt.s32.f32 %v3275
    %v3278 = vcvt.s32.f32 %v3276
    %3279 = vmin.xlane.f32.xlu0 %v3278
    %v3280 = vpop.xlane.xlu0 %3279
    %vm3281 = vcmp.eq.f32.partialorder %v3278, %v3280
    %v3282 = vsel %vm3281, %v3277, inf
    %3283 = vmin.xlane.f32.xlu0 %v3282
    %v3284 = vpop.xlane.xlu0 %3283
    %v3285 = vcvt.f32.s32 %v3284
    %v3286 = vcvt.f32.s32 %v3280
    %v3287 = vshll.u32 %v3286, 16
    %v3288 = vadd.s32 %v3287, %v3285
    %v3289 = vand.u32 %v2926, 65535
    %v3290 = vshra.s32 %v2926, 16
    %v3291 = vcvt.s32.f32 %v3289
    %v3292 = vcvt.s32.f32 %v3290
    %3293 = vmin.xlane.f32.xlu0 %v3292
    %v3294 = vpop.xlane.xlu0 %3293
    %vm3295 = vcmp.eq.f32.partialorder %v3292, %v3294
    %v3296 = vsel %vm3295, %v3291, inf
    %3297 = vmin.xlane.f32.xlu0 %v3296
    %v3298 = vpop.xlane.xlu0 %3297
    %v3299 = vcvt.f32.s32 %v3298
    %v3300 = vcvt.f32.s32 %v3294
    %v3301 = vshll.u32 %v3300, 16
    %v3302 = vadd.s32 %v3301, %v3299
    %v3303 = vand.u32 %v2927, 65535
    %v3304 = vshra.s32 %v2927, 16
    %v3305 = vcvt.s32.f32 %v3303
    %v3306 = vcvt.s32.f32 %v3304
    %3307 = vmin.xlane.f32.xlu0 %v3306
    %v3308 = vpop.xlane.xlu0 %3307
    %vm3309 = vcmp.eq.f32.partialorder %v3306, %v3308
    %v3310 = vsel %vm3309, %v3305, inf
    %3311 = vmin.xlane.f32.xlu0 %v3310
    %v3312 = vpop.xlane.xlu0 %3311
    %v3313 = vcvt.f32.s32 %v3312
    %v3314 = vcvt.f32.s32 %v3308
    %v3315 = vshll.u32 %v3314, 16
    %v3316 = vadd.s32 %v3315, %v3313
    %v3317 = vand.u32 %v2928, 65535
    %v3318 = vshra.s32 %v2928, 16
    %v3319 = vcvt.s32.f32 %v3317
    %v3320 = vcvt.s32.f32 %v3318
    %3321 = vmin.xlane.f32.xlu0 %v3320
    %v3322 = vpop.xlane.xlu0 %3321
    %vm3323 = vcmp.eq.f32.partialorder %v3320, %v3322
    %v3324 = vsel %vm3323, %v3319, inf
    %3325 = vmin.xlane.f32.xlu0 %v3324
    %v3326 = vpop.xlane.xlu0 %3325
    %v3327 = vcvt.f32.s32 %v3326
    %v3328 = vcvt.f32.s32 %v3322
    %v3329 = vshll.u32 %v3328, 16
    %v3330 = vadd.s32 %v3329, %v3327
    %v3331 = vand.u32 %v2929, 65535
    %v3332 = vshra.s32 %v2929, 16
    %v3333 = vcvt.s32.f32 %v3331
    %v3334 = vcvt.s32.f32 %v3332
    %3335 = vmin.xlane.f32.xlu0 %v3334
    %v3336 = vpop.xlane.xlu0 %3335
    %vm3337 = vcmp.eq.f32.partialorder %v3334, %v3336
    %v3338 = vsel %vm3337, %v3333, inf
    %3339 = vmin.xlane.f32.xlu0 %v3338
    %v3340 = vpop.xlane.xlu0 %3339
    %v3341 = vcvt.f32.s32 %v3340
    %v3342 = vcvt.f32.s32 %v3336
    %v3343 = vshll.u32 %v3342, 16
    %v3344 = vadd.s32 %v3343, %v3341
    %v3345 = vand.u32 %v2930, 65535
    %v3346 = vshra.s32 %v2930, 16
    %v3347 = vcvt.s32.f32 %v3345
    %v3348 = vcvt.s32.f32 %v3346
    %3349 = vmin.xlane.f32.xlu0 %v3348
    %v3350 = vpop.xlane.xlu0 %3349
    %vm3351 = vcmp.eq.f32.partialorder %v3348, %v3350
    %v3352 = vsel %vm3351, %v3347, inf
    %3353 = vmin.xlane.f32.xlu0 %v3352
    %v3354 = vpop.xlane.xlu0 %3353
    %v3355 = vcvt.f32.s32 %v3354
    %v3356 = vcvt.f32.s32 %v3350
    %v3357 = vshll.u32 %v3356, 16
    %v3358 = vadd.s32 %v3357, %v3355
    %v3359 = vand.u32 %v2931, 65535
    %v3360 = vshra.s32 %v2931, 16
    %v3361 = vcvt.s32.f32 %v3359
    %v3362 = vcvt.s32.f32 %v3360
    %3363 = vmin.xlane.f32.xlu0 %v3362
    %v3364 = vpop.xlane.xlu0 %3363
    %vm3365 = vcmp.eq.f32.partialorder %v3362, %v3364
    %v3366 = vsel %vm3365, %v3361, inf
    %3367 = vmin.xlane.f32.xlu0 %v3366
    %v3368 = vpop.xlane.xlu0 %3367
    %v3369 = vcvt.f32.s32 %v3368
    %v3370 = vcvt.f32.s32 %v3364
    %v3371 = vshll.u32 %v3370, 16
    %v3372 = vadd.s32 %v3371, %v3369
    %v3373 = vand.u32 %v2932, 65535
    %v3374 = vshra.s32 %v2932, 16
    %v3375 = vcvt.s32.f32 %v3373
    %v3376 = vcvt.s32.f32 %v3374
    %3377 = vmin.xlane.f32.xlu0 %v3376
    %v3378 = vpop.xlane.xlu0 %3377
    %vm3379 = vcmp.eq.f32.partialorder %v3376, %v3378
    %v3380 = vsel %vm3379, %v3375, inf
    %3381 = vmin.xlane.f32.xlu0 %v3380
    %v3382 = vpop.xlane.xlu0 %3381
    %v3383 = vcvt.f32.s32 %v3382
    %v3384 = vcvt.f32.s32 %v3378
    %v3385 = vshll.u32 %v3384, 16
    %v3386 = vadd.s32 %v3385, %v3383
    %v3387 = vand.u32 %v2933, 65535
    %v3388 = vshra.s32 %v2933, 16
    %v3389 = vcvt.s32.f32 %v3387
    %v3390 = vcvt.s32.f32 %v3388
    %3391 = vmin.xlane.f32.xlu0 %v3390
    %v3392 = vpop.xlane.xlu0 %3391
    %vm3393 = vcmp.eq.f32.partialorder %v3390, %v3392
    %v3394 = vsel %vm3393, %v3389, inf
    %3395 = vmin.xlane.f32.xlu0 %v3394
    %v3396 = vpop.xlane.xlu0 %3395
    %v3397 = vcvt.f32.s32 %v3396
    %v3398 = vcvt.f32.s32 %v3392
    %v3399 = vshll.u32 %v3398, 16
    %v3400 = vadd.s32 %v3399, %v3397
    %v3401 = vand.u32 %v2934, 65535
    %v3402 = vshra.s32 %v2934, 16
    %v3403 = vcvt.s32.f32 %v3401
    %v3404 = vcvt.s32.f32 %v3402
    %3405 = vmin.xlane.f32.xlu0 %v3404
    %v3406 = vpop.xlane.xlu0 %3405
    %vm3407 = vcmp.eq.f32.partialorder %v3404, %v3406
    %v3408 = vsel %vm3407, %v3403, inf
    %3409 = vmin.xlane.f32.xlu0 %v3408
    %v3410 = vpop.xlane.xlu0 %3409
    %v3411 = vcvt.f32.s32 %v3410
    %v3412 = vcvt.f32.s32 %v3406
    %v3413 = vshll.u32 %v3412, 16
    %v3414 = vadd.s32 %v3413, %v3411
    %v3415 = vand.u32 %v2935, 65535
    %v3416 = vshra.s32 %v2935, 16
    %v3417 = vcvt.s32.f32 %v3415
    %v3418 = vcvt.s32.f32 %v3416
    %3419 = vmin.xlane.f32.xlu0 %v3418
    %v3420 = vpop.xlane.xlu0 %3419
    %vm3421 = vcmp.eq.f32.partialorder %v3418, %v3420
    %v3422 = vsel %vm3421, %v3417, inf
    %3423 = vmin.xlane.f32.xlu0 %v3422
    %v3424 = vpop.xlane.xlu0 %3423
    %v3425 = vcvt.f32.s32 %v3424
    %v3426 = vcvt.f32.s32 %v3420
    %v3427 = vshll.u32 %v3426, 16
    %v3428 = vadd.s32 %v3427, %v3425
    %v3429 = vand.u32 %v2936, 65535
    %v3430 = vshra.s32 %v2936, 16
    %v3431 = vcvt.s32.f32 %v3429
    %v3432 = vcvt.s32.f32 %v3430
    %3433 = vmin.xlane.f32.xlu0 %v3432
    %v3434 = vpop.xlane.xlu0 %3433
    %vm3435 = vcmp.eq.f32.partialorder %v3432, %v3434
    %v3436 = vsel %vm3435, %v3431, inf
    %3437 = vmin.xlane.f32.xlu0 %v3436
    %v3438 = vpop.xlane.xlu0 %3437
    %v3439 = vcvt.f32.s32 %v3438
    %v3440 = vcvt.f32.s32 %v3434
    %v3441 = vshll.u32 %v3440, 16
    %v3442 = vadd.s32 %v3441, %v3439
    %v3443 = vand.u32 %v2937, 65535
    %v3444 = vshra.s32 %v2937, 16
    %v3445 = vcvt.s32.f32 %v3443
    %v3446 = vcvt.s32.f32 %v3444
    %3447 = vmin.xlane.f32.xlu0 %v3446
    %v3448 = vpop.xlane.xlu0 %3447
    %vm3449 = vcmp.eq.f32.partialorder %v3446, %v3448
    %v3450 = vsel %vm3449, %v3445, inf
    %3451 = vmin.xlane.f32.xlu0 %v3450
    %v3452 = vpop.xlane.xlu0 %3451
    %v3453 = vcvt.f32.s32 %v3452
    %v3454 = vcvt.f32.s32 %v3448
    %v3455 = vshll.u32 %v3454, 16
    %v3456 = vadd.s32 %v3455, %v3453
    %v3457 = vand.u32 %v2938, 65535
    %v3458 = vshra.s32 %v2938, 16
    %v3459 = vcvt.s32.f32 %v3457
    %v3460 = vcvt.s32.f32 %v3458
    %3461 = vmin.xlane.f32.xlu0 %v3460
    %v3462 = vpop.xlane.xlu0 %3461
    %vm3463 = vcmp.eq.f32.partialorder %v3460, %v3462
    %v3464 = vsel %vm3463, %v3459, inf
    %3465 = vmin.xlane.f32.xlu0 %v3464
    %v3466 = vpop.xlane.xlu0 %3465
    %v3467 = vcvt.f32.s32 %v3466
    %v3468 = vcvt.f32.s32 %v3462
    %v3469 = vshll.u32 %v3468, 16
    %v3470 = vadd.s32 %v3469, %v3467
    %v3471 = vand.u32 %v2939, 65535
    %v3472 = vshra.s32 %v2939, 16
    %v3473 = vcvt.s32.f32 %v3471
    %v3474 = vcvt.s32.f32 %v3472
    %3475 = vmin.xlane.f32.xlu0 %v3474
    %v3476 = vpop.xlane.xlu0 %3475
    %vm3477 = vcmp.eq.f32.partialorder %v3474, %v3476
    %v3478 = vsel %vm3477, %v3473, inf
    %3479 = vmin.xlane.f32.xlu0 %v3478
    %v3480 = vpop.xlane.xlu0 %3479
    %v3481 = vcvt.f32.s32 %v3480
    %v3482 = vcvt.f32.s32 %v3476
    %v3483 = vshll.u32 %v3482, 16
    %v3484 = vadd.s32 %v3483, %v3481
    %v3485 = vand.u32 %v2940, 65535
    %v3486 = vshra.s32 %v2940, 16
    %v3487 = vcvt.s32.f32 %v3485
    %v3488 = vcvt.s32.f32 %v3486
    %3489 = vmin.xlane.f32.xlu0 %v3488
    %v3490 = vpop.xlane.xlu0 %3489
    %vm3491 = vcmp.eq.f32.partialorder %v3488, %v3490
    %v3492 = vsel %vm3491, %v3487, inf
    %3493 = vmin.xlane.f32.xlu0 %v3492
    %v3494 = vpop.xlane.xlu0 %3493
    %v3495 = vcvt.f32.s32 %v3494
    %v3496 = vcvt.f32.s32 %v3490
    %v3497 = vshll.u32 %v3496, 16
    %v3498 = vadd.s32 %v3497, %v3495
    %v3499 = vand.u32 %v2941, 65535
    %v3500 = vshra.s32 %v2941, 16
    %v3501 = vcvt.s32.f32 %v3499
    %v3502 = vcvt.s32.f32 %v3500
    %3503 = vmin.xlane.f32.xlu0 %v3502
    %v3504 = vpop.xlane.xlu0 %3503
    %vm3505 = vcmp.eq.f32.partialorder %v3502, %v3504
    %v3506 = vsel %vm3505, %v3501, inf
    %3507 = vmin.xlane.f32.xlu0 %v3506
    %v3508 = vpop.xlane.xlu0 %3507
    %v3509 = vcvt.f32.s32 %v3508
    %v3510 = vcvt.f32.s32 %v3504
    %v3511 = vshll.u32 %v3510, 16
    %v3512 = vadd.s32 %v3511, %v3509
    %v3513 = vand.u32 %v2942, 65535
    %v3514 = vshra.s32 %v2942, 16
    %v3515 = vcvt.s32.f32 %v3513
    %v3516 = vcvt.s32.f32 %v3514
    %3517 = vmin.xlane.f32.xlu0 %v3516
    %v3518 = vpop.xlane.xlu0 %3517
    %vm3519 = vcmp.eq.f32.partialorder %v3516, %v3518
    %v3520 = vsel %vm3519, %v3515, inf
    %3521 = vmin.xlane.f32.xlu0 %v3520
    %v3522 = vpop.xlane.xlu0 %3521
    %v3523 = vcvt.f32.s32 %v3522
    %v3524 = vcvt.f32.s32 %v3518
    %v3525 = vshll.u32 %v3524, 16
    %v3526 = vadd.s32 %v3525, %v3523
    %v3527 = vand.u32 %v2943, 65535
    %v3528 = vshra.s32 %v2943, 16
    %v3529 = vcvt.s32.f32 %v3527
    %v3530 = vcvt.s32.f32 %v3528
    %3531 = vmin.xlane.f32.xlu0 %v3530
    %v3532 = vpop.xlane.xlu0 %3531
    %vm3533 = vcmp.eq.f32.partialorder %v3530, %v3532
    %v3534 = vsel %vm3533, %v3529, inf
    %3535 = vmin.xlane.f32.xlu0 %v3534
    %v3536 = vpop.xlane.xlu0 %3535
    %v3537 = vcvt.f32.s32 %v3536
    %v3538 = vcvt.f32.s32 %v3532
    %v3539 = vshll.u32 %v3538, 16
    %v3540 = vadd.s32 %v3539, %v3537
    %v3541 = vand.u32 %v2944, 65535
    %v3542 = vshra.s32 %v2944, 16
    %v3543 = vcvt.s32.f32 %v3541
    %v3544 = vcvt.s32.f32 %v3542
    %3545 = vmin.xlane.f32.xlu0 %v3544
    %v3546 = vpop.xlane.xlu0 %3545
    %vm3547 = vcmp.eq.f32.partialorder %v3544, %v3546
    %v3548 = vsel %vm3547, %v3543, inf
    %3549 = vmin.xlane.f32.xlu0 %v3548
    %v3550 = vpop.xlane.xlu0 %3549
    %v3551 = vcvt.f32.s32 %v3550
    %v3552 = vcvt.f32.s32 %v3546
    %v3553 = vshll.u32 %v3552, 16
    %v3554 = vadd.s32 %v3553, %v3551
    %v3555 = vand.u32 %v2945, 65535
    %v3556 = vshra.s32 %v2945, 16
    %v3557 = vcvt.s32.f32 %v3555
    %v3558 = vcvt.s32.f32 %v3556
    %3559 = vmin.xlane.f32.xlu0 %v3558
    %v3560 = vpop.xlane.xlu0 %3559
    %vm3561 = vcmp.eq.f32.partialorder %v3558, %v3560
    %v3562 = vsel %vm3561, %v3557, inf
    %3563 = vmin.xlane.f32.xlu0 %v3562
    %v3564 = vpop.xlane.xlu0 %3563
    %v3565 = vcvt.f32.s32 %v3564
    %v3566 = vcvt.f32.s32 %v3560
    %v3567 = vshll.u32 %v3566, 16
    %v3568 = vadd.s32 %v3567, %v3565
    %v3569 = vand.u32 %v2946, 65535
    %v3570 = vshra.s32 %v2946, 16
    %v3571 = vcvt.s32.f32 %v3569
    %v3572 = vcvt.s32.f32 %v3570
    %3573 = vmin.xlane.f32.xlu0 %v3572
    %v3574 = vpop.xlane.xlu0 %3573
    %vm3575 = vcmp.eq.f32.partialorder %v3572, %v3574
    %v3576 = vsel %vm3575, %v3571, inf
    %3577 = vmin.xlane.f32.xlu0 %v3576
    %v3578 = vpop.xlane.xlu0 %3577
    %v3579 = vcvt.f32.s32 %v3578
    %v3580 = vcvt.f32.s32 %v3574
    %v3581 = vshll.u32 %v3580, 16
    %v3582 = vadd.s32 %v3581, %v3579
    %v3583 = vand.u32 %v2947, 65535
    %v3584 = vshra.s32 %v2947, 16
    %v3585 = vcvt.s32.f32 %v3583
    %v3586 = vcvt.s32.f32 %v3584
    %3587 = vmin.xlane.f32.xlu0 %v3586
    %v3588 = vpop.xlane.xlu0 %3587
    %vm3589 = vcmp.eq.f32.partialorder %v3586, %v3588
    %v3590 = vsel %vm3589, %v3585, inf
    %3591 = vmin.xlane.f32.xlu0 %v3590
    %v3592 = vpop.xlane.xlu0 %3591
    %v3593 = vcvt.f32.s32 %v3592
    %v3594 = vcvt.f32.s32 %v3588
    %v3595 = vshll.u32 %v3594, 16
    %v3596 = vadd.s32 %v3595, %v3593
    %v3597 = vand.u32 %v2948, 65535
    %v3598 = vshra.s32 %v2948, 16
    %v3599 = vcvt.s32.f32 %v3597
    %v3600 = vcvt.s32.f32 %v3598
    %3601 = vmin.xlane.f32.xlu0 %v3600
    %v3602 = vpop.xlane.xlu0 %3601
    %vm3603 = vcmp.eq.f32.partialorder %v3600, %v3602
    %v3604 = vsel %vm3603, %v3599, inf
    %3605 = vmin.xlane.f32.xlu0 %v3604
    %v3606 = vpop.xlane.xlu0 %3605
    %v3607 = vcvt.f32.s32 %v3606
    %v3608 = vcvt.f32.s32 %v3602
    %v3609 = vshll.u32 %v3608, 16
    %v3610 = vadd.s32 %v3609, %v3607
    %v3611 = vand.u32 %v2949, 65535
    %v3612 = vshra.s32 %v2949, 16
    %v3613 = vcvt.s32.f32 %v3611
    %v3614 = vcvt.s32.f32 %v3612
    %3615 = vmin.xlane.f32.xlu0 %v3614
    %v3616 = vpop.xlane.xlu0 %3615
    %vm3617 = vcmp.eq.f32.partialorder %v3614, %v3616
    %v3618 = vsel %vm3617, %v3613, inf
    %3619 = vmin.xlane.f32.xlu0 %v3618
    %v3620 = vpop.xlane.xlu0 %3619
    %v3621 = vcvt.f32.s32 %v3620
    %v3622 = vcvt.f32.s32 %v3616
    %v3623 = vshll.u32 %v3622, 16
    %v3624 = vadd.s32 %v3623, %v3621
    %v3625 = vand.u32 %v2950, 65535
    %v3626 = vshra.s32 %v2950, 16
    %v3627 = vcvt.s32.f32 %v3625
    %v3628 = vcvt.s32.f32 %v3626
    %3629 = vmin.xlane.f32.xlu0 %v3628
    %v3630 = vpop.xlane.xlu0 %3629
    %vm3631 = vcmp.eq.f32.partialorder %v3628, %v3630
    %v3632 = vsel %vm3631, %v3627, inf
    %3633 = vmin.xlane.f32.xlu0 %v3632
    %v3634 = vpop.xlane.xlu0 %3633
    %v3635 = vcvt.f32.s32 %v3634
    %v3636 = vcvt.f32.s32 %v3630
    %v3637 = vshll.u32 %v3636, 16
    %v3638 = vadd.s32 %v3637, %v3635
    %v3639 = vand.u32 %v2951, 65535
    %v3640 = vshra.s32 %v2951, 16
    %v3641 = vcvt.s32.f32 %v3639
    %v3642 = vcvt.s32.f32 %v3640
    %3643 = vmin.xlane.f32.xlu0 %v3642
    %v3644 = vpop.xlane.xlu0 %3643
    %vm3645 = vcmp.eq.f32.partialorder %v3642, %v3644
    %v3646 = vsel %vm3645, %v3641, inf
    %3647 = vmin.xlane.f32.xlu0 %v3646
    %v3648 = vpop.xlane.xlu0 %3647
    %v3649 = vcvt.f32.s32 %v3648
    %v3650 = vcvt.f32.s32 %v3644
    %v3651 = vshll.u32 %v3650, 16
    %v3652 = vadd.s32 %v3651, %v3649
    %v3653 = vand.u32 %v2952, 65535
    %v3654 = vshra.s32 %v2952, 16
    %v3655 = vcvt.s32.f32 %v3653
    %v3656 = vcvt.s32.f32 %v3654
    %3657 = vmin.xlane.f32.xlu0 %v3656
    %v3658 = vpop.xlane.xlu0 %3657
    %vm3659 = vcmp.eq.f32.partialorder %v3656, %v3658
    %v3660 = vsel %vm3659, %v3655, inf
    %3661 = vmin.xlane.f32.xlu0 %v3660
    %v3662 = vpop.xlane.xlu0 %3661
    %v3663 = vcvt.f32.s32 %v3662
    %v3664 = vcvt.f32.s32 %v3658
    %v3665 = vshll.u32 %v3664, 16
    %v3666 = vadd.s32 %v3665, %v3663
    %v3667 = vand.u32 %v2953, 65535
    %v3668 = vshra.s32 %v2953, 16
    %v3669 = vcvt.s32.f32 %v3667
    %v3670 = vcvt.s32.f32 %v3668
    %3671 = vmin.xlane.f32.xlu0 %v3670
    %v3672 = vpop.xlane.xlu0 %3671
    %vm3673 = vcmp.eq.f32.partialorder %v3670, %v3672
    %v3674 = vsel %vm3673, %v3669, inf
    %3675 = vmin.xlane.f32.xlu0 %v3674
    %v3676 = vpop.xlane.xlu0 %3675
    %v3677 = vcvt.f32.s32 %v3676
    %v3678 = vcvt.f32.s32 %v3672
    %v3679 = vshll.u32 %v3678, 16
    %v3680 = vadd.s32 %v3679, %v3677
    %v3681 = vand.u32 %v2954, 65535
    %v3682 = vshra.s32 %v2954, 16
    %v3683 = vcvt.s32.f32 %v3681
    %v3684 = vcvt.s32.f32 %v3682
    %3685 = vmin.xlane.f32.xlu0 %v3684
    %v3686 = vpop.xlane.xlu0 %3685
    %vm3687 = vcmp.eq.f32.partialorder %v3684, %v3686
    %v3688 = vsel %vm3687, %v3683, inf
    %3689 = vmin.xlane.f32.xlu0 %v3688
    %v3690 = vpop.xlane.xlu0 %3689
    %v3691 = vcvt.f32.s32 %v3690
    %v3692 = vcvt.f32.s32 %v3686
    %v3693 = vshll.u32 %v3692, 16
    %v3694 = vadd.s32 %v3693, %v3691
    %v3695 = vand.u32 %v2955, 65535
    %v3696 = vshra.s32 %v2955, 16
    %v3697 = vcvt.s32.f32 %v3695
    %v3698 = vcvt.s32.f32 %v3696
    %3699 = vmin.xlane.f32.xlu0 %v3698
    %v3700 = vpop.xlane.xlu0 %3699
    %vm3701 = vcmp.eq.f32.partialorder %v3698, %v3700
    %v3702 = vsel %vm3701, %v3697, inf
    %3703 = vmin.xlane.f32.xlu0 %v3702
    %v3704 = vpop.xlane.xlu0 %3703
    %v3705 = vcvt.f32.s32 %v3704
    %v3706 = vcvt.f32.s32 %v3700
    %v3707 = vshll.u32 %v3706, 16
    %v3708 = vadd.s32 %v3707, %v3705
    %v3709 = vand.u32 %v2956, 65535
    %v3710 = vshra.s32 %v2956, 16
    %v3711 = vcvt.s32.f32 %v3709
    %v3712 = vcvt.s32.f32 %v3710
    %3713 = vmin.xlane.f32.xlu0 %v3712
    %v3714 = vpop.xlane.xlu0 %3713
    %vm3715 = vcmp.eq.f32.partialorder %v3712, %v3714
    %v3716 = vsel %vm3715, %v3711, inf
    %3717 = vmin.xlane.f32.xlu0 %v3716
    %v3718 = vpop.xlane.xlu0 %3717
    %v3719 = vcvt.f32.s32 %v3718
    %v3720 = vcvt.f32.s32 %v3714
    %v3721 = vshll.u32 %v3720, 16
    %v3722 = vadd.s32 %v3721, %v3719
    %v3723 = vand.u32 %v2957, 65535
    %v3724 = vshra.s32 %v2957, 16
    %v3725 = vcvt.s32.f32 %v3723
    %v3726 = vcvt.s32.f32 %v3724
    %3727 = vmin.xlane.f32.xlu0 %v3726
    %v3728 = vpop.xlane.xlu0 %3727
    %vm3729 = vcmp.eq.f32.partialorder %v3726, %v3728
    %v3730 = vsel %vm3729, %v3725, inf
    %3731 = vmin.xlane.f32.xlu0 %v3730
    %v3732 = vpop.xlane.xlu0 %3731
    %v3733 = vcvt.f32.s32 %v3732
    %v3734 = vcvt.f32.s32 %v3728
    %v3735 = vshll.u32 %v3734, 16
    %v3736 = vadd.s32 %v3735, %v3733
    %v3737 = vand.u32 %v2958, 65535
    %v3738 = vshra.s32 %v2958, 16
    %v3739 = vcvt.s32.f32 %v3737
    %v3740 = vcvt.s32.f32 %v3738
    %3741 = vmin.xlane.f32.xlu0 %v3740
    %v3742 = vpop.xlane.xlu0 %3741
    %vm3743 = vcmp.eq.f32.partialorder %v3740, %v3742
    %v3744 = vsel %vm3743, %v3739, inf
    %3745 = vmin.xlane.f32.xlu0 %v3744
    %v3746 = vpop.xlane.xlu0 %3745
    %v3747 = vcvt.f32.s32 %v3746
    %v3748 = vcvt.f32.s32 %v3742
    %v3749 = vshll.u32 %v3748, 16
    %v3750 = vadd.s32 %v3749, %v3747
    %v3751 = vand.u32 %v2959, 65535
    %v3752 = vshra.s32 %v2959, 16
    %v3753 = vcvt.s32.f32 %v3751
    %v3754 = vcvt.s32.f32 %v3752
    %3755 = vmin.xlane.f32.xlu0 %v3754
    %v3756 = vpop.xlane.xlu0 %3755
    %vm3757 = vcmp.eq.f32.partialorder %v3754, %v3756
    %v3758 = vsel %vm3757, %v3753, inf
    %3759 = vmin.xlane.f32.xlu0 %v3758
    %v3760 = vpop.xlane.xlu0 %3759
    %v3761 = vcvt.f32.s32 %v3760
    %v3762 = vcvt.f32.s32 %v3756
    %v3763 = vshll.u32 %v3762, 16
    %v3764 = vadd.s32 %v3763, %v3761
    %v3765 = vand.u32 %v2960, 65535
    %v3766 = vshra.s32 %v2960, 16
    %v3767 = vcvt.s32.f32 %v3765
    %v3768 = vcvt.s32.f32 %v3766
    %3769 = vmin.xlane.f32.xlu0 %v3768
    %v3770 = vpop.xlane.xlu0 %3769
    %vm3771 = vcmp.eq.f32.partialorder %v3768, %v3770
    %v3772 = vsel %vm3771, %v3767, inf
    %3773 = vmin.xlane.f32.xlu0 %v3772
    %v3774 = vpop.xlane.xlu0 %3773
    %v3775 = vcvt.f32.s32 %v3774
    %v3776 = vcvt.f32.s32 %v3770
    %v3777 = vshll.u32 %v3776, 16
    %v3778 = vadd.s32 %v3777, %v3775
    %v3779 = vand.u32 %v2961, 65535
    %v3780 = vshra.s32 %v2961, 16
    %v3781 = vcvt.s32.f32 %v3779
    %v3782 = vcvt.s32.f32 %v3780
    %3783 = vmin.xlane.f32.xlu0 %v3782
    %v3784 = vpop.xlane.xlu0 %3783
    %vm3785 = vcmp.eq.f32.partialorder %v3782, %v3784
    %v3786 = vsel %vm3785, %v3781, inf
    %3787 = vmin.xlane.f32.xlu0 %v3786
    %v3788 = vpop.xlane.xlu0 %3787
    %v3789 = vcvt.f32.s32 %v3788
    %v3790 = vcvt.f32.s32 %v3784
    %v3791 = vshll.u32 %v3790, 16
    %v3792 = vadd.s32 %v3791, %v3789
    %v3793 = vand.u32 %v2962, 65535
    %v3794 = vshra.s32 %v2962, 16
    %v3795 = vcvt.s32.f32 %v3793
    %v3796 = vcvt.s32.f32 %v3794
    %3797 = vmin.xlane.f32.xlu0 %v3796
    %v3798 = vpop.xlane.xlu0 %3797
    %vm3799 = vcmp.eq.f32.partialorder %v3796, %v3798
    %v3800 = vsel %vm3799, %v3795, inf
    %3801 = vmin.xlane.f32.xlu0 %v3800
    %v3802 = vpop.xlane.xlu0 %3801
    %v3803 = vcvt.f32.s32 %v3802
    %v3804 = vcvt.f32.s32 %v3798
    %v3805 = vshll.u32 %v3804, 16
    %v3806 = vadd.s32 %v3805, %v3803
    %v3807 = vand.u32 %v2963, 65535
    %v3808 = vshra.s32 %v2963, 16
    %v3809 = vcvt.s32.f32 %v3807
    %v3810 = vcvt.s32.f32 %v3808
    %3811 = vmin.xlane.f32.xlu0 %v3810
    %v3812 = vpop.xlane.xlu0 %3811
    %vm3813 = vcmp.eq.f32.partialorder %v3810, %v3812
    %v3814 = vsel %vm3813, %v3809, inf
    %3815 = vmin.xlane.f32.xlu0 %v3814
    %v3816 = vpop.xlane.xlu0 %3815
    %v3817 = vcvt.f32.s32 %v3816
    %v3818 = vcvt.f32.s32 %v3812
    %v3819 = vshll.u32 %v3818, 16
    %v3820 = vadd.s32 %v3819, %v3817
    %v3821 = vand.u32 %v2964, 65535
    %v3822 = vshra.s32 %v2964, 16
    %v3823 = vcvt.s32.f32 %v3821
    %v3824 = vcvt.s32.f32 %v3822
    %3825 = vmin.xlane.f32.xlu0 %v3824
    %v3826 = vpop.xlane.xlu0 %3825
    %vm3827 = vcmp.eq.f32.partialorder %v3824, %v3826
    %v3828 = vsel %vm3827, %v3823, inf
    %3829 = vmin.xlane.f32.xlu0 %v3828
    %v3830 = vpop.xlane.xlu0 %3829
    %v3831 = vcvt.f32.s32 %v3830
    %v3832 = vcvt.f32.s32 %v3826
    %v3833 = vshll.u32 %v3832, 16
    %v3834 = vadd.s32 %v3833, %v3831
    %v3835 = vand.u32 %v2965, 65535
    %v3836 = vshra.s32 %v2965, 16
    %v3837 = vcvt.s32.f32 %v3835
    %v3838 = vcvt.s32.f32 %v3836
    %3839 = vmin.xlane.f32.xlu0 %v3838
    %v3840 = vpop.xlane.xlu0 %3839
    %vm3841 = vcmp.eq.f32.partialorder %v3838, %v3840
    %v3842 = vsel %vm3841, %v3837, inf
    %3843 = vmin.xlane.f32.xlu0 %v3842
    %v3844 = vpop.xlane.xlu0 %3843
    %v3845 = vcvt.f32.s32 %v3844
    %v3846 = vcvt.f32.s32 %v3840
    %v3847 = vshll.u32 %v3846, 16
    %v3848 = vadd.s32 %v3847, %v3845
    %v3849 = vand.u32 %v2966, 65535
    %v3850 = vshra.s32 %v2966, 16
    %v3851 = vcvt.s32.f32 %v3849
    %v3852 = vcvt.s32.f32 %v3850
    %3853 = vmin.xlane.f32.xlu0 %v3852
    %v3854 = vpop.xlane.xlu0 %3853
    %vm3855 = vcmp.eq.f32.partialorder %v3852, %v3854
    %v3856 = vsel %vm3855, %v3851, inf
    %3857 = vmin.xlane.f32.xlu0 %v3856
    %v3858 = vpop.xlane.xlu0 %3857
    %v3859 = vcvt.f32.s32 %v3858
    %v3860 = vcvt.f32.s32 %v3854
    %v3861 = vshll.u32 %v3860, 16
    %v3862 = vadd.s32 %v3861, %v3859
    %vm3863 = vcmp.lt.s32.totalorder %v2980, 127
    %v3864 = vsel %vm3863, %v2980, 127
    %vm3865 = vcmp.lt.s32.totalorder %v2994, 127
    %v3866 = vsel %vm3865, %v2994, 127
    %vm3867 = vcmp.lt.s32.totalorder %v3008, 127
    %v3868 = vsel %vm3867, %v3008, 127
    %vm3869 = vcmp.lt.s32.totalorder %v3022, 127
    %v3870 = vsel %vm3869, %v3022, 127
    %vm3871 = vcmp.lt.s32.totalorder %v3036, 127
    %v3872 = vsel %vm3871, %v3036, 127
    %vm3873 = vcmp.lt.s32.totalorder %v3050, 127
    %v3874 = vsel %vm3873, %v3050, 127
    %vm3875 = vcmp.lt.s32.totalorder %v3064, 127
    %v3876 = vsel %vm3875, %v3064, 127
    %vm3877 = vcmp.lt.s32.totalorder %v3078, 127
    %v3878 = vsel %vm3877, %v3078, 127
    %vm3879 = vcmp.lt.s32.totalorder %v3092, 127
    %v3880 = vsel %vm3879, %v3092, 127
    %vm3881 = vcmp.lt.s32.totalorder %v3106, 127
    %v3882 = vsel %vm3881, %v3106, 127
    %vm3883 = vcmp.lt.s32.totalorder %v3120, 127
    %v3884 = vsel %vm3883, %v3120, 127
    %vm3885 = vcmp.lt.s32.totalorder %v3134, 127
    %v3886 = vsel %vm3885, %v3134, 127
    %vm3887 = vcmp.lt.s32.totalorder %v3148, 127
    %v3888 = vsel %vm3887, %v3148, 127
    %vm3889 = vcmp.lt.s32.totalorder %v3162, 127
    %v3890 = vsel %vm3889, %v3162, 127
    %vm3891 = vcmp.lt.s32.totalorder %v3176, 127
    %v3892 = vsel %vm3891, %v3176, 127
    %vm3893 = vcmp.lt.s32.totalorder %v3190, 127
    %v3894 = vsel %vm3893, %v3190, 127
    %vm3895 = vcmp.lt.s32.totalorder %v3204, 127
    %v3896 = vsel %vm3895, %v3204, 127
    %vm3897 = vcmp.lt.s32.totalorder %v3218, 127
    %v3898 = vsel %vm3897, %v3218, 127
    %vm3899 = vcmp.lt.s32.totalorder %v3232, 127
    %v3900 = vsel %vm3899, %v3232, 127
    %vm3901 = vcmp.lt.s32.totalorder %v3246, 127
    %v3902 = vsel %vm3901, %v3246, 127
    %vm3903 = vcmp.lt.s32.totalorder %v3260, 127
    %v3904 = vsel %vm3903, %v3260, 127
    %vm3905 = vcmp.lt.s32.totalorder %v3274, 127
    %v3906 = vsel %vm3905, %v3274, 127
    %vm3907 = vcmp.lt.s32.totalorder %v3288, 127
    %v3908 = vsel %vm3907, %v3288, 127
    %vm3909 = vcmp.lt.s32.totalorder %v3302, 127
    %v3910 = vsel %vm3909, %v3302, 127
    %vm3911 = vcmp.lt.s32.totalorder %v3316, 127
    %v3912 = vsel %vm3911, %v3316, 127
    %vm3913 = vcmp.lt.s32.totalorder %v3330, 127
    %v3914 = vsel %vm3913, %v3330, 127
    %vm3915 = vcmp.lt.s32.totalorder %v3344, 127
    %v3916 = vsel %vm3915, %v3344, 127
    %vm3917 = vcmp.lt.s32.totalorder %v3358, 127
    %v3918 = vsel %vm3917, %v3358, 127
    %vm3919 = vcmp.lt.s32.totalorder %v3372, 127
    %v3920 = vsel %vm3919, %v3372, 127
    %vm3921 = vcmp.lt.s32.totalorder %v3386, 127
    %v3922 = vsel %vm3921, %v3386, 127
    %vm3923 = vcmp.lt.s32.totalorder %v3400, 127
    %v3924 = vsel %vm3923, %v3400, 127
    %vm3925 = vcmp.lt.s32.totalorder %v3414, 127
    %v3926 = vsel %vm3925, %v3414, 127
    %vm3927 = vcmp.lt.s32.totalorder %v3428, 127
    %v3928 = vsel %vm3927, %v3428, 127
    %vm3929 = vcmp.lt.s32.totalorder %v3442, 127
    %v3930 = vsel %vm3929, %v3442, 127
    %vm3931 = vcmp.lt.s32.totalorder %v3456, 127
    %v3932 = vsel %vm3931, %v3456, 127
    %vm3933 = vcmp.lt.s32.totalorder %v3470, 127
    %v3934 = vsel %vm3933, %v3470, 127
    %vm3935 = vcmp.lt.s32.totalorder %v3484, 127
    %v3936 = vsel %vm3935, %v3484, 127
    %vm3937 = vcmp.lt.s32.totalorder %v3498, 127
    %v3938 = vsel %vm3937, %v3498, 127
    %vm3939 = vcmp.lt.s32.totalorder %v3512, 127
    %v3940 = vsel %vm3939, %v3512, 127
    %vm3941 = vcmp.lt.s32.totalorder %v3526, 127
    %v3942 = vsel %vm3941, %v3526, 127
    %vm3943 = vcmp.lt.s32.totalorder %v3540, 127
    %v3944 = vsel %vm3943, %v3540, 127
    %vm3945 = vcmp.lt.s32.totalorder %v3554, 127
    %v3946 = vsel %vm3945, %v3554, 127
    %vm3947 = vcmp.lt.s32.totalorder %v3568, 127
    %v3948 = vsel %vm3947, %v3568, 127
    %vm3949 = vcmp.lt.s32.totalorder %v3582, 127
    %v3950 = vsel %vm3949, %v3582, 127
    %vm3951 = vcmp.lt.s32.totalorder %v3596, 127
    %v3952 = vsel %vm3951, %v3596, 127
    %vm3953 = vcmp.lt.s32.totalorder %v3610, 127
    %v3954 = vsel %vm3953, %v3610, 127
    %vm3955 = vcmp.lt.s32.totalorder %v3624, 127
    %v3956 = vsel %vm3955, %v3624, 127
    %vm3957 = vcmp.lt.s32.totalorder %v3638, 127
    %v3958 = vsel %vm3957, %v3638, 127
    %vm3959 = vcmp.lt.s32.totalorder %v3652, 127
    %v3960 = vsel %vm3959, %v3652, 127
    %vm3961 = vcmp.lt.s32.totalorder %v3666, 127
    %v3962 = vsel %vm3961, %v3666, 127
    %vm3963 = vcmp.lt.s32.totalorder %v3680, 127
    %v3964 = vsel %vm3963, %v3680, 127
    %vm3965 = vcmp.lt.s32.totalorder %v3694, 127
    %v3966 = vsel %vm3965, %v3694, 127
    %vm3967 = vcmp.lt.s32.totalorder %v3708, 127
    %v3968 = vsel %vm3967, %v3708, 127
    %vm3969 = vcmp.lt.s32.totalorder %v3722, 127
    %v3970 = vsel %vm3969, %v3722, 127
    %vm3971 = vcmp.lt.s32.totalorder %v3736, 127
    %v3972 = vsel %vm3971, %v3736, 127
    %vm3973 = vcmp.lt.s32.totalorder %v3750, 127
    %v3974 = vsel %vm3973, %v3750, 127
    %vm3975 = vcmp.lt.s32.totalorder %v3764, 127
    %v3976 = vsel %vm3975, %v3764, 127
    %vm3977 = vcmp.lt.s32.totalorder %v3778, 127
    %v3978 = vsel %vm3977, %v3778, 127
    %vm3979 = vcmp.lt.s32.totalorder %v3792, 127
    %v3980 = vsel %vm3979, %v3792, 127
    %vm3981 = vcmp.lt.s32.totalorder %v3806, 127
    %v3982 = vsel %vm3981, %v3806, 127
    %vm3983 = vcmp.lt.s32.totalorder %v3820, 127
    %v3984 = vsel %vm3983, %v3820, 127
    %vm3985 = vcmp.lt.s32.totalorder %v3834, 127
    %v3986 = vsel %vm3985, %v3834, 127
    %vm3987 = vcmp.lt.s32.totalorder %v3848, 127
    %v3988 = vsel %vm3987, %v3848, 127
    %vm3989 = vcmp.lt.s32.totalorder %v3862, 127
    %v3990 = vsel %vm3989, %v3862, 127
    %vm3991 = vcmp.eq.s32.totalorder %v2838, %v3864
    %vm3992 = vcmp.eq.s32.totalorder %v2838, %v3866
    %vm3993 = vcmp.eq.s32.totalorder %v2838, %v3868
    %vm3994 = vcmp.eq.s32.totalorder %v2838, %v3870
    %vm3995 = vcmp.eq.s32.totalorder %v2838, %v3872
    %vm3996 = vcmp.eq.s32.totalorder %v2838, %v3874
    %vm3997 = vcmp.eq.s32.totalorder %v2838, %v3876
    %vm3998 = vcmp.eq.s32.totalorder %v2838, %v3878
    %vm3999 = vcmp.eq.s32.totalorder %v2838, %v3880
    %vm4000 = vcmp.eq.s32.totalorder %v2838, %v3882
    %vm4001 = vcmp.eq.s32.totalorder %v2838, %v3884
    %vm4002 = vcmp.eq.s32.totalorder %v2838, %v3886
    %vm4003 = vcmp.eq.s32.totalorder %v2838, %v3888
    %vm4004 = vcmp.eq.s32.totalorder %v2838, %v3890
    %vm4005 = vcmp.eq.s32.totalorder %v2838, %v3892
    %vm4006 = vcmp.eq.s32.totalorder %v2838, %v3894
    %vm4007 = vcmp.eq.s32.totalorder %v2838, %v3896
    %vm4008 = vcmp.eq.s32.totalorder %v2838, %v3898
    %vm4009 = vcmp.eq.s32.totalorder %v2838, %v3900
    %vm4010 = vcmp.eq.s32.totalorder %v2838, %v3902
    %vm4011 = vcmp.eq.s32.totalorder %v2838, %v3904
    %vm4012 = vcmp.eq.s32.totalorder %v2838, %v3906
    %vm4013 = vcmp.eq.s32.totalorder %v2838, %v3908
    %vm4014 = vcmp.eq.s32.totalorder %v2838, %v3910
    %vm4015 = vcmp.eq.s32.totalorder %v2838, %v3912
    %vm4016 = vcmp.eq.s32.totalorder %v2838, %v3914
    %vm4017 = vcmp.eq.s32.totalorder %v2838, %v3916
    %vm4018 = vcmp.eq.s32.totalorder %v2838, %v3918
    %vm4019 = vcmp.eq.s32.totalorder %v2838, %v3920
    %vm4020 = vcmp.eq.s32.totalorder %v2838, %v3922
    %vm4021 = vcmp.eq.s32.totalorder %v2838, %v3924
    %vm4022 = vcmp.eq.s32.totalorder %v2838, %v3926
    %vm4023 = vcmp.eq.s32.totalorder %v2838, %v3928
    %vm4024 = vcmp.eq.s32.totalorder %v2838, %v3930
    %vm4025 = vcmp.eq.s32.totalorder %v2838, %v3932
    %vm4026 = vcmp.eq.s32.totalorder %v2838, %v3934
    %vm4027 = vcmp.eq.s32.totalorder %v2838, %v3936
    %vm4028 = vcmp.eq.s32.totalorder %v2838, %v3938
    %vm4029 = vcmp.eq.s32.totalorder %v2838, %v3940
    %vm4030 = vcmp.eq.s32.totalorder %v2838, %v3942
    %vm4031 = vcmp.eq.s32.totalorder %v2838, %v3944
    %vm4032 = vcmp.eq.s32.totalorder %v2838, %v3946
    %vm4033 = vcmp.eq.s32.totalorder %v2838, %v3948
    %vm4034 = vcmp.eq.s32.totalorder %v2838, %v3950
    %vm4035 = vcmp.eq.s32.totalorder %v2838, %v3952
    %vm4036 = vcmp.eq.s32.totalorder %v2838, %v3954
    %vm4037 = vcmp.eq.s32.totalorder %v2838, %v3956
    %vm4038 = vcmp.eq.s32.totalorder %v2838, %v3958
    %vm4039 = vcmp.eq.s32.totalorder %v2838, %v3960
    %vm4040 = vcmp.eq.s32.totalorder %v2838, %v3962
    %vm4041 = vcmp.eq.s32.totalorder %v2838, %v3964
    %vm4042 = vcmp.eq.s32.totalorder %v2838, %v3966
    %vm4043 = vcmp.eq.s32.totalorder %v2838, %v3968
    %vm4044 = vcmp.eq.s32.totalorder %v2838, %v3970
    %vm4045 = vcmp.eq.s32.totalorder %v2838, %v3972
    %vm4046 = vcmp.eq.s32.totalorder %v2838, %v3974
    %vm4047 = vcmp.eq.s32.totalorder %v2838, %v3976
    %vm4048 = vcmp.eq.s32.totalorder %v2838, %v3978
    %vm4049 = vcmp.eq.s32.totalorder %v2838, %v3980
    %vm4050 = vcmp.eq.s32.totalorder %v2838, %v3982
    %vm4051 = vcmp.eq.s32.totalorder %v2838, %v3984
    %vm4052 = vcmp.eq.s32.totalorder %v2838, %v3986
    %vm4053 = vcmp.eq.s32.totalorder %v2838, %v3988
    %vm4054 = vcmp.eq.s32.totalorder %v2838, %v3990
    %v4055 = vsel %vm3991, 1, 0
    %v4056 = vsel %vm3992, 1, 0
    %v4057 = vsel %vm3993, 1, 0
    %v4058 = vsel %vm3994, 1, 0
    %v4059 = vsel %vm3995, 1, 0
    %v4060 = vsel %vm3996, 1, 0
    %v4061 = vsel %vm3997, 1, 0
    %v4062 = vsel %vm3998, 1, 0
    %v4063 = vsel %vm3999, 1, 0
    %v4064 = vsel %vm4000, 1, 0
    %v4065 = vsel %vm4001, 1, 0
    %v4066 = vsel %vm4002, 1, 0
    %v4067 = vsel %vm4003, 1, 0
    %v4068 = vsel %vm4004, 1, 0
    %v4069 = vsel %vm4005, 1, 0
    %v4070 = vsel %vm4006, 1, 0
    %v4071 = vsel %vm4007, 1, 0
    %v4072 = vsel %vm4008, 1, 0
    %v4073 = vsel %vm4009, 1, 0
    %v4074 = vsel %vm4010, 1, 0
    %v4075 = vsel %vm4011, 1, 0
    %v4076 = vsel %vm4012, 1, 0
    %v4077 = vsel %vm4013, 1, 0
    %v4078 = vsel %vm4014, 1, 0
    %v4079 = vsel %vm4015, 1, 0
    %v4080 = vsel %vm4016, 1, 0
    %v4081 = vsel %vm4017, 1, 0
    %v4082 = vsel %vm4018, 1, 0
    %v4083 = vsel %vm4019, 1, 0
    %v4084 = vsel %vm4020, 1, 0
    %v4085 = vsel %vm4021, 1, 0
    %v4086 = vsel %vm4022, 1, 0
    %v4087 = vsel %vm4023, 1, 0
    %v4088 = vsel %vm4024, 1, 0
    %v4089 = vsel %vm4025, 1, 0
    %v4090 = vsel %vm4026, 1, 0
    %v4091 = vsel %vm4027, 1, 0
    %v4092 = vsel %vm4028, 1, 0
    %v4093 = vsel %vm4029, 1, 0
    %v4094 = vsel %vm4030, 1, 0
    %v4095 = vsel %vm4031, 1, 0
    %v4096 = vsel %vm4032, 1, 0
    %v4097 = vsel %vm4033, 1, 0
    %v4098 = vsel %vm4034, 1, 0
    %v4099 = vsel %vm4035, 1, 0
    %v4100 = vsel %vm4036, 1, 0
    %v4101 = vsel %vm4037, 1, 0
    %v4102 = vsel %vm4038, 1, 0
    %v4103 = vsel %vm4039, 1, 0
    %v4104 = vsel %vm4040, 1, 0
    %v4105 = vsel %vm4041, 1, 0
    %v4106 = vsel %vm4042, 1, 0
    %v4107 = vsel %vm4043, 1, 0
    %v4108 = vsel %vm4044, 1, 0
    %v4109 = vsel %vm4045, 1, 0
    %v4110 = vsel %vm4046, 1, 0
    %v4111 = vsel %vm4047, 1, 0
    %v4112 = vsel %vm4048, 1, 0
    %v4113 = vsel %vm4049, 1, 0
    %v4114 = vsel %vm4050, 1, 0
    %v4115 = vsel %vm4051, 1, 0
    %v4116 = vsel %vm4052, 1, 0
    %v4117 = vsel %vm4053, 1, 0
    %v4118 = vsel %vm4054, 1, 0
    %v4119 = vcvt.s32.f32 %v4055
    %v4120 = vcvt.s32.f32 %v4056
    %v4121 = vcvt.s32.f32 %v4057
    %v4122 = vcvt.s32.f32 %v4058
    %v4123 = vcvt.s32.f32 %v4059
    %v4124 = vcvt.s32.f32 %v4060
    %v4125 = vcvt.s32.f32 %v4061
    %v4126 = vcvt.s32.f32 %v4062
    %v4127 = vcvt.s32.f32 %v4063
    %v4128 = vcvt.s32.f32 %v4064
    %v4129 = vcvt.s32.f32 %v4065
    %v4130 = vcvt.s32.f32 %v4066
    %v4131 = vcvt.s32.f32 %v4067
    %v4132 = vcvt.s32.f32 %v4068
    %v4133 = vcvt.s32.f32 %v4069
    %v4134 = vcvt.s32.f32 %v4070
    %v4135 = vcvt.s32.f32 %v4071
    %v4136 = vcvt.s32.f32 %v4072
    %v4137 = vcvt.s32.f32 %v4073
    %v4138 = vcvt.s32.f32 %v4074
    %v4139 = vcvt.s32.f32 %v4075
    %v4140 = vcvt.s32.f32 %v4076
    %v4141 = vcvt.s32.f32 %v4077
    %v4142 = vcvt.s32.f32 %v4078
    %v4143 = vcvt.s32.f32 %v4079
    %v4144 = vcvt.s32.f32 %v4080
    %v4145 = vcvt.s32.f32 %v4081
    %v4146 = vcvt.s32.f32 %v4082
    %v4147 = vcvt.s32.f32 %v4083
    %v4148 = vcvt.s32.f32 %v4084
    %v4149 = vcvt.s32.f32 %v4085
    %v4150 = vcvt.s32.f32 %v4086
    %v4151 = vcvt.s32.f32 %v4087
    %v4152 = vcvt.s32.f32 %v4088
    %v4153 = vcvt.s32.f32 %v4089
    %v4154 = vcvt.s32.f32 %v4090
    %v4155 = vcvt.s32.f32 %v4091
    %v4156 = vcvt.s32.f32 %v4092
    %v4157 = vcvt.s32.f32 %v4093
    %v4158 = vcvt.s32.f32 %v4094
    %v4159 = vcvt.s32.f32 %v4095
    %v4160 = vcvt.s32.f32 %v4096
    %v4161 = vcvt.s32.f32 %v4097
    %v4162 = vcvt.s32.f32 %v4098
    %v4163 = vcvt.s32.f32 %v4099
    %v4164 = vcvt.s32.f32 %v4100
    %v4165 = vcvt.s32.f32 %v4101
    %v4166 = vcvt.s32.f32 %v4102
    %v4167 = vcvt.s32.f32 %v4103
    %v4168 = vcvt.s32.f32 %v4104
    %v4169 = vcvt.s32.f32 %v4105
    %v4170 = vcvt.s32.f32 %v4106
    %v4171 = vcvt.s32.f32 %v4107
    %v4172 = vcvt.s32.f32 %v4108
    %v4173 = vcvt.s32.f32 %v4109
    %v4174 = vcvt.s32.f32 %v4110
    %v4175 = vcvt.s32.f32 %v4111
    %v4176 = vcvt.s32.f32 %v4112
    %v4177 = vcvt.s32.f32 %v4113
    %v4178 = vcvt.s32.f32 %v4114
    %v4179 = vcvt.s32.f32 %v4115
    %v4180 = vcvt.s32.f32 %v4116
    %v4181 = vcvt.s32.f32 %v4117
    %v4182 = vcvt.s32.f32 %v4118
    %4183 = vmatpush.msra.mxu0 %v2173
    %4184 = vmatpush.msra.mxu0 %v2172
    %4185 = vmatpush.msra.mxu0 %v2171
    %4186 = vmatpush.msra.mxu0 %v2170
    %4187 = vmatpush.msra.mxu0 %v2169
    %4188 = vmatpush.msra.mxu0 %v2168
    %4189 = vmatpush.msra.mxu0 %v2167
    %4190 = vmatpush.msra.mxu0 %v2166
    %4191 = vmatpush.msra.mxu0 %v2165
    %4192 = vmatpush.msra.mxu0 %v2164
    %4193 = vmatpush.msra.mxu0 %v2163
    %4194 = vmatpush.msra.mxu0 %v2162
    %4195 = vmatpush.msra.mxu0 %v2161
    %4196 = vmatpush.msra.mxu0 %v2160
    %4197 = vmatpush.msra.mxu0 %v2159
    %4198 = vmatpush.msra.mxu0 %v2158
    %4199 = vmatmul.f32.gmra.mxu0 %v4119
    %v4200 = vpop.f32.mrf.mxu0
    %v4201 = vadd.f32 0.0, %v4200
    %4202 = vmatmul.f32.gmra.mxu0 %v4120
    %v4203 = vpop.f32.mrf.mxu0
    %v4204 = vadd.f32 0.0, %v4203
    %4205 = vmatmul.f32.gmra.mxu0 %v4121
    %v4206 = vpop.f32.mrf.mxu0
    %v4207 = vadd.f32 0.0, %v4206
    %4208 = vmatmul.f32.gmra.mxu0 %v4122
    %v4209 = vpop.f32.mrf.mxu0
    %v4210 = vadd.f32 0.0, %v4209
    %4211 = vmatmul.f32.gmra.mxu0 %v4123
    %v4212 = vpop.f32.mrf.mxu0
    %v4213 = vadd.f32 0.0, %v4212
    %4214 = vmatmul.f32.gmra.mxu0 %v4124
    %v4215 = vpop.f32.mrf.mxu0
    %v4216 = vadd.f32 0.0, %v4215
    %4217 = vmatmul.f32.gmra.mxu0 %v4125
    %v4218 = vpop.f32.mrf.mxu0
    %v4219 = vadd.f32 0.0, %v4218
    %4220 = vmatmul.f32.gmra.mxu0 %v4126
    %v4221 = vpop.f32.mrf.mxu0
    %v4222 = vadd.f32 0.0, %v4221
    %4223 = vmatmul.f32.gmra.mxu0 %v4127
    %v4224 = vpop.f32.mrf.mxu0
    %v4225 = vadd.f32 0.0, %v4224
    %4226 = vmatmul.f32.gmra.mxu0 %v4128
    %v4227 = vpop.f32.mrf.mxu0
    %v4228 = vadd.f32 0.0, %v4227
    %4229 = vmatmul.f32.gmra.mxu0 %v4129
    %v4230 = vpop.f32.mrf.mxu0
    %v4231 = vadd.f32 0.0, %v4230
    %4232 = vmatmul.f32.gmra.mxu0 %v4130
    %v4233 = vpop.f32.mrf.mxu0
    %v4234 = vadd.f32 0.0, %v4233
    %4235 = vmatmul.f32.gmra.mxu0 %v4131
    %v4236 = vpop.f32.mrf.mxu0
    %v4237 = vadd.f32 0.0, %v4236
    %4238 = vmatmul.f32.gmra.mxu0 %v4132
    %v4239 = vpop.f32.mrf.mxu0
    %v4240 = vadd.f32 0.0, %v4239
    %4241 = vmatmul.f32.gmra.mxu0 %v4133
    %v4242 = vpop.f32.mrf.mxu0
    %v4243 = vadd.f32 0.0, %v4242
    %4244 = vmatmul.f32.gmra.mxu0 %v4134
    %v4245 = vpop.f32.mrf.mxu0
    %v4246 = vadd.f32 0.0, %v4245
    %4247 = vmatmul.f32.gmra.mxu0 %v4135
    %v4248 = vpop.f32.mrf.mxu0
    %v4249 = vadd.f32 0.0, %v4248
    %4250 = vmatmul.f32.gmra.mxu0 %v4136
    %v4251 = vpop.f32.mrf.mxu0
    %v4252 = vadd.f32 0.0, %v4251
    %4253 = vmatmul.f32.gmra.mxu0 %v4137
    %v4254 = vpop.f32.mrf.mxu0
    %v4255 = vadd.f32 0.0, %v4254
    %4256 = vmatmul.f32.gmra.mxu0 %v4138
    %v4257 = vpop.f32.mrf.mxu0
    %v4258 = vadd.f32 0.0, %v4257
    %4259 = vmatmul.f32.gmra.mxu0 %v4139
    %v4260 = vpop.f32.mrf.mxu0
    %v4261 = vadd.f32 0.0, %v4260
    %4262 = vmatmul.f32.gmra.mxu0 %v4140
    %v4263 = vpop.f32.mrf.mxu0
    %v4264 = vadd.f32 0.0, %v4263
    %4265 = vmatmul.f32.gmra.mxu0 %v4141
    %v4266 = vpop.f32.mrf.mxu0
    %v4267 = vadd.f32 0.0, %v4266
    %4268 = vmatmul.f32.gmra.mxu0 %v4142
    %v4269 = vpop.f32.mrf.mxu0
    %v4270 = vadd.f32 0.0, %v4269
    %4271 = vmatmul.f32.gmra.mxu0 %v4143
    %v4272 = vpop.f32.mrf.mxu0
    %v4273 = vadd.f32 0.0, %v4272
    %4274 = vmatmul.f32.gmra.mxu0 %v4144
    %v4275 = vpop.f32.mrf.mxu0
    %v4276 = vadd.f32 0.0, %v4275
    %4277 = vmatmul.f32.gmra.mxu0 %v4145
    %v4278 = vpop.f32.mrf.mxu0
    %v4279 = vadd.f32 0.0, %v4278
    %4280 = vmatmul.f32.gmra.mxu0 %v4146
    %v4281 = vpop.f32.mrf.mxu0
    %v4282 = vadd.f32 0.0, %v4281
    %4283 = vmatmul.f32.gmra.mxu0 %v4147
    %v4284 = vpop.f32.mrf.mxu0
    %v4285 = vadd.f32 0.0, %v4284
    %4286 = vmatmul.f32.gmra.mxu0 %v4148
    %v4287 = vpop.f32.mrf.mxu0
    %v4288 = vadd.f32 0.0, %v4287
    %4289 = vmatmul.f32.gmra.mxu0 %v4149
    %v4290 = vpop.f32.mrf.mxu0
    %v4291 = vadd.f32 0.0, %v4290
    %4292 = vmatmul.f32.gmra.mxu0 %v4150
    %v4293 = vpop.f32.mrf.mxu0
    %v4294 = vadd.f32 0.0, %v4293
    %4295 = vmatmul.f32.gmra.mxu0 %v4151
    %v4296 = vpop.f32.mrf.mxu0
    %v4297 = vadd.f32 0.0, %v4296
    %4298 = vmatmul.f32.gmra.mxu0 %v4152
    %v4299 = vpop.f32.mrf.mxu0
    %v4300 = vadd.f32 0.0, %v4299
    %4301 = vmatmul.f32.gmra.mxu0 %v4153
    %v4302 = vpop.f32.mrf.mxu0
    %v4303 = vadd.f32 0.0, %v4302
    %4304 = vmatmul.f32.gmra.mxu0 %v4154
    %v4305 = vpop.f32.mrf.mxu0
    %v4306 = vadd.f32 0.0, %v4305
    %4307 = vmatmul.f32.gmra.mxu0 %v4155
    %v4308 = vpop.f32.mrf.mxu0
    %v4309 = vadd.f32 0.0, %v4308
    %4310 = vmatmul.f32.gmra.mxu0 %v4156
    %v4311 = vpop.f32.mrf.mxu0
    %v4312 = vadd.f32 0.0, %v4311
    %4313 = vmatmul.f32.gmra.mxu0 %v4157
    %v4314 = vpop.f32.mrf.mxu0
    %v4315 = vadd.f32 0.0, %v4314
    %4316 = vmatmul.f32.gmra.mxu0 %v4158
    %v4317 = vpop.f32.mrf.mxu0
    %v4318 = vadd.f32 0.0, %v4317
    %4319 = vmatmul.f32.gmra.mxu0 %v4159
    %v4320 = vpop.f32.mrf.mxu0
    %v4321 = vadd.f32 0.0, %v4320
    %4322 = vmatmul.f32.gmra.mxu0 %v4160
    %v4323 = vpop.f32.mrf.mxu0
    %v4324 = vadd.f32 0.0, %v4323
    %4325 = vmatmul.f32.gmra.mxu0 %v4161
    %v4326 = vpop.f32.mrf.mxu0
    %v4327 = vadd.f32 0.0, %v4326
    %4328 = vmatmul.f32.gmra.mxu0 %v4162
    %v4329 = vpop.f32.mrf.mxu0
    %v4330 = vadd.f32 0.0, %v4329
    %4331 = vmatmul.f32.gmra.mxu0 %v4163
    %v4332 = vpop.f32.mrf.mxu0
    %v4333 = vadd.f32 0.0, %v4332
    %4334 = vmatmul.f32.gmra.mxu0 %v4164
    %v4335 = vpop.f32.mrf.mxu0
    %v4336 = vadd.f32 0.0, %v4335
    %4337 = vmatmul.f32.gmra.mxu0 %v4165
    %v4338 = vpop.f32.mrf.mxu0
    %v4339 = vadd.f32 0.0, %v4338
    %4340 = vmatmul.f32.gmra.mxu0 %v4166
    %v4341 = vpop.f32.mrf.mxu0
    %v4342 = vadd.f32 0.0, %v4341
    %4343 = vmatmul.f32.gmra.mxu0 %v4167
    %v4344 = vpop.f32.mrf.mxu0
    %v4345 = vadd.f32 0.0, %v4344
    %4346 = vmatmul.f32.gmra.mxu0 %v4168
    %v4347 = vpop.f32.mrf.mxu0
    %v4348 = vadd.f32 0.0, %v4347
    %4349 = vmatmul.f32.gmra.mxu0 %v4169
    %v4350 = vpop.f32.mrf.mxu0
    %v4351 = vadd.f32 0.0, %v4350
    %4352 = vmatmul.f32.gmra.mxu0 %v4170
    %v4353 = vpop.f32.mrf.mxu0
    %v4354 = vadd.f32 0.0, %v4353
    %4355 = vmatmul.f32.gmra.mxu0 %v4171
    %v4356 = vpop.f32.mrf.mxu0
    %v4357 = vadd.f32 0.0, %v4356
    %4358 = vmatmul.f32.gmra.mxu0 %v4172
    %v4359 = vpop.f32.mrf.mxu0
    %v4360 = vadd.f32 0.0, %v4359
    %4361 = vmatmul.f32.gmra.mxu0 %v4173
    %v4362 = vpop.f32.mrf.mxu0
    %v4363 = vadd.f32 0.0, %v4362
    %4364 = vmatmul.f32.gmra.mxu0 %v4174
    %v4365 = vpop.f32.mrf.mxu0
    %v4366 = vadd.f32 0.0, %v4365
    %4367 = vmatmul.f32.gmra.mxu0 %v4175
    %v4368 = vpop.f32.mrf.mxu0
    %v4369 = vadd.f32 0.0, %v4368
    %4370 = vmatmul.f32.gmra.mxu0 %v4176
    %v4371 = vpop.f32.mrf.mxu0
    %v4372 = vadd.f32 0.0, %v4371
    %4373 = vmatmul.f32.gmra.mxu0 %v4177
    %v4374 = vpop.f32.mrf.mxu0
    %v4375 = vadd.f32 0.0, %v4374
    %4376 = vmatmul.f32.gmra.mxu0 %v4178
    %v4377 = vpop.f32.mrf.mxu0
    %v4378 = vadd.f32 0.0, %v4377
    %4379 = vmatmul.f32.gmra.mxu0 %v4179
    %v4380 = vpop.f32.mrf.mxu0
    %v4381 = vadd.f32 0.0, %v4380
    %4382 = vmatmul.f32.gmra.mxu0 %v4180
    %v4383 = vpop.f32.mrf.mxu0
    %v4384 = vadd.f32 0.0, %v4383
    %4385 = vmatmul.f32.gmra.mxu0 %v4181
    %v4386 = vpop.f32.mrf.mxu0
    %v4387 = vadd.f32 0.0, %v4386
    %4388 = vmatmul.f32.gmra.mxu0 %v4182
    %v4389 = vpop.f32.mrf.mxu0
    %v4390 = vadd.f32 0.0, %v4389
    %4391 = vdwg.mxu0
    %4392 = vst.msk [vmem:[%s22] sm:$0xff] %vm2093, %v4201
    %4393 = vst.msk [vmem:[%s22 + $0x8] sm:$0xff] %vm2093, %v4204
    %4394 = vst.msk [vmem:[%s22 + $0x10] sm:$0xff] %vm2093, %v4207
    %4395 = vst.msk [vmem:[%s22 + $0x18] sm:$0xff] %vm2093, %v4210
    %4396 = vst.msk [vmem:[%s22 + $0x20] sm:$0xff] %vm2093, %v4213
    %4397 = vst.msk [vmem:[%s22 + $0x28] sm:$0xff] %vm2093, %v4216
    %4398 = vst.msk [vmem:[%s22 + $0x30] sm:$0xff] %vm2093, %v4219
    %4399 = vst.msk [vmem:[%s22 + $0x38] sm:$0xff] %vm2093, %v4222
    %4400 = vst.msk [vmem:[%s22 + $0x40] sm:$0xff] %vm2093, %v4225
    %4401 = vst.msk [vmem:[%s22 + $0x48] sm:$0xff] %vm2093, %v4228
    %4402 = vst.msk [vmem:[%s22 + $0x50] sm:$0xff] %vm2093, %v4231
    %4403 = vst.msk [vmem:[%s22 + $0x58] sm:$0xff] %vm2093, %v4234
    %4404 = vst.msk [vmem:[%s22 + $0x60] sm:$0xff] %vm2093, %v4237
    %4405 = vst.msk [vmem:[%s22 + $0x68] sm:$0xff] %vm2093, %v4240
    %4406 = vst.msk [vmem:[%s22 + $0x70] sm:$0xff] %vm2093, %v4243
    %4407 = vst.msk [vmem:[%s22 + $0x78] sm:$0xff] %vm2093, %v4246
    %4408 = vst.msk [vmem:[%s22 + $0x80] sm:$0xff] %vm2093, %v4249
    %4409 = vst.msk [vmem:[%s22 + $0x88] sm:$0xff] %vm2093, %v4252
    %4410 = vst.msk [vmem:[%s22 + $0x90] sm:$0xff] %vm2093, %v4255
    %4411 = vst.msk [vmem:[%s22 + $0x98] sm:$0xff] %vm2093, %v4258
    %4412 = vst.msk [vmem:[%s22 + $0xa0] sm:$0xff] %vm2093, %v4261
    %4413 = vst.msk [vmem:[%s22 + $0xa8] sm:$0xff] %vm2093, %v4264
    %4414 = vst.msk [vmem:[%s22 + $0xb0] sm:$0xff] %vm2093, %v4267
    %4415 = vst.msk [vmem:[%s22 + $0xb8] sm:$0xff] %vm2093, %v4270
    %4416 = vst.msk [vmem:[%s22 + $0xc0] sm:$0xff] %vm2093, %v4273
    %4417 = vst.msk [vmem:[%s22 + $0xc8] sm:$0xff] %vm2093, %v4276
    %4418 = vst.msk [vmem:[%s22 + $0xd0] sm:$0xff] %vm2093, %v4279
    %4419 = vst.msk [vmem:[%s22 + $0xd8] sm:$0xff] %vm2093, %v4282
    %4420 = vst.msk [vmem:[%s22 + $0xe0] sm:$0xff] %vm2093, %v4285
    %4421 = vst.msk [vmem:[%s22 + $0xe8] sm:$0xff] %vm2093, %v4288
    %4422 = vst.msk [vmem:[%s22 + $0xf0] sm:$0xff] %vm2093, %v4291
    %4423 = vst.msk [vmem:[%s22 + $0xf8] sm:$0xff] %vm2093, %v4294
    %4424 = vst.msk [vmem:[%s22 + $0x100] sm:$0xff] %vm2093, %v4297
    %4425 = vst.msk [vmem:[%s22 + $0x108] sm:$0xff] %vm2093, %v4300
    %4426 = vst.msk [vmem:[%s22 + $0x110] sm:$0xff] %vm2093, %v4303
    %4427 = vst.msk [vmem:[%s22 + $0x118] sm:$0xff] %vm2093, %v4306
    %4428 = vst.msk [vmem:[%s22 + $0x120] sm:$0xff] %vm2093, %v4309
    %4429 = vst.msk [vmem:[%s22 + $0x128] sm:$0xff] %vm2093, %v4312
    %4430 = vst.msk [vmem:[%s22 + $0x130] sm:$0xff] %vm2093, %v4315
    %4431 = vst.msk [vmem:[%s22 + $0x138] sm:$0xff] %vm2093, %v4318
    %4432 = vst.msk [vmem:[%s22 + $0x140] sm:$0xff] %vm2093, %v4321
    %4433 = vst.msk [vmem:[%s22 + $0x148] sm:$0xff] %vm2093, %v4324
    %4434 = vst.msk [vmem:[%s22 + $0x150] sm:$0xff] %vm2093, %v4327
    %4435 = vst.msk [vmem:[%s22 + $0x158] sm:$0xff] %vm2093, %v4330
    %4436 = vst.msk [vmem:[%s22 + $0x160] sm:$0xff] %vm2093, %v4333
    %4437 = vst.msk [vmem:[%s22 + $0x168] sm:$0xff] %vm2093, %v4336
    %4438 = vst.msk [vmem:[%s22 + $0x170] sm:$0xff] %vm2093, %v4339
    %4439 = vst.msk [vmem:[%s22 + $0x178] sm:$0xff] %vm2093, %v4342
    %4440 = vst.msk [vmem:[%s22 + $0x180] sm:$0xff] %vm2093, %v4345
    %4441 = vst.msk [vmem:[%s22 + $0x188] sm:$0xff] %vm2093, %v4348
    %4442 = vst.msk [vmem:[%s22 + $0x190] sm:$0xff] %vm2093, %v4351
    %4443 = vst.msk [vmem:[%s22 + $0x198] sm:$0xff] %vm2093, %v4354
    %4444 = vst.msk [vmem:[%s22 + $0x1a0] sm:$0xff] %vm2093, %v4357
    %4445 = vst.msk [vmem:[%s22 + $0x1a8] sm:$0xff] %vm2093, %v4360
    %4446 = vst.msk [vmem:[%s22 + $0x1b0] sm:$0xff] %vm2093, %v4363
    %4447 = vst.msk [vmem:[%s22 + $0x1b8] sm:$0xff] %vm2093, %v4366
    %4448 = vst.msk [vmem:[%s22 + $0x1c0] sm:$0xff] %vm2093, %v4369
    %4449 = vst.msk [vmem:[%s22 + $0x1c8] sm:$0xff] %vm2093, %v4372
    %4450 = vst.msk [vmem:[%s22 + $0x1d0] sm:$0xff] %vm2093, %v4375
    %4451 = vst.msk [vmem:[%s22 + $0x1d8] sm:$0xff] %vm2093, %v4378
    %4452 = vst.msk [vmem:[%s22 + $0x1e0] sm:$0xff] %vm2093, %v4381
    %4453 = vst.msk [vmem:[%s22 + $0x1e8] sm:$0xff] %vm2093, %v4384
    %4454 = vst.msk [vmem:[%s22 + $0x1f0] sm:$0xff] %vm2093, %v4387
    %4455 = vst.msk [vmem:[%s22 + $0x1f8] sm:$0xff] %vm2093, %v4390
    %v4456 = vcvt.s32.f32 %v2838
    %4457 = vmatpush.xpose.msra.mxu0 %v4134
    %4458 = vmatpush.xpose.msra.mxu0 %v4133
    %4459 = vmatpush.xpose.msra.mxu0 %v4132
    %4460 = vmatpush.xpose.msra.mxu0 %v4131
    %4461 = vmatpush.xpose.msra.mxu0 %v4130
    %4462 = vmatpush.xpose.msra.mxu0 %v4129
    %4463 = vmatpush.xpose.msra.mxu0 %v4128
    %4464 = vmatpush.xpose.msra.mxu0 %v4127
    %4465 = vmatpush.xpose.msra.mxu0 %v4126
    %4466 = vmatpush.xpose.msra.mxu0 %v4125
    %4467 = vmatpush.xpose.msra.mxu0 %v4124
    %4468 = vmatpush.xpose.msra.mxu0 %v4123
    %4469 = vmatpush.xpose.msra.mxu0 %v4122
    %4470 = vmatpush.xpose.msra.mxu0 %v4121
    %4471 = vmatpush.xpose.msra.mxu0 %v4120
    %4472 = vmatpush.xpose.msra.mxu0 %v4119
    %4473 = vmatmul.f32.gmra.mxu0 %v4456
    %v4474 = vpop.f32.mrf.mxu0
    %v4475 = vadd.f32 0.0, %v4474
    %4476 = vdwg.mxu0
    %4477 = vmatpush.xpose.msra.mxu0 %v4150
    %4478 = vmatpush.xpose.msra.mxu0 %v4149
    %4479 = vmatpush.xpose.msra.mxu0 %v4148
    %4480 = vmatpush.xpose.msra.mxu0 %v4147
    %4481 = vmatpush.xpose.msra.mxu0 %v4146
    %4482 = vmatpush.xpose.msra.mxu0 %v4145
    %4483 = vmatpush.xpose.msra.mxu0 %v4144
    %4484 = vmatpush.xpose.msra.mxu0 %v4143
    %4485 = vmatpush.xpose.msra.mxu0 %v4142
    %4486 = vmatpush.xpose.msra.mxu0 %v4141
    %4487 = vmatpush.xpose.msra.mxu0 %v4140
    %4488 = vmatpush.xpose.msra.mxu0 %v4139
    %4489 = vmatpush.xpose.msra.mxu0 %v4138
    %4490 = vmatpush.xpose.msra.mxu0 %v4137
    %4491 = vmatpush.xpose.msra.mxu0 %v4136
    %4492 = vmatpush.xpose.msra.mxu0 %v4135
    %4493 = vmatmul.f32.gmra.mxu0 %v4456
    %v4494 = vpop.f32.mrf.mxu0
    %v4495 = vadd.f32 0.0, %v4494
    %4496 = vdwg.mxu0
    %4497 = vmatpush.xpose.msra.mxu0 %v4166
    %4498 = vmatpush.xpose.msra.mxu0 %v4165
    %4499 = vmatpush.xpose.msra.mxu0 %v4164
    %4500 = vmatpush.xpose.msra.mxu0 %v4163
    %4501 = vmatpush.xpose.msra.mxu0 %v4162
    %4502 = vmatpush.xpose.msra.mxu0 %v4161
    %4503 = vmatpush.xpose.msra.mxu0 %v4160
    %4504 = vmatpush.xpose.msra.mxu0 %v4159
    %4505 = vmatpush.xpose.msra.mxu0 %v4158
    %4506 = vmatpush.xpose.msra.mxu0 %v4157
    %4507 = vmatpush.xpose.msra.mxu0 %v4156
    %4508 = vmatpush.xpose.msra.mxu0 %v4155
    %4509 = vmatpush.xpose.msra.mxu0 %v4154
    %4510 = vmatpush.xpose.msra.mxu0 %v4153
    %4511 = vmatpush.xpose.msra.mxu0 %v4152
    %4512 = vmatpush.xpose.msra.mxu0 %v4151
    %4513 = vmatmul.f32.gmra.mxu0 %v4456
    %v4514 = vpop.f32.mrf.mxu0
    %v4515 = vadd.f32 0.0, %v4514
    %4516 = vdwg.mxu0
    %4517 = vmatpush.xpose.msra.mxu0 %v4182
    %4518 = vmatpush.xpose.msra.mxu0 %v4181
    %4519 = vmatpush.xpose.msra.mxu0 %v4180
    %4520 = vmatpush.xpose.msra.mxu0 %v4179
    %4521 = vmatpush.xpose.msra.mxu0 %v4178
    %4522 = vmatpush.xpose.msra.mxu0 %v4177
    %4523 = vmatpush.xpose.msra.mxu0 %v4176
    %4524 = vmatpush.xpose.msra.mxu0 %v4175
    %4525 = vmatpush.xpose.msra.mxu0 %v4174
    %4526 = vmatpush.xpose.msra.mxu0 %v4173
    %4527 = vmatpush.xpose.msra.mxu0 %v4172
    %4528 = vmatpush.xpose.msra.mxu0 %v4171
    %4529 = vmatpush.xpose.msra.mxu0 %v4170
    %4530 = vmatpush.xpose.msra.mxu0 %v4169
    %4531 = vmatpush.xpose.msra.mxu0 %v4168
    %4532 = vmatpush.xpose.msra.mxu0 %v4167
    %4533 = vmatmul.f32.gmra.mxu0 %v4456
    %v4534 = vpop.f32.mrf.mxu0
    %v4535 = vadd.f32 0.0, %v4534
    %4536 = vdwg.mxu0
    %v4537 = vcvt.f32.s32.to.zero.pseudo %v4475
    %v4538 = vcvt.f32.s32.to.zero.pseudo %v4495
    %v4539 = vcvt.f32.s32.to.zero.pseudo %v4515
    %v4540 = vcvt.f32.s32.to.zero.pseudo %v4535
    %v4541 = vrot.slane %v4538, 7
    %v4542 = vrot.slane %v4539, 6
    %v4543 = vrot.slane %v4540, 5
    %vm4544 = vcmask 1040384
    %v4545 = vsel %vm4544, %v4537, %v4541
    %vm4546 = vcmask 1042434
    %v4547 = vsel %vm4546, %v4542, %v4543
    %vm4548 = vcmask 1041408
    %v4549 = vsel %vm4548, %v4545, %v4547
    %v4550 = vlaneseq
    %vm4551 = vcmp.ge.s32.totalorder %v4550, 0
    %vm4552 = vcmp.lt.s32.totalorder %v4550, 512
    %vm4553 = vmand %vm4551, %vm4552
    %4554 = vst.msk [vmem:[#allocation2] sm:$0xf] %vm4553, %v4549
    %v4555 = vld [vmem:[%s12] sm:$0xff]
    %v4556 = vld [vmem:[%s12 + $0x8] sm:$0xff]
    %v4557 = vld [vmem:[%s13] sm:$0x1]
    %v4559 = vperm.slane %v4557, 0
    %v4562 = vsel %vm2093, %v4201, 0
    %v4565 = vsel %vm2093, %v4204, 0
    %v4568 = vsel %vm2093, %v4207, 0
    %v4571 = vsel %vm2093, %v4210, 0
    %v4574 = vsel %vm2093, %v4213, 0
    %v4577 = vsel %vm2093, %v4216, 0
    %v4580 = vsel %vm2093, %v4219, 0
    %v4583 = vsel %vm2093, %v4222, 0
    %v4586 = vsel %vm2093, %v4225, 0
    %v4589 = vsel %vm2093, %v4228, 0
    %v4592 = vsel %vm2093, %v4231, 0
    %v4595 = vsel %vm2093, %v4234, 0
    %v4598 = vsel %vm2093, %v4237, 0
    %v4601 = vsel %vm2093, %v4240, 0
    %v4604 = vsel %vm2093, %v4243, 0
    %v4607 = vsel %vm2093, %v4246, 0
    %v4610 = vsel %vm2093, %v4249, 0
    %v4613 = vsel %vm2093, %v4252, 0
    %v4616 = vsel %vm2093, %v4255, 0
    %v4619 = vsel %vm2093, %v4258, 0
    %v4622 = vsel %vm2093, %v4261, 0
    %v4625 = vsel %vm2093, %v4264, 0
    %v4628 = vsel %vm2093, %v4267, 0
    %v4631 = vsel %vm2093, %v4270, 0
    %v4634 = vsel %vm2093, %v4273, 0
    %v4637 = vsel %vm2093, %v4276, 0
    %v4640 = vsel %vm2093, %v4279, 0
    %v4643 = vsel %vm2093, %v4282, 0
    %v4646 = vsel %vm2093, %v4285, 0
    %v4649 = vsel %vm2093, %v4288, 0
    %v4652 = vsel %vm2093, %v4291, 0
    %v4655 = vsel %vm2093, %v4294, 0
    %v4658 = vsel %vm2093, %v4297, 0
    %v4661 = vsel %vm2093, %v4300, 0
    %v4664 = vsel %vm2093, %v4303, 0
    %v4667 = vsel %vm2093, %v4306, 0
    %v4670 = vsel %vm2093, %v4309, 0
    %v4673 = vsel %vm2093, %v4312, 0
    %v4676 = vsel %vm2093, %v4315, 0
    %v4679 = vsel %vm2093, %v4318, 0
    %v4682 = vsel %vm2093, %v4321, 0
    %v4685 = vsel %vm2093, %v4324, 0
    %v4688 = vsel %vm2093, %v4327, 0
    %v4691 = vsel %vm2093, %v4330, 0
    %v4694 = vsel %vm2093, %v4333, 0
    %v4697 = vsel %vm2093, %v4336, 0
    %v4700 = vsel %vm2093, %v4339, 0
    %v4703 = vsel %vm2093, %v4342, 0
    %v4706 = vsel %vm2093, %v4345, 0
    %v4709 = vsel %vm2093, %v4348, 0
    %v4712 = vsel %vm2093, %v4351, 0
    %v4715 = vsel %vm2093, %v4354, 0
    %v4718 = vsel %vm2093, %v4357, 0
    %v4721 = vsel %vm2093, %v4360, 0
    %v4724 = vsel %vm2093, %v4363, 0
    %v4727 = vsel %vm2093, %v4366, 0
    %v4730 = vsel %vm2093, %v4369, 0
    %v4733 = vsel %vm2093, %v4372, 0
    %v4736 = vsel %vm2093, %v4375, 0
    %v4739 = vsel %vm2093, %v4378, 0
    %v4742 = vsel %vm2093, %v4381, 0
    %v4745 = vsel %vm2093, %v4384, 0
    %v4748 = vsel %vm2093, %v4387, 0
    %v4751 = vsel %vm2093, %v4390, 0
    %4753 = vmatpush.msra.mxu0 0.0
    %4754 = vmatpush.msra.mxu0 0.0
    %4755 = vmatpush.msra.mxu0 0.0
    %4756 = vmatpush.msra.mxu0 0.0
    %4757 = vmatpush.msra.mxu0 0.0
    %4758 = vmatpush.msra.mxu0 0.0
    %4759 = vmatpush.msra.mxu0 0.0
    %4760 = vmatpush.msra.mxu0 0.0
    %4761 = vmatpush.msra.mxu0 0.0
    %4762 = vmatpush.msra.mxu0 0.0
    %4763 = vmatpush.msra.mxu0 0.0
    %4764 = vmatpush.msra.mxu0 0.0
    %4765 = vmatpush.msra.mxu0 0.0
    %4766 = vmatpush.msra.mxu0 0.0
    %4767 = vmatpush.msra.mxu0 %v4556
    %4768 = vmatpush.msra.mxu0 %v4555
    %4769 = vmatmul.f32.gmra.mxu0 %v4562
    %v4770 = vpop.f32.mrf.mxu0
    %v4771 = vadd.f32 %v4559, %v4770
    %4772 = vmatmul.f32.gmra.mxu0 %v4565
    %v4773 = vpop.f32.mrf.mxu0
    %v4774 = vadd.f32 %v4559, %v4773
    %4775 = vmatmul.f32.gmra.mxu0 %v4568
    %v4776 = vpop.f32.mrf.mxu0
    %v4777 = vadd.f32 %v4559, %v4776
    %4778 = vmatmul.f32.gmra.mxu0 %v4571
    %v4779 = vpop.f32.mrf.mxu0
    %v4780 = vadd.f32 %v4559, %v4779
    %4781 = vmatmul.f32.gmra.mxu0 %v4574
    %v4782 = vpop.f32.mrf.mxu0
    %v4783 = vadd.f32 %v4559, %v4782
    %4784 = vmatmul.f32.gmra.mxu0 %v4577
    %v4785 = vpop.f32.mrf.mxu0
    %v4786 = vadd.f32 %v4559, %v4785
    %4787 = vmatmul.f32.gmra.mxu0 %v4580
    %v4788 = vpop.f32.mrf.mxu0
    %v4789 = vadd.f32 %v4559, %v4788
    %4790 = vmatmul.f32.gmra.mxu0 %v4583
    %v4791 = vpop.f32.mrf.mxu0
    %v4792 = vadd.f32 %v4559, %v4791
    %4793 = vmatmul.f32.gmra.mxu0 %v4586
    %v4794 = vpop.f32.mrf.mxu0
    %v4795 = vadd.f32 %v4559, %v4794
    %4796 = vmatmul.f32.gmra.mxu0 %v4589
    %v4797 = vpop.f32.mrf.mxu0
    %v4798 = vadd.f32 %v4559, %v4797
    %4799 = vmatmul.f32.gmra.mxu0 %v4592
    %v4800 = vpop.f32.mrf.mxu0
    %v4801 = vadd.f32 %v4559, %v4800
    %4802 = vmatmul.f32.gmra.mxu0 %v4595
    %v4803 = vpop.f32.mrf.mxu0
    %v4804 = vadd.f32 %v4559, %v4803
    %4805 = vmatmul.f32.gmra.mxu0 %v4598
    %v4806 = vpop.f32.mrf.mxu0
    %v4807 = vadd.f32 %v4559, %v4806
    %4808 = vmatmul.f32.gmra.mxu0 %v4601
    %v4809 = vpop.f32.mrf.mxu0
    %v4810 = vadd.f32 %v4559, %v4809
    %4811 = vmatmul.f32.gmra.mxu0 %v4604
    %v4812 = vpop.f32.mrf.mxu0
    %v4813 = vadd.f32 %v4559, %v4812
    %4814 = vmatmul.f32.gmra.mxu0 %v4607
    %v4815 = vpop.f32.mrf.mxu0
    %v4816 = vadd.f32 %v4559, %v4815
    %4817 = vmatmul.f32.gmra.mxu0 %v4610
    %v4818 = vpop.f32.mrf.mxu0
    %v4819 = vadd.f32 %v4559, %v4818
    %4820 = vmatmul.f32.gmra.mxu0 %v4613
    %v4821 = vpop.f32.mrf.mxu0
    %v4822 = vadd.f32 %v4559, %v4821
    %4823 = vmatmul.f32.gmra.mxu0 %v4616
    %v4824 = vpop.f32.mrf.mxu0
    %v4825 = vadd.f32 %v4559, %v4824
    %4826 = vmatmul.f32.gmra.mxu0 %v4619
    %v4827 = vpop.f32.mrf.mxu0
    %v4828 = vadd.f32 %v4559, %v4827
    %4829 = vmatmul.f32.gmra.mxu0 %v4622
    %v4830 = vpop.f32.mrf.mxu0
    %v4831 = vadd.f32 %v4559, %v4830
    %4832 = vmatmul.f32.gmra.mxu0 %v4625
    %v4833 = vpop.f32.mrf.mxu0
    %v4834 = vadd.f32 %v4559, %v4833
    %4835 = vmatmul.f32.gmra.mxu0 %v4628
    %v4836 = vpop.f32.mrf.mxu0
    %v4837 = vadd.f32 %v4559, %v4836
    %4838 = vmatmul.f32.gmra.mxu0 %v4631
    %v4839 = vpop.f32.mrf.mxu0
    %v4840 = vadd.f32 %v4559, %v4839
    %4841 = vmatmul.f32.gmra.mxu0 %v4634
    %v4842 = vpop.f32.mrf.mxu0
    %v4843 = vadd.f32 %v4559, %v4842
    %4844 = vmatmul.f32.gmra.mxu0 %v4637
    %v4845 = vpop.f32.mrf.mxu0
    %v4846 = vadd.f32 %v4559, %v4845
    %4847 = vmatmul.f32.gmra.mxu0 %v4640
    %v4848 = vpop.f32.mrf.mxu0
    %v4849 = vadd.f32 %v4559, %v4848
    %4850 = vmatmul.f32.gmra.mxu0 %v4643
    %v4851 = vpop.f32.mrf.mxu0
    %v4852 = vadd.f32 %v4559, %v4851
    %4853 = vmatmul.f32.gmra.mxu0 %v4646
    %v4854 = vpop.f32.mrf.mxu0
    %v4855 = vadd.f32 %v4559, %v4854
    %4856 = vmatmul.f32.gmra.mxu0 %v4649
    %v4857 = vpop.f32.mrf.mxu0
    %v4858 = vadd.f32 %v4559, %v4857
    %4859 = vmatmul.f32.gmra.mxu0 %v4652
    %v4860 = vpop.f32.mrf.mxu0
    %v4861 = vadd.f32 %v4559, %v4860
    %4862 = vmatmul.f32.gmra.mxu0 %v4655
    %v4863 = vpop.f32.mrf.mxu0
    %v4864 = vadd.f32 %v4559, %v4863
    %4865 = vmatmul.f32.gmra.mxu0 %v4658
    %v4866 = vpop.f32.mrf.mxu0
    %v4867 = vadd.f32 %v4559, %v4866
    %4868 = vmatmul.f32.gmra.mxu0 %v4661
    %v4869 = vpop.f32.mrf.mxu0
    %v4870 = vadd.f32 %v4559, %v4869
    %4871 = vmatmul.f32.gmra.mxu0 %v4664
    %v4872 = vpop.f32.mrf.mxu0
    %v4873 = vadd.f32 %v4559, %v4872
    %4874 = vmatmul.f32.gmra.mxu0 %v4667
    %v4875 = vpop.f32.mrf.mxu0
    %v4876 = vadd.f32 %v4559, %v4875
    %4877 = vmatmul.f32.gmra.mxu0 %v4670
    %v4878 = vpop.f32.mrf.mxu0
    %v4879 = vadd.f32 %v4559, %v4878
    %4880 = vmatmul.f32.gmra.mxu0 %v4673
    %v4881 = vpop.f32.mrf.mxu0
    %v4882 = vadd.f32 %v4559, %v4881
    %4883 = vmatmul.f32.gmra.mxu0 %v4676
    %v4884 = vpop.f32.mrf.mxu0
    %v4885 = vadd.f32 %v4559, %v4884
    %4886 = vmatmul.f32.gmra.mxu0 %v4679
    %v4887 = vpop.f32.mrf.mxu0
    %v4888 = vadd.f32 %v4559, %v4887
    %4889 = vmatmul.f32.gmra.mxu0 %v4682
    %v4890 = vpop.f32.mrf.mxu0
    %v4891 = vadd.f32 %v4559, %v4890
    %4892 = vmatmul.f32.gmra.mxu0 %v4685
    %v4893 = vpop.f32.mrf.mxu0
    %v4894 = vadd.f32 %v4559, %v4893
    %4895 = vmatmul.f32.gmra.mxu0 %v4688
    %v4896 = vpop.f32.mrf.mxu0
    %v4897 = vadd.f32 %v4559, %v4896
    %4898 = vmatmul.f32.gmra.mxu0 %v4691
    %v4899 = vpop.f32.mrf.mxu0
    %v4900 = vadd.f32 %v4559, %v4899
    %4901 = vmatmul.f32.gmra.mxu0 %v4694
    %v4902 = vpop.f32.mrf.mxu0
    %v4903 = vadd.f32 %v4559, %v4902
    %4904 = vmatmul.f32.gmra.mxu0 %v4697
    %v4905 = vpop.f32.mrf.mxu0
    %v4906 = vadd.f32 %v4559, %v4905
    %4907 = vmatmul.f32.gmra.mxu0 %v4700
    %v4908 = vpop.f32.mrf.mxu0
    %v4909 = vadd.f32 %v4559, %v4908
    %4910 = vmatmul.f32.gmra.mxu0 %v4703
    %v4911 = vpop.f32.mrf.mxu0
    %v4912 = vadd.f32 %v4559, %v4911
    %4913 = vmatmul.f32.gmra.mxu0 %v4706
    %v4914 = vpop.f32.mrf.mxu0
    %v4915 = vadd.f32 %v4559, %v4914
    %4916 = vmatmul.f32.gmra.mxu0 %v4709
    %v4917 = vpop.f32.mrf.mxu0
    %v4918 = vadd.f32 %v4559, %v4917
    %4919 = vmatmul.f32.gmra.mxu0 %v4712
    %v4920 = vpop.f32.mrf.mxu0
    %v4921 = vadd.f32 %v4559, %v4920
    %4922 = vmatmul.f32.gmra.mxu0 %v4715
    %v4923 = vpop.f32.mrf.mxu0
    %v4924 = vadd.f32 %v4559, %v4923
    %4925 = vmatmul.f32.gmra.mxu0 %v4718
    %v4926 = vpop.f32.mrf.mxu0
    %v4927 = vadd.f32 %v4559, %v4926
    %4928 = vmatmul.f32.gmra.mxu0 %v4721
    %v4929 = vpop.f32.mrf.mxu0
    %v4930 = vadd.f32 %v4559, %v4929
    %4931 = vmatmul.f32.gmra.mxu0 %v4724
    %v4932 = vpop.f32.mrf.mxu0
    %v4933 = vadd.f32 %v4559, %v4932
    %4934 = vmatmul.f32.gmra.mxu0 %v4727
    %v4935 = vpop.f32.mrf.mxu0
    %v4936 = vadd.f32 %v4559, %v4935
    %4937 = vmatmul.f32.gmra.mxu0 %v4730
    %v4938 = vpop.f32.mrf.mxu0
    %v4939 = vadd.f32 %v4559, %v4938
    %4940 = vmatmul.f32.gmra.mxu0 %v4733
    %v4941 = vpop.f32.mrf.mxu0
    %v4942 = vadd.f32 %v4559, %v4941
    %4943 = vmatmul.f32.gmra.mxu0 %v4736
    %v4944 = vpop.f32.mrf.mxu0
    %v4945 = vadd.f32 %v4559, %v4944
    %4946 = vmatmul.f32.gmra.mxu0 %v4739
    %v4947 = vpop.f32.mrf.mxu0
    %v4948 = vadd.f32 %v4559, %v4947
    %4949 = vmatmul.f32.gmra.mxu0 %v4742
    %v4950 = vpop.f32.mrf.mxu0
    %v4951 = vadd.f32 %v4559, %v4950
    %4952 = vmatmul.f32.gmra.mxu0 %v4745
    %v4953 = vpop.f32.mrf.mxu0
    %v4954 = vadd.f32 %v4559, %v4953
    %4955 = vmatmul.f32.gmra.mxu0 %v4748
    %v4956 = vpop.f32.mrf.mxu0
    %v4957 = vadd.f32 %v4559, %v4956
    %4958 = vmatmul.f32.gmra.mxu0 %v4751
    %v4959 = vpop.f32.mrf.mxu0
    %v4960 = vadd.f32 %v4559, %v4959
    %4961 = vdwg.mxu0
    %v4962 = vmax.f32 %v4771, 0.0
    %v4963 = vmax.f32 %v4774, 0.0
    %v4964 = vmax.f32 %v4777, 0.0
    %v4965 = vmax.f32 %v4780, 0.0
    %v4966 = vmax.f32 %v4783, 0.0
    %v4967 = vmax.f32 %v4786, 0.0
    %v4968 = vmax.f32 %v4789, 0.0
    %v4969 = vmax.f32 %v4792, 0.0
    %v4970 = vmax.f32 %v4795, 0.0
    %v4971 = vmax.f32 %v4798, 0.0
    %v4972 = vmax.f32 %v4801, 0.0
    %v4973 = vmax.f32 %v4804, 0.0
    %v4974 = vmax.f32 %v4807, 0.0
    %v4975 = vmax.f32 %v4810, 0.0
    %v4976 = vmax.f32 %v4813, 0.0
    %v4977 = vmax.f32 %v4816, 0.0
    %v4978 = vmax.f32 %v4819, 0.0
    %v4979 = vmax.f32 %v4822, 0.0
    %v4980 = vmax.f32 %v4825, 0.0
    %v4981 = vmax.f32 %v4828, 0.0
    %v4982 = vmax.f32 %v4831, 0.0
    %v4983 = vmax.f32 %v4834, 0.0
    %v4984 = vmax.f32 %v4837, 0.0
    %v4985 = vmax.f32 %v4840, 0.0
    %v4986 = vmax.f32 %v4843, 0.0
    %v4987 = vmax.f32 %v4846, 0.0
    %v4988 = vmax.f32 %v4849, 0.0
    %v4989 = vmax.f32 %v4852, 0.0
    %v4990 = vmax.f32 %v4855, 0.0
    %v4991 = vmax.f32 %v4858, 0.0
    %v4992 = vmax.f32 %v4861, 0.0
    %v4993 = vmax.f32 %v4864, 0.0
    %v4994 = vmax.f32 %v4867, 0.0
    %v4995 = vmax.f32 %v4870, 0.0
    %v4996 = vmax.f32 %v4873, 0.0
    %v4997 = vmax.f32 %v4876, 0.0
    %v4998 = vmax.f32 %v4879, 0.0
    %v4999 = vmax.f32 %v4882, 0.0
    %v5000 = vmax.f32 %v4885, 0.0
    %v5001 = vmax.f32 %v4888, 0.0
    %v5002 = vmax.f32 %v4891, 0.0
    %v5003 = vmax.f32 %v4894, 0.0
    %v5004 = vmax.f32 %v4897, 0.0
    %v5005 = vmax.f32 %v4900, 0.0
    %v5006 = vmax.f32 %v4903, 0.0
    %v5007 = vmax.f32 %v4906, 0.0
    %v5008 = vmax.f32 %v4909, 0.0
    %v5009 = vmax.f32 %v4912, 0.0
    %v5010 = vmax.f32 %v4915, 0.0
    %v5011 = vmax.f32 %v4918, 0.0
    %v5012 = vmax.f32 %v4921, 0.0
    %v5013 = vmax.f32 %v4924, 0.0
    %v5014 = vmax.f32 %v4927, 0.0
    %v5015 = vmax.f32 %v4930, 0.0
    %v5016 = vmax.f32 %v4933, 0.0
    %v5017 = vmax.f32 %v4936, 0.0
    %v5018 = vmax.f32 %v4939, 0.0
    %v5019 = vmax.f32 %v4942, 0.0
    %v5020 = vmax.f32 %v4945, 0.0
    %v5021 = vmax.f32 %v4948, 0.0
    %v5022 = vmax.f32 %v4951, 0.0
    %v5023 = vmax.f32 %v4954, 0.0
    %v5024 = vmax.f32 %v4957, 0.0
    %v5025 = vmax.f32 %v4960, 0.0
    %v5026 = vld [vmem:[%s14] sm:$0xff]
    %v5027 = vld [vmem:[%s14 + $0x8] sm:$0xff]
    %v5028 = vld [vmem:[%s14 + $0x10] sm:$0xff]
    %v5029 = vld [vmem:[%s14 + $0x18] sm:$0xff]
    %v5030 = vld [vmem:[%s15] sm:$0x1]
    %v5032 = vperm.slane %v5030, 0
    %v5035 = vsel %vm617, %v4962, 0
    %v5038 = vsel %vm617, %v4963, 0
    %v5041 = vsel %vm617, %v4964, 0
    %v5044 = vsel %vm617, %v4965, 0
    %v5047 = vsel %vm617, %v4966, 0
    %v5050 = vsel %vm617, %v4967, 0
    %v5053 = vsel %vm617, %v4968, 0
    %v5056 = vsel %vm617, %v4969, 0
    %v5059 = vsel %vm617, %v4970, 0
    %v5062 = vsel %vm617, %v4971, 0
    %v5065 = vsel %vm617, %v4972, 0
    %v5068 = vsel %vm617, %v4973, 0
    %v5071 = vsel %vm617, %v4974, 0
    %v5074 = vsel %vm617, %v4975, 0
    %v5077 = vsel %vm617, %v4976, 0
    %v5080 = vsel %vm617, %v4977, 0
    %v5083 = vsel %vm617, %v4978, 0
    %v5086 = vsel %vm617, %v4979, 0
    %v5089 = vsel %vm617, %v4980, 0
    %v5092 = vsel %vm617, %v4981, 0
    %v5095 = vsel %vm617, %v4982, 0
    %v5098 = vsel %vm617, %v4983, 0
    %v5101 = vsel %vm617, %v4984, 0
    %v5104 = vsel %vm617, %v4985, 0
    %v5107 = vsel %vm617, %v4986, 0
    %v5110 = vsel %vm617, %v4987, 0
    %v5113 = vsel %vm617, %v4988, 0
    %v5116 = vsel %vm617, %v4989, 0
    %v5119 = vsel %vm617, %v4990, 0
    %v5122 = vsel %vm617, %v4991, 0
    %v5125 = vsel %vm617, %v4992, 0
    %v5128 = vsel %vm617, %v4993, 0
    %v5131 = vsel %vm617, %v4994, 0
    %v5134 = vsel %vm617, %v4995, 0
    %v5137 = vsel %vm617, %v4996, 0
    %v5140 = vsel %vm617, %v4997, 0
    %v5143 = vsel %vm617, %v4998, 0
    %v5146 = vsel %vm617, %v4999, 0
    %v5149 = vsel %vm617, %v5000, 0
    %v5152 = vsel %vm617, %v5001, 0
    %v5155 = vsel %vm617, %v5002, 0
    %v5158 = vsel %vm617, %v5003, 0
    %v5161 = vsel %vm617, %v5004, 0
    %v5164 = vsel %vm617, %v5005, 0
    %v5167 = vsel %vm617, %v5006, 0
    %v5170 = vsel %vm617, %v5007, 0
    %v5173 = vsel %vm617, %v5008, 0
    %v5176 = vsel %vm617, %v5009, 0
    %v5179 = vsel %vm617, %v5010, 0
    %v5182 = vsel %vm617, %v5011, 0
    %v5185 = vsel %vm617, %v5012, 0
    %v5188 = vsel %vm617, %v5013, 0
    %v5191 = vsel %vm617, %v5014, 0
    %v5194 = vsel %vm617, %v5015, 0
    %v5197 = vsel %vm617, %v5016, 0
    %v5200 = vsel %vm617, %v5017, 0
    %v5203 = vsel %vm617, %v5018, 0
    %v5206 = vsel %vm617, %v5019, 0
    %v5209 = vsel %vm617, %v5020, 0
    %v5212 = vsel %vm617, %v5021, 0
    %v5215 = vsel %vm617, %v5022, 0
    %v5218 = vsel %vm617, %v5023, 0
    %v5221 = vsel %vm617, %v5024, 0
    %v5224 = vsel %vm617, %v5025, 0
    %5226 = vmatpush.msra.mxu0 0.0
    %5227 = vmatpush.msra.mxu0 0.0
    %5228 = vmatpush.msra.mxu0 0.0
    %5229 = vmatpush.msra.mxu0 0.0
    %5230 = vmatpush.msra.mxu0 0.0
    %5231 = vmatpush.msra.mxu0 0.0
    %5232 = vmatpush.msra.mxu0 0.0
    %5233 = vmatpush.msra.mxu0 0.0
    %5234 = vmatpush.msra.mxu0 0.0
    %5235 = vmatpush.msra.mxu0 0.0
    %5236 = vmatpush.msra.mxu0 0.0
    %5237 = vmatpush.msra.mxu0 0.0
    %5238 = vmatpush.msra.mxu0 %v5029
    %5239 = vmatpush.msra.mxu0 %v5028
    %5240 = vmatpush.msra.mxu0 %v5027
    %5241 = vmatpush.msra.mxu0 %v5026
    %5242 = vmatmul.f32.gmra.mxu0 %v5035
    %v5243 = vpop.f32.mrf.mxu0
    %v5244 = vadd.f32 %v5032, %v5243
    %5245 = vmatmul.f32.gmra.mxu0 %v5038
    %v5246 = vpop.f32.mrf.mxu0
    %v5247 = vadd.f32 %v5032, %v5246
    %5248 = vmatmul.f32.gmra.mxu0 %v5041
    %v5249 = vpop.f32.mrf.mxu0
    %v5250 = vadd.f32 %v5032, %v5249
    %5251 = vmatmul.f32.gmra.mxu0 %v5044
    %v5252 = vpop.f32.mrf.mxu0
    %v5253 = vadd.f32 %v5032, %v5252
    %5254 = vmatmul.f32.gmra.mxu0 %v5047
    %v5255 = vpop.f32.mrf.mxu0
    %v5256 = vadd.f32 %v5032, %v5255
    %5257 = vmatmul.f32.gmra.mxu0 %v5050
    %v5258 = vpop.f32.mrf.mxu0
    %v5259 = vadd.f32 %v5032, %v5258
    %5260 = vmatmul.f32.gmra.mxu0 %v5053
    %v5261 = vpop.f32.mrf.mxu0
    %v5262 = vadd.f32 %v5032, %v5261
    %5263 = vmatmul.f32.gmra.mxu0 %v5056
    %v5264 = vpop.f32.mrf.mxu0
    %v5265 = vadd.f32 %v5032, %v5264
    %5266 = vmatmul.f32.gmra.mxu0 %v5059
    %v5267 = vpop.f32.mrf.mxu0
    %v5268 = vadd.f32 %v5032, %v5267
    %5269 = vmatmul.f32.gmra.mxu0 %v5062
    %v5270 = vpop.f32.mrf.mxu0
    %v5271 = vadd.f32 %v5032, %v5270
    %5272 = vmatmul.f32.gmra.mxu0 %v5065
    %v5273 = vpop.f32.mrf.mxu0
    %v5274 = vadd.f32 %v5032, %v5273
    %5275 = vmatmul.f32.gmra.mxu0 %v5068
    %v5276 = vpop.f32.mrf.mxu0
    %v5277 = vadd.f32 %v5032, %v5276
    %5278 = vmatmul.f32.gmra.mxu0 %v5071
    %v5279 = vpop.f32.mrf.mxu0
    %v5280 = vadd.f32 %v5032, %v5279
    %5281 = vmatmul.f32.gmra.mxu0 %v5074
    %v5282 = vpop.f32.mrf.mxu0
    %v5283 = vadd.f32 %v5032, %v5282
    %5284 = vmatmul.f32.gmra.mxu0 %v5077
    %v5285 = vpop.f32.mrf.mxu0
    %v5286 = vadd.f32 %v5032, %v5285
    %5287 = vmatmul.f32.gmra.mxu0 %v5080
    %v5288 = vpop.f32.mrf.mxu0
    %v5289 = vadd.f32 %v5032, %v5288
    %5290 = vmatmul.f32.gmra.mxu0 %v5083
    %v5291 = vpop.f32.mrf.mxu0
    %v5292 = vadd.f32 %v5032, %v5291
    %5293 = vmatmul.f32.gmra.mxu0 %v5086
    %v5294 = vpop.f32.mrf.mxu0
    %v5295 = vadd.f32 %v5032, %v5294
    %5296 = vmatmul.f32.gmra.mxu0 %v5089
    %v5297 = vpop.f32.mrf.mxu0
    %v5298 = vadd.f32 %v5032, %v5297
    %5299 = vmatmul.f32.gmra.mxu0 %v5092
    %v5300 = vpop.f32.mrf.mxu0
    %v5301 = vadd.f32 %v5032, %v5300
    %5302 = vmatmul.f32.gmra.mxu0 %v5095
    %v5303 = vpop.f32.mrf.mxu0
    %v5304 = vadd.f32 %v5032, %v5303
    %5305 = vmatmul.f32.gmra.mxu0 %v5098
    %v5306 = vpop.f32.mrf.mxu0
    %v5307 = vadd.f32 %v5032, %v5306
    %5308 = vmatmul.f32.gmra.mxu0 %v5101
    %v5309 = vpop.f32.mrf.mxu0
    %v5310 = vadd.f32 %v5032, %v5309
    %5311 = vmatmul.f32.gmra.mxu0 %v5104
    %v5312 = vpop.f32.mrf.mxu0
    %v5313 = vadd.f32 %v5032, %v5312
    %5314 = vmatmul.f32.gmra.mxu0 %v5107
    %v5315 = vpop.f32.mrf.mxu0
    %v5316 = vadd.f32 %v5032, %v5315
    %5317 = vmatmul.f32.gmra.mxu0 %v5110
    %v5318 = vpop.f32.mrf.mxu0
    %v5319 = vadd.f32 %v5032, %v5318
    %5320 = vmatmul.f32.gmra.mxu0 %v5113
    %v5321 = vpop.f32.mrf.mxu0
    %v5322 = vadd.f32 %v5032, %v5321
    %5323 = vmatmul.f32.gmra.mxu0 %v5116
    %v5324 = vpop.f32.mrf.mxu0
    %v5325 = vadd.f32 %v5032, %v5324
    %5326 = vmatmul.f32.gmra.mxu0 %v5119
    %v5327 = vpop.f32.mrf.mxu0
    %v5328 = vadd.f32 %v5032, %v5327
    %5329 = vmatmul.f32.gmra.mxu0 %v5122
    %v5330 = vpop.f32.mrf.mxu0
    %v5331 = vadd.f32 %v5032, %v5330
    %5332 = vmatmul.f32.gmra.mxu0 %v5125
    %v5333 = vpop.f32.mrf.mxu0
    %v5334 = vadd.f32 %v5032, %v5333
    %5335 = vmatmul.f32.gmra.mxu0 %v5128
    %v5336 = vpop.f32.mrf.mxu0
    %v5337 = vadd.f32 %v5032, %v5336
    %5338 = vmatmul.f32.gmra.mxu0 %v5131
    %v5339 = vpop.f32.mrf.mxu0
    %v5340 = vadd.f32 %v5032, %v5339
    %5341 = vmatmul.f32.gmra.mxu0 %v5134
    %v5342 = vpop.f32.mrf.mxu0
    %v5343 = vadd.f32 %v5032, %v5342
    %5344 = vmatmul.f32.gmra.mxu0 %v5137
    %v5345 = vpop.f32.mrf.mxu0
    %v5346 = vadd.f32 %v5032, %v5345
    %5347 = vmatmul.f32.gmra.mxu0 %v5140
    %v5348 = vpop.f32.mrf.mxu0
    %v5349 = vadd.f32 %v5032, %v5348
    %5350 = vmatmul.f32.gmra.mxu0 %v5143
    %v5351 = vpop.f32.mrf.mxu0
    %v5352 = vadd.f32 %v5032, %v5351
    %5353 = vmatmul.f32.gmra.mxu0 %v5146
    %v5354 = vpop.f32.mrf.mxu0
    %v5355 = vadd.f32 %v5032, %v5354
    %5356 = vmatmul.f32.gmra.mxu0 %v5149
    %v5357 = vpop.f32.mrf.mxu0
    %v5358 = vadd.f32 %v5032, %v5357
    %5359 = vmatmul.f32.gmra.mxu0 %v5152
    %v5360 = vpop.f32.mrf.mxu0
    %v5361 = vadd.f32 %v5032, %v5360
    %5362 = vmatmul.f32.gmra.mxu0 %v5155
    %v5363 = vpop.f32.mrf.mxu0
    %v5364 = vadd.f32 %v5032, %v5363
    %5365 = vmatmul.f32.gmra.mxu0 %v5158
    %v5366 = vpop.f32.mrf.mxu0
    %v5367 = vadd.f32 %v5032, %v5366
    %5368 = vmatmul.f32.gmra.mxu0 %v5161
    %v5369 = vpop.f32.mrf.mxu0
    %v5370 = vadd.f32 %v5032, %v5369
    %5371 = vmatmul.f32.gmra.mxu0 %v5164
    %v5372 = vpop.f32.mrf.mxu0
    %v5373 = vadd.f32 %v5032, %v5372
    %5374 = vmatmul.f32.gmra.mxu0 %v5167
    %v5375 = vpop.f32.mrf.mxu0
    %v5376 = vadd.f32 %v5032, %v5375
    %5377 = vmatmul.f32.gmra.mxu0 %v5170
    %v5378 = vpop.f32.mrf.mxu0
    %v5379 = vadd.f32 %v5032, %v5378
    %5380 = vmatmul.f32.gmra.mxu0 %v5173
    %v5381 = vpop.f32.mrf.mxu0
    %v5382 = vadd.f32 %v5032, %v5381
    %5383 = vmatmul.f32.gmra.mxu0 %v5176
    %v5384 = vpop.f32.mrf.mxu0
    %v5385 = vadd.f32 %v5032, %v5384
    %5386 = vmatmul.f32.gmra.mxu0 %v5179
    %v5387 = vpop.f32.mrf.mxu0
    %v5388 = vadd.f32 %v5032, %v5387
    %5389 = vmatmul.f32.gmra.mxu0 %v5182
    %v5390 = vpop.f32.mrf.mxu0
    %v5391 = vadd.f32 %v5032, %v5390
    %5392 = vmatmul.f32.gmra.mxu0 %v5185
    %v5393 = vpop.f32.mrf.mxu0
    %v5394 = vadd.f32 %v5032, %v5393
    %5395 = vmatmul.f32.gmra.mxu0 %v5188
    %v5396 = vpop.f32.mrf.mxu0
    %v5397 = vadd.f32 %v5032, %v5396
    %5398 = vmatmul.f32.gmra.mxu0 %v5191
    %v5399 = vpop.f32.mrf.mxu0
    %v5400 = vadd.f32 %v5032, %v5399
    %5401 = vmatmul.f32.gmra.mxu0 %v5194
    %v5402 = vpop.f32.mrf.mxu0
    %v5403 = vadd.f32 %v5032, %v5402
    %5404 = vmatmul.f32.gmra.mxu0 %v5197
    %v5405 = vpop.f32.mrf.mxu0
    %v5406 = vadd.f32 %v5032, %v5405
    %5407 = vmatmul.f32.gmra.mxu0 %v5200
    %v5408 = vpop.f32.mrf.mxu0
    %v5409 = vadd.f32 %v5032, %v5408
    %5410 = vmatmul.f32.gmra.mxu0 %v5203
    %v5411 = vpop.f32.mrf.mxu0
    %v5412 = vadd.f32 %v5032, %v5411
    %5413 = vmatmul.f32.gmra.mxu0 %v5206
    %v5414 = vpop.f32.mrf.mxu0
    %v5415 = vadd.f32 %v5032, %v5414
    %5416 = vmatmul.f32.gmra.mxu0 %v5209
    %v5417 = vpop.f32.mrf.mxu0
    %v5418 = vadd.f32 %v5032, %v5417
    %5419 = vmatmul.f32.gmra.mxu0 %v5212
    %v5420 = vpop.f32.mrf.mxu0
    %v5421 = vadd.f32 %v5032, %v5420
    %5422 = vmatmul.f32.gmra.mxu0 %v5215
    %v5423 = vpop.f32.mrf.mxu0
    %v5424 = vadd.f32 %v5032, %v5423
    %5425 = vmatmul.f32.gmra.mxu0 %v5218
    %v5426 = vpop.f32.mrf.mxu0
    %v5427 = vadd.f32 %v5032, %v5426
    %5428 = vmatmul.f32.gmra.mxu0 %v5221
    %v5429 = vpop.f32.mrf.mxu0
    %v5430 = vadd.f32 %v5032, %v5429
    %5431 = vmatmul.f32.gmra.mxu0 %v5224
    %v5432 = vpop.f32.mrf.mxu0
    %v5433 = vadd.f32 %v5032, %v5432
    %5434 = vdwg.mxu0
    %v5435 = vmax.f32 %v5244, 0.0
    %v5436 = vmax.f32 %v5247, 0.0
    %v5437 = vmax.f32 %v5250, 0.0
    %v5438 = vmax.f32 %v5253, 0.0
    %v5439 = vmax.f32 %v5256, 0.0
    %v5440 = vmax.f32 %v5259, 0.0
    %v5441 = vmax.f32 %v5262, 0.0
    %v5442 = vmax.f32 %v5265, 0.0
    %v5443 = vmax.f32 %v5268, 0.0
    %v5444 = vmax.f32 %v5271, 0.0
    %v5445 = vmax.f32 %v5274, 0.0
    %v5446 = vmax.f32 %v5277, 0.0
    %v5447 = vmax.f32 %v5280, 0.0
    %v5448 = vmax.f32 %v5283, 0.0
    %v5449 = vmax.f32 %v5286, 0.0
    %v5450 = vmax.f32 %v5289, 0.0
    %v5451 = vmax.f32 %v5292, 0.0
    %v5452 = vmax.f32 %v5295, 0.0
    %v5453 = vmax.f32 %v5298, 0.0
    %v5454 = vmax.f32 %v5301, 0.0
    %v5455 = vmax.f32 %v5304, 0.0
    %v5456 = vmax.f32 %v5307, 0.0
    %v5457 = vmax.f32 %v5310, 0.0
    %v5458 = vmax.f32 %v5313, 0.0
    %v5459 = vmax.f32 %v5316, 0.0
    %v5460 = vmax.f32 %v5319, 0.0
    %v5461 = vmax.f32 %v5322, 0.0
    %v5462 = vmax.f32 %v5325, 0.0
    %v5463 = vmax.f32 %v5328, 0.0
    %v5464 = vmax.f32 %v5331, 0.0
    %v5465 = vmax.f32 %v5334, 0.0
    %v5466 = vmax.f32 %v5337, 0.0
    %v5467 = vmax.f32 %v5340, 0.0
    %v5468 = vmax.f32 %v5343, 0.0
    %v5469 = vmax.f32 %v5346, 0.0
    %v5470 = vmax.f32 %v5349, 0.0
    %v5471 = vmax.f32 %v5352, 0.0
    %v5472 = vmax.f32 %v5355, 0.0
    %v5473 = vmax.f32 %v5358, 0.0
    %v5474 = vmax.f32 %v5361, 0.0
    %v5475 = vmax.f32 %v5364, 0.0
    %v5476 = vmax.f32 %v5367, 0.0
    %v5477 = vmax.f32 %v5370, 0.0
    %v5478 = vmax.f32 %v5373, 0.0
    %v5479 = vmax.f32 %v5376, 0.0
    %v5480 = vmax.f32 %v5379, 0.0
    %v5481 = vmax.f32 %v5382, 0.0
    %v5482 = vmax.f32 %v5385, 0.0
    %v5483 = vmax.f32 %v5388, 0.0
    %v5484 = vmax.f32 %v5391, 0.0
    %v5485 = vmax.f32 %v5394, 0.0
    %v5486 = vmax.f32 %v5397, 0.0
    %v5487 = vmax.f32 %v5400, 0.0
    %v5488 = vmax.f32 %v5403, 0.0
    %v5489 = vmax.f32 %v5406, 0.0
    %v5490 = vmax.f32 %v5409, 0.0
    %v5491 = vmax.f32 %v5412, 0.0
    %v5492 = vmax.f32 %v5415, 0.0
    %v5493 = vmax.f32 %v5418, 0.0
    %v5494 = vmax.f32 %v5421, 0.0
    %v5495 = vmax.f32 %v5424, 0.0
    %v5496 = vmax.f32 %v5427, 0.0
    %v5497 = vmax.f32 %v5430, 0.0
    %v5498 = vmax.f32 %v5433, 0.0
    %v5499 = vadd.f32 %v4962, %v5435
    %v5500 = vadd.f32 %v4963, %v5436
    %v5501 = vadd.f32 %v4964, %v5437
    %v5502 = vadd.f32 %v4965, %v5438
    %v5503 = vadd.f32 %v4966, %v5439
    %v5504 = vadd.f32 %v4967, %v5440
    %v5505 = vadd.f32 %v4968, %v5441
    %v5506 = vadd.f32 %v4969, %v5442
    %v5507 = vadd.f32 %v4970, %v5443
    %v5508 = vadd.f32 %v4971, %v5444
    %v5509 = vadd.f32 %v4972, %v5445
    %v5510 = vadd.f32 %v4973, %v5446
    %v5511 = vadd.f32 %v4974, %v5447
    %v5512 = vadd.f32 %v4975, %v5448
    %v5513 = vadd.f32 %v4976, %v5449
    %v5514 = vadd.f32 %v4977, %v5450
    %v5515 = vadd.f32 %v4978, %v5451
    %v5516 = vadd.f32 %v4979, %v5452
    %v5517 = vadd.f32 %v4980, %v5453
    %v5518 = vadd.f32 %v4981, %v5454
    %v5519 = vadd.f32 %v4982, %v5455
    %v5520 = vadd.f32 %v4983, %v5456
    %v5521 = vadd.f32 %v4984, %v5457
    %v5522 = vadd.f32 %v4985, %v5458
    %v5523 = vadd.f32 %v4986, %v5459
    %v5524 = vadd.f32 %v4987, %v5460
    %v5525 = vadd.f32 %v4988, %v5461
    %v5526 = vadd.f32 %v4989, %v5462
    %v5527 = vadd.f32 %v4990, %v5463
    %v5528 = vadd.f32 %v4991, %v5464
    %v5529 = vadd.f32 %v4992, %v5465
    %v5530 = vadd.f32 %v4993, %v5466
    %v5531 = vadd.f32 %v4994, %v5467
    %v5532 = vadd.f32 %v4995, %v5468
    %v5533 = vadd.f32 %v4996, %v5469
    %v5534 = vadd.f32 %v4997, %v5470
    %v5535 = vadd.f32 %v4998, %v5471
    %v5536 = vadd.f32 %v4999, %v5472
    %v5537 = vadd.f32 %v5000, %v5473
    %v5538 = vadd.f32 %v5001, %v5474
    %v5539 = vadd.f32 %v5002, %v5475
    %v5540 = vadd.f32 %v5003, %v5476
    %v5541 = vadd.f32 %v5004, %v5477
    %v5542 = vadd.f32 %v5005, %v5478
    %v5543 = vadd.f32 %v5006, %v5479
    %v5544 = vadd.f32 %v5007, %v5480
    %v5545 = vadd.f32 %v5008, %v5481
    %v5546 = vadd.f32 %v5009, %v5482
    %v5547 = vadd.f32 %v5010, %v5483
    %v5548 = vadd.f32 %v5011, %v5484
    %v5549 = vadd.f32 %v5012, %v5485
    %v5550 = vadd.f32 %v5013, %v5486
    %v5551 = vadd.f32 %v5014, %v5487
    %v5552 = vadd.f32 %v5015, %v5488
    %v5553 = vadd.f32 %v5016, %v5489
    %v5554 = vadd.f32 %v5017, %v5490
    %v5555 = vadd.f32 %v5018, %v5491
    %v5556 = vadd.f32 %v5019, %v5492
    %v5557 = vadd.f32 %v5020, %v5493
    %v5558 = vadd.f32 %v5021, %v5494
    %v5559 = vadd.f32 %v5022, %v5495
    %v5560 = vadd.f32 %v5023, %v5496
    %v5561 = vadd.f32 %v5024, %v5497
    %v5562 = vadd.f32 %v5025, %v5498
    %v5563 = vld [vmem:[%s16] sm:$0xff]
    %v5564 = vld [vmem:[%s16 + $0x8] sm:$0xff]
    %v5565 = vld [vmem:[%s16 + $0x10] sm:$0xff]
    %v5566 = vld [vmem:[%s16 + $0x18] sm:$0xff]
    %v5567 = vld [vmem:[%s17] sm:$0x1]
    %v5569 = vperm.slane %v5567, 0
    %v5572 = vsel %vm617, %v5499, 0
    %v5575 = vsel %vm617, %v5500, 0
    %v5578 = vsel %vm617, %v5501, 0
    %v5581 = vsel %vm617, %v5502, 0
    %v5584 = vsel %vm617, %v5503, 0
    %v5587 = vsel %vm617, %v5504, 0
    %v5590 = vsel %vm617, %v5505, 0
    %v5593 = vsel %vm617, %v5506, 0
    %v5596 = vsel %vm617, %v5507, 0
    %v5599 = vsel %vm617, %v5508, 0
    %v5602 = vsel %vm617, %v5509, 0
    %v5605 = vsel %vm617, %v5510, 0
    %v5608 = vsel %vm617, %v5511, 0
    %v5611 = vsel %vm617, %v5512, 0
    %v5614 = vsel %vm617, %v5513, 0
    %v5617 = vsel %vm617, %v5514, 0
    %v5620 = vsel %vm617, %v5515, 0
    %v5623 = vsel %vm617, %v5516, 0
    %v5626 = vsel %vm617, %v5517, 0
    %v5629 = vsel %vm617, %v5518, 0
    %v5632 = vsel %vm617, %v5519, 0
    %v5635 = vsel %vm617, %v5520, 0
    %v5638 = vsel %vm617, %v5521, 0
    %v5641 = vsel %vm617, %v5522, 0
    %v5644 = vsel %vm617, %v5523, 0
    %v5647 = vsel %vm617, %v5524, 0
    %v5650 = vsel %vm617, %v5525, 0
    %v5653 = vsel %vm617, %v5526, 0
    %v5656 = vsel %vm617, %v5527, 0
    %v5659 = vsel %vm617, %v5528, 0
    %v5662 = vsel %vm617, %v5529, 0
    %v5665 = vsel %vm617, %v5530, 0
    %v5668 = vsel %vm617, %v5531, 0
    %v5671 = vsel %vm617, %v5532, 0
    %v5674 = vsel %vm617, %v5533, 0
    %v5677 = vsel %vm617, %v5534, 0
    %v5680 = vsel %vm617, %v5535, 0
    %v5683 = vsel %vm617, %v5536, 0
    %v5686 = vsel %vm617, %v5537, 0
    %v5689 = vsel %vm617, %v5538, 0
    %v5692 = vsel %vm617, %v5539, 0
    %v5695 = vsel %vm617, %v5540, 0
    %v5698 = vsel %vm617, %v5541, 0
    %v5701 = vsel %vm617, %v5542, 0
    %v5704 = vsel %vm617, %v5543, 0
    %v5707 = vsel %vm617, %v5544, 0
    %v5710 = vsel %vm617, %v5545, 0
    %v5713 = vsel %vm617, %v5546, 0
    %v5716 = vsel %vm617, %v5547, 0
    %v5719 = vsel %vm617, %v5548, 0
    %v5722 = vsel %vm617, %v5549, 0
    %v5725 = vsel %vm617, %v5550, 0
    %v5728 = vsel %vm617, %v5551, 0
    %v5731 = vsel %vm617, %v5552, 0
    %v5734 = vsel %vm617, %v5553, 0
    %v5737 = vsel %vm617, %v5554, 0
    %v5740 = vsel %vm617, %v5555, 0
    %v5743 = vsel %vm617, %v5556, 0
    %v5746 = vsel %vm617, %v5557, 0
    %v5749 = vsel %vm617, %v5558, 0
    %v5752 = vsel %vm617, %v5559, 0
    %v5755 = vsel %vm617, %v5560, 0
    %v5758 = vsel %vm617, %v5561, 0
    %v5761 = vsel %vm617, %v5562, 0
    %5763 = vmatpush.msra.mxu0 0.0
    %5764 = vmatpush.msra.mxu0 0.0
    %5765 = vmatpush.msra.mxu0 0.0
    %5766 = vmatpush.msra.mxu0 0.0
    %5767 = vmatpush.msra.mxu0 0.0
    %5768 = vmatpush.msra.mxu0 0.0
    %5769 = vmatpush.msra.mxu0 0.0
    %5770 = vmatpush.msra.mxu0 0.0
    %5771 = vmatpush.msra.mxu0 0.0
    %5772 = vmatpush.msra.mxu0 0.0
    %5773 = vmatpush.msra.mxu0 0.0
    %5774 = vmatpush.msra.mxu0 0.0
    %5775 = vmatpush.msra.mxu0 %v5566
    %5776 = vmatpush.msra.mxu0 %v5565
    %5777 = vmatpush.msra.mxu0 %v5564
    %5778 = vmatpush.msra.mxu0 %v5563
    %5779 = vmatmul.f32.gmra.mxu0 %v5572
    %v5780 = vpop.f32.mrf.mxu0
    %v5781 = vadd.f32 %v5569, %v5780
    %5782 = vmatmul.f32.gmra.mxu0 %v5575
    %v5783 = vpop.f32.mrf.mxu0
    %v5784 = vadd.f32 %v5569, %v5783
    %5785 = vmatmul.f32.gmra.mxu0 %v5578
    %v5786 = vpop.f32.mrf.mxu0
    %v5787 = vadd.f32 %v5569, %v5786
    %5788 = vmatmul.f32.gmra.mxu0 %v5581
    %v5789 = vpop.f32.mrf.mxu0
    %v5790 = vadd.f32 %v5569, %v5789
    %5791 = vmatmul.f32.gmra.mxu0 %v5584
    %v5792 = vpop.f32.mrf.mxu0
    %v5793 = vadd.f32 %v5569, %v5792
    %5794 = vmatmul.f32.gmra.mxu0 %v5587
    %v5795 = vpop.f32.mrf.mxu0
    %v5796 = vadd.f32 %v5569, %v5795
    %5797 = vmatmul.f32.gmra.mxu0 %v5590
    %v5798 = vpop.f32.mrf.mxu0
    %v5799 = vadd.f32 %v5569, %v5798
    %5800 = vmatmul.f32.gmra.mxu0 %v5593
    %v5801 = vpop.f32.mrf.mxu0
    %v5802 = vadd.f32 %v5569, %v5801
    %5803 = vmatmul.f32.gmra.mxu0 %v5596
    %v5804 = vpop.f32.mrf.mxu0
    %v5805 = vadd.f32 %v5569, %v5804
    %5806 = vmatmul.f32.gmra.mxu0 %v5599
    %v5807 = vpop.f32.mrf.mxu0
    %v5808 = vadd.f32 %v5569, %v5807
    %5809 = vmatmul.f32.gmra.mxu0 %v5602
    %v5810 = vpop.f32.mrf.mxu0
    %v5811 = vadd.f32 %v5569, %v5810
    %5812 = vmatmul.f32.gmra.mxu0 %v5605
    %v5813 = vpop.f32.mrf.mxu0
    %v5814 = vadd.f32 %v5569, %v5813
    %5815 = vmatmul.f32.gmra.mxu0 %v5608
    %v5816 = vpop.f32.mrf.mxu0
    %v5817 = vadd.f32 %v5569, %v5816
    %5818 = vmatmul.f32.gmra.mxu0 %v5611
    %v5819 = vpop.f32.mrf.mxu0
    %v5820 = vadd.f32 %v5569, %v5819
    %5821 = vmatmul.f32.gmra.mxu0 %v5614
    %v5822 = vpop.f32.mrf.mxu0
    %v5823 = vadd.f32 %v5569, %v5822
    %5824 = vmatmul.f32.gmra.mxu0 %v5617
    %v5825 = vpop.f32.mrf.mxu0
    %v5826 = vadd.f32 %v5569, %v5825
    %5827 = vmatmul.f32.gmra.mxu0 %v5620
    %v5828 = vpop.f32.mrf.mxu0
    %v5829 = vadd.f32 %v5569, %v5828
    %5830 = vmatmul.f32.gmra.mxu0 %v5623
    %v5831 = vpop.f32.mrf.mxu0
    %v5832 = vadd.f32 %v5569, %v5831
    %5833 = vmatmul.f32.gmra.mxu0 %v5626
    %v5834 = vpop.f32.mrf.mxu0
    %v5835 = vadd.f32 %v5569, %v5834
    %5836 = vmatmul.f32.gmra.mxu0 %v5629
    %v5837 = vpop.f32.mrf.mxu0
    %v5838 = vadd.f32 %v5569, %v5837
    %5839 = vmatmul.f32.gmra.mxu0 %v5632
    %v5840 = vpop.f32.mrf.mxu0
    %v5841 = vadd.f32 %v5569, %v5840
    %5842 = vmatmul.f32.gmra.mxu0 %v5635
    %v5843 = vpop.f32.mrf.mxu0
    %v5844 = vadd.f32 %v5569, %v5843
    %5845 = vmatmul.f32.gmra.mxu0 %v5638
    %v5846 = vpop.f32.mrf.mxu0
    %v5847 = vadd.f32 %v5569, %v5846
    %5848 = vmatmul.f32.gmra.mxu0 %v5641
    %v5849 = vpop.f32.mrf.mxu0
    %v5850 = vadd.f32 %v5569, %v5849
    %5851 = vmatmul.f32.gmra.mxu0 %v5644
    %v5852 = vpop.f32.mrf.mxu0
    %v5853 = vadd.f32 %v5569, %v5852
    %5854 = vmatmul.f32.gmra.mxu0 %v5647
    %v5855 = vpop.f32.mrf.mxu0
    %v5856 = vadd.f32 %v5569, %v5855
    %5857 = vmatmul.f32.gmra.mxu0 %v5650
    %v5858 = vpop.f32.mrf.mxu0
    %v5859 = vadd.f32 %v5569, %v5858
    %5860 = vmatmul.f32.gmra.mxu0 %v5653
    %v5861 = vpop.f32.mrf.mxu0
    %v5862 = vadd.f32 %v5569, %v5861
    %5863 = vmatmul.f32.gmra.mxu0 %v5656
    %v5864 = vpop.f32.mrf.mxu0
    %v5865 = vadd.f32 %v5569, %v5864
    %5866 = vmatmul.f32.gmra.mxu0 %v5659
    %v5867 = vpop.f32.mrf.mxu0
    %v5868 = vadd.f32 %v5569, %v5867
    %5869 = vmatmul.f32.gmra.mxu0 %v5662
    %v5870 = vpop.f32.mrf.mxu0
    %v5871 = vadd.f32 %v5569, %v5870
    %5872 = vmatmul.f32.gmra.mxu0 %v5665
    %v5873 = vpop.f32.mrf.mxu0
    %v5874 = vadd.f32 %v5569, %v5873
    %5875 = vmatmul.f32.gmra.mxu0 %v5668
    %v5876 = vpop.f32.mrf.mxu0
    %v5877 = vadd.f32 %v5569, %v5876
    %5878 = vmatmul.f32.gmra.mxu0 %v5671
    %v5879 = vpop.f32.mrf.mxu0
    %v5880 = vadd.f32 %v5569, %v5879
    %5881 = vmatmul.f32.gmra.mxu0 %v5674
    %v5882 = vpop.f32.mrf.mxu0
    %v5883 = vadd.f32 %v5569, %v5882
    %5884 = vmatmul.f32.gmra.mxu0 %v5677
    %v5885 = vpop.f32.mrf.mxu0
    %v5886 = vadd.f32 %v5569, %v5885
    %5887 = vmatmul.f32.gmra.mxu0 %v5680
    %v5888 = vpop.f32.mrf.mxu0
    %v5889 = vadd.f32 %v5569, %v5888
    %5890 = vmatmul.f32.gmra.mxu0 %v5683
    %v5891 = vpop.f32.mrf.mxu0
    %v5892 = vadd.f32 %v5569, %v5891
    %5893 = vmatmul.f32.gmra.mxu0 %v5686
    %v5894 = vpop.f32.mrf.mxu0
    %v5895 = vadd.f32 %v5569, %v5894
    %5896 = vmatmul.f32.gmra.mxu0 %v5689
    %v5897 = vpop.f32.mrf.mxu0
    %v5898 = vadd.f32 %v5569, %v5897
    %5899 = vmatmul.f32.gmra.mxu0 %v5692
    %v5900 = vpop.f32.mrf.mxu0
    %v5901 = vadd.f32 %v5569, %v5900
    %5902 = vmatmul.f32.gmra.mxu0 %v5695
    %v5903 = vpop.f32.mrf.mxu0
    %v5904 = vadd.f32 %v5569, %v5903
    %5905 = vmatmul.f32.gmra.mxu0 %v5698
    %v5906 = vpop.f32.mrf.mxu0
    %v5907 = vadd.f32 %v5569, %v5906
    %5908 = vmatmul.f32.gmra.mxu0 %v5701
    %v5909 = vpop.f32.mrf.mxu0
    %v5910 = vadd.f32 %v5569, %v5909
    %5911 = vmatmul.f32.gmra.mxu0 %v5704
    %v5912 = vpop.f32.mrf.mxu0
    %v5913 = vadd.f32 %v5569, %v5912
    %5914 = vmatmul.f32.gmra.mxu0 %v5707
    %v5915 = vpop.f32.mrf.mxu0
    %v5916 = vadd.f32 %v5569, %v5915
    %5917 = vmatmul.f32.gmra.mxu0 %v5710
    %v5918 = vpop.f32.mrf.mxu0
    %v5919 = vadd.f32 %v5569, %v5918
    %5920 = vmatmul.f32.gmra.mxu0 %v5713
    %v5921 = vpop.f32.mrf.mxu0
    %v5922 = vadd.f32 %v5569, %v5921
    %5923 = vmatmul.f32.gmra.mxu0 %v5716
    %v5924 = vpop.f32.mrf.mxu0
    %v5925 = vadd.f32 %v5569, %v5924
    %5926 = vmatmul.f32.gmra.mxu0 %v5719
    %v5927 = vpop.f32.mrf.mxu0
    %v5928 = vadd.f32 %v5569, %v5927
    %5929 = vmatmul.f32.gmra.mxu0 %v5722
    %v5930 = vpop.f32.mrf.mxu0
    %v5931 = vadd.f32 %v5569, %v5930
    %5932 = vmatmul.f32.gmra.mxu0 %v5725
    %v5933 = vpop.f32.mrf.mxu0
    %v5934 = vadd.f32 %v5569, %v5933
    %5935 = vmatmul.f32.gmra.mxu0 %v5728
    %v5936 = vpop.f32.mrf.mxu0
    %v5937 = vadd.f32 %v5569, %v5936
    %5938 = vmatmul.f32.gmra.mxu0 %v5731
    %v5939 = vpop.f32.mrf.mxu0
    %v5940 = vadd.f32 %v5569, %v5939
    %5941 = vmatmul.f32.gmra.mxu0 %v5734
    %v5942 = vpop.f32.mrf.mxu0
    %v5943 = vadd.f32 %v5569, %v5942
    %5944 = vmatmul.f32.gmra.mxu0 %v5737
    %v5945 = vpop.f32.mrf.mxu0
    %v5946 = vadd.f32 %v5569, %v5945
    %5947 = vmatmul.f32.gmra.mxu0 %v5740
    %v5948 = vpop.f32.mrf.mxu0
    %v5949 = vadd.f32 %v5569, %v5948
    %5950 = vmatmul.f32.gmra.mxu0 %v5743
    %v5951 = vpop.f32.mrf.mxu0
    %v5952 = vadd.f32 %v5569, %v5951
    %5953 = vmatmul.f32.gmra.mxu0 %v5746
    %v5954 = vpop.f32.mrf.mxu0
    %v5955 = vadd.f32 %v5569, %v5954
    %5956 = vmatmul.f32.gmra.mxu0 %v5749
    %v5957 = vpop.f32.mrf.mxu0
    %v5958 = vadd.f32 %v5569, %v5957
    %5959 = vmatmul.f32.gmra.mxu0 %v5752
    %v5960 = vpop.f32.mrf.mxu0
    %v5961 = vadd.f32 %v5569, %v5960
    %5962 = vmatmul.f32.gmra.mxu0 %v5755
    %v5963 = vpop.f32.mrf.mxu0
    %v5964 = vadd.f32 %v5569, %v5963
    %5965 = vmatmul.f32.gmra.mxu0 %v5758
    %v5966 = vpop.f32.mrf.mxu0
    %v5967 = vadd.f32 %v5569, %v5966
    %5968 = vmatmul.f32.gmra.mxu0 %v5761
    %v5969 = vpop.f32.mrf.mxu0
    %v5970 = vadd.f32 %v5569, %v5969
    %5971 = vdwg.mxu0
    %v5972 = vmax.f32 %v5781, 0.0
    %v5973 = vmax.f32 %v5784, 0.0
    %v5974 = vmax.f32 %v5787, 0.0
    %v5975 = vmax.f32 %v5790, 0.0
    %v5976 = vmax.f32 %v5793, 0.0
    %v5977 = vmax.f32 %v5796, 0.0
    %v5978 = vmax.f32 %v5799, 0.0
    %v5979 = vmax.f32 %v5802, 0.0
    %v5980 = vmax.f32 %v5805, 0.0
    %v5981 = vmax.f32 %v5808, 0.0
    %v5982 = vmax.f32 %v5811, 0.0
    %v5983 = vmax.f32 %v5814, 0.0
    %v5984 = vmax.f32 %v5817, 0.0
    %v5985 = vmax.f32 %v5820, 0.0
    %v5986 = vmax.f32 %v5823, 0.0
    %v5987 = vmax.f32 %v5826, 0.0
    %v5988 = vmax.f32 %v5829, 0.0
    %v5989 = vmax.f32 %v5832, 0.0
    %v5990 = vmax.f32 %v5835, 0.0
    %v5991 = vmax.f32 %v5838, 0.0
    %v5992 = vmax.f32 %v5841, 0.0
    %v5993 = vmax.f32 %v5844, 0.0
    %v5994 = vmax.f32 %v5847, 0.0
    %v5995 = vmax.f32 %v5850, 0.0
    %v5996 = vmax.f32 %v5853, 0.0
    %v5997 = vmax.f32 %v5856, 0.0
    %v5998 = vmax.f32 %v5859, 0.0
    %v5999 = vmax.f32 %v5862, 0.0
    %v6000 = vmax.f32 %v5865, 0.0
    %v6001 = vmax.f32 %v5868, 0.0
    %v6002 = vmax.f32 %v5871, 0.0
    %v6003 = vmax.f32 %v5874, 0.0
    %v6004 = vmax.f32 %v5877, 0.0
    %v6005 = vmax.f32 %v5880, 0.0
    %v6006 = vmax.f32 %v5883, 0.0
    %v6007 = vmax.f32 %v5886, 0.0
    %v6008 = vmax.f32 %v5889, 0.0
    %v6009 = vmax.f32 %v5892, 0.0
    %v6010 = vmax.f32 %v5895, 0.0
    %v6011 = vmax.f32 %v5898, 0.0
    %v6012 = vmax.f32 %v5901, 0.0
    %v6013 = vmax.f32 %v5904, 0.0
    %v6014 = vmax.f32 %v5907, 0.0
    %v6015 = vmax.f32 %v5910, 0.0
    %v6016 = vmax.f32 %v5913, 0.0
    %v6017 = vmax.f32 %v5916, 0.0
    %v6018 = vmax.f32 %v5919, 0.0
    %v6019 = vmax.f32 %v5922, 0.0
    %v6020 = vmax.f32 %v5925, 0.0
    %v6021 = vmax.f32 %v5928, 0.0
    %v6022 = vmax.f32 %v5931, 0.0
    %v6023 = vmax.f32 %v5934, 0.0
    %v6024 = vmax.f32 %v5937, 0.0
    %v6025 = vmax.f32 %v5940, 0.0
    %v6026 = vmax.f32 %v5943, 0.0
    %v6027 = vmax.f32 %v5946, 0.0
    %v6028 = vmax.f32 %v5949, 0.0
    %v6029 = vmax.f32 %v5952, 0.0
    %v6030 = vmax.f32 %v5955, 0.0
    %v6031 = vmax.f32 %v5958, 0.0
    %v6032 = vmax.f32 %v5961, 0.0
    %v6033 = vmax.f32 %v5964, 0.0
    %v6034 = vmax.f32 %v5967, 0.0
    %v6035 = vmax.f32 %v5970, 0.0
    %v6036 = vadd.f32 %v5499, %v5972
    %v6037 = vadd.f32 %v5500, %v5973
    %v6038 = vadd.f32 %v5501, %v5974
    %v6039 = vadd.f32 %v5502, %v5975
    %v6040 = vadd.f32 %v5503, %v5976
    %v6041 = vadd.f32 %v5504, %v5977
    %v6042 = vadd.f32 %v5505, %v5978
    %v6043 = vadd.f32 %v5506, %v5979
    %v6044 = vadd.f32 %v5507, %v5980
    %v6045 = vadd.f32 %v5508, %v5981
    %v6046 = vadd.f32 %v5509, %v5982
    %v6047 = vadd.f32 %v5510, %v5983
    %v6048 = vadd.f32 %v5511, %v5984
    %v6049 = vadd.f32 %v5512, %v5985
    %v6050 = vadd.f32 %v5513, %v5986
    %v6051 = vadd.f32 %v5514, %v5987
    %v6052 = vadd.f32 %v5515, %v5988
    %v6053 = vadd.f32 %v5516, %v5989
    %v6054 = vadd.f32 %v5517, %v5990
    %v6055 = vadd.f32 %v5518, %v5991
    %v6056 = vadd.f32 %v5519, %v5992
    %v6057 = vadd.f32 %v5520, %v5993
    %v6058 = vadd.f32 %v5521, %v5994
    %v6059 = vadd.f32 %v5522, %v5995
    %v6060 = vadd.f32 %v5523, %v5996
    %v6061 = vadd.f32 %v5524, %v5997
    %v6062 = vadd.f32 %v5525, %v5998
    %v6063 = vadd.f32 %v5526, %v5999
    %v6064 = vadd.f32 %v5527, %v6000
    %v6065 = vadd.f32 %v5528, %v6001
    %v6066 = vadd.f32 %v5529, %v6002
    %v6067 = vadd.f32 %v5530, %v6003
    %v6068 = vadd.f32 %v5531, %v6004
    %v6069 = vadd.f32 %v5532, %v6005
    %v6070 = vadd.f32 %v5533, %v6006
    %v6071 = vadd.f32 %v5534, %v6007
    %v6072 = vadd.f32 %v5535, %v6008
    %v6073 = vadd.f32 %v5536, %v6009
    %v6074 = vadd.f32 %v5537, %v6010
    %v6075 = vadd.f32 %v5538, %v6011
    %v6076 = vadd.f32 %v5539, %v6012
    %v6077 = vadd.f32 %v5540, %v6013
    %v6078 = vadd.f32 %v5541, %v6014
    %v6079 = vadd.f32 %v5542, %v6015
    %v6080 = vadd.f32 %v5543, %v6016
    %v6081 = vadd.f32 %v5544, %v6017
    %v6082 = vadd.f32 %v5545, %v6018
    %v6083 = vadd.f32 %v5546, %v6019
    %v6084 = vadd.f32 %v5547, %v6020
    %v6085 = vadd.f32 %v5548, %v6021
    %v6086 = vadd.f32 %v5549, %v6022
    %v6087 = vadd.f32 %v5550, %v6023
    %v6088 = vadd.f32 %v5551, %v6024
    %v6089 = vadd.f32 %v5552, %v6025
    %v6090 = vadd.f32 %v5553, %v6026
    %v6091 = vadd.f32 %v5554, %v6027
    %v6092 = vadd.f32 %v5555, %v6028
    %v6093 = vadd.f32 %v5556, %v6029
    %v6094 = vadd.f32 %v5557, %v6030
    %v6095 = vadd.f32 %v5558, %v6031
    %v6096 = vadd.f32 %v5559, %v6032
    %v6097 = vadd.f32 %v5560, %v6033
    %v6098 = vadd.f32 %v5561, %v6034
    %v6099 = vadd.f32 %v5562, %v6035
    %v6100 = vld [vmem:[%s18] sm:$0xff]
    %v6101 = vld [vmem:[%s18 + $0x8] sm:$0xff]
    %v6102 = vld [vmem:[%s18 + $0x10] sm:$0xff]
    %v6103 = vld [vmem:[%s18 + $0x18] sm:$0xff]
    %v6104 = vld [vmem:[%s19] sm:$0x1]
    %v6106 = vperm.slane %v6104, 0
    %v6109 = vsel %vm617, %v6036, 0
    %v6112 = vsel %vm617, %v6037, 0
    %v6115 = vsel %vm617, %v6038, 0
    %v6118 = vsel %vm617, %v6039, 0
    %v6121 = vsel %vm617, %v6040, 0
    %v6124 = vsel %vm617, %v6041, 0
    %v6127 = vsel %vm617, %v6042, 0
    %v6130 = vsel %vm617, %v6043, 0
    %v6133 = vsel %vm617, %v6044, 0
    %v6136 = vsel %vm617, %v6045, 0
    %v6139 = vsel %vm617, %v6046, 0
    %v6142 = vsel %vm617, %v6047, 0
    %v6145 = vsel %vm617, %v6048, 0
    %v6148 = vsel %vm617, %v6049, 0
    %v6151 = vsel %vm617, %v6050, 0
    %v6154 = vsel %vm617, %v6051, 0
    %v6157 = vsel %vm617, %v6052, 0
    %v6160 = vsel %vm617, %v6053, 0
    %v6163 = vsel %vm617, %v6054, 0
    %v6166 = vsel %vm617, %v6055, 0
    %v6169 = vsel %vm617, %v6056, 0
    %v6172 = vsel %vm617, %v6057, 0
    %v6175 = vsel %vm617, %v6058, 0
    %v6178 = vsel %vm617, %v6059, 0
    %v6181 = vsel %vm617, %v6060, 0
    %v6184 = vsel %vm617, %v6061, 0
    %v6187 = vsel %vm617, %v6062, 0
    %v6190 = vsel %vm617, %v6063, 0
    %v6193 = vsel %vm617, %v6064, 0
    %v6196 = vsel %vm617, %v6065, 0
    %v6199 = vsel %vm617, %v6066, 0
    %v6202 = vsel %vm617, %v6067, 0
    %v6205 = vsel %vm617, %v6068, 0
    %v6208 = vsel %vm617, %v6069, 0
    %v6211 = vsel %vm617, %v6070, 0
    %v6214 = vsel %vm617, %v6071, 0
    %v6217 = vsel %vm617, %v6072, 0
    %v6220 = vsel %vm617, %v6073, 0
    %v6223 = vsel %vm617, %v6074, 0
    %v6226 = vsel %vm617, %v6075, 0
    %v6229 = vsel %vm617, %v6076, 0
    %v6232 = vsel %vm617, %v6077, 0
    %v6235 = vsel %vm617, %v6078, 0
    %v6238 = vsel %vm617, %v6079, 0
    %v6241 = vsel %vm617, %v6080, 0
    %v6244 = vsel %vm617, %v6081, 0
    %v6247 = vsel %vm617, %v6082, 0
    %v6250 = vsel %vm617, %v6083, 0
    %v6253 = vsel %vm617, %v6084, 0
    %v6256 = vsel %vm617, %v6085, 0
    %v6259 = vsel %vm617, %v6086, 0
    %v6262 = vsel %vm617, %v6087, 0
    %v6265 = vsel %vm617, %v6088, 0
    %v6268 = vsel %vm617, %v6089, 0
    %v6271 = vsel %vm617, %v6090, 0
    %v6274 = vsel %vm617, %v6091, 0
    %v6277 = vsel %vm617, %v6092, 0
    %v6280 = vsel %vm617, %v6093, 0
    %v6283 = vsel %vm617, %v6094, 0
    %v6286 = vsel %vm617, %v6095, 0
    %v6289 = vsel %vm617, %v6096, 0
    %v6292 = vsel %vm617, %v6097, 0
    %v6295 = vsel %vm617, %v6098, 0
    %v6298 = vsel %vm617, %v6099, 0
    %6300 = vmatpush.msra.mxu0 0.0
    %6301 = vmatpush.msra.mxu0 0.0
    %6302 = vmatpush.msra.mxu0 0.0
    %6303 = vmatpush.msra.mxu0 0.0
    %6304 = vmatpush.msra.mxu0 0.0
    %6305 = vmatpush.msra.mxu0 0.0
    %6306 = vmatpush.msra.mxu0 0.0
    %6307 = vmatpush.msra.mxu0 0.0
    %6308 = vmatpush.msra.mxu0 0.0
    %6309 = vmatpush.msra.mxu0 0.0
    %6310 = vmatpush.msra.mxu0 0.0
    %6311 = vmatpush.msra.mxu0 0.0
    %6312 = vmatpush.msra.mxu0 %v6103
    %6313 = vmatpush.msra.mxu0 %v6102
    %6314 = vmatpush.msra.mxu0 %v6101
    %6315 = vmatpush.msra.mxu0 %v6100
    %6316 = vmatmul.f32.gmra.mxu0 %v6109
    %v6317 = vpop.f32.mrf.mxu0
    %v6318 = vadd.f32 %v6106, %v6317
    %6319 = vmatmul.f32.gmra.mxu0 %v6112
    %v6320 = vpop.f32.mrf.mxu0
    %v6321 = vadd.f32 %v6106, %v6320
    %6322 = vmatmul.f32.gmra.mxu0 %v6115
    %v6323 = vpop.f32.mrf.mxu0
    %v6324 = vadd.f32 %v6106, %v6323
    %6325 = vmatmul.f32.gmra.mxu0 %v6118
    %v6326 = vpop.f32.mrf.mxu0
    %v6327 = vadd.f32 %v6106, %v6326
    %6328 = vmatmul.f32.gmra.mxu0 %v6121
    %v6329 = vpop.f32.mrf.mxu0
    %v6330 = vadd.f32 %v6106, %v6329
    %6331 = vmatmul.f32.gmra.mxu0 %v6124
    %v6332 = vpop.f32.mrf.mxu0
    %v6333 = vadd.f32 %v6106, %v6332
    %6334 = vmatmul.f32.gmra.mxu0 %v6127
    %v6335 = vpop.f32.mrf.mxu0
    %v6336 = vadd.f32 %v6106, %v6335
    %6337 = vmatmul.f32.gmra.mxu0 %v6130
    %v6338 = vpop.f32.mrf.mxu0
    %v6339 = vadd.f32 %v6106, %v6338
    %6340 = vmatmul.f32.gmra.mxu0 %v6133
    %v6341 = vpop.f32.mrf.mxu0
    %v6342 = vadd.f32 %v6106, %v6341
    %6343 = vmatmul.f32.gmra.mxu0 %v6136
    %v6344 = vpop.f32.mrf.mxu0
    %v6345 = vadd.f32 %v6106, %v6344
    %6346 = vmatmul.f32.gmra.mxu0 %v6139
    %v6347 = vpop.f32.mrf.mxu0
    %v6348 = vadd.f32 %v6106, %v6347
    %6349 = vmatmul.f32.gmra.mxu0 %v6142
    %v6350 = vpop.f32.mrf.mxu0
    %v6351 = vadd.f32 %v6106, %v6350
    %6352 = vmatmul.f32.gmra.mxu0 %v6145
    %v6353 = vpop.f32.mrf.mxu0
    %v6354 = vadd.f32 %v6106, %v6353
    %6355 = vmatmul.f32.gmra.mxu0 %v6148
    %v6356 = vpop.f32.mrf.mxu0
    %v6357 = vadd.f32 %v6106, %v6356
    %6358 = vmatmul.f32.gmra.mxu0 %v6151
    %v6359 = vpop.f32.mrf.mxu0
    %v6360 = vadd.f32 %v6106, %v6359
    %6361 = vmatmul.f32.gmra.mxu0 %v6154
    %v6362 = vpop.f32.mrf.mxu0
    %v6363 = vadd.f32 %v6106, %v6362
    %6364 = vmatmul.f32.gmra.mxu0 %v6157
    %v6365 = vpop.f32.mrf.mxu0
    %v6366 = vadd.f32 %v6106, %v6365
    %6367 = vmatmul.f32.gmra.mxu0 %v6160
    %v6368 = vpop.f32.mrf.mxu0
    %v6369 = vadd.f32 %v6106, %v6368
    %6370 = vmatmul.f32.gmra.mxu0 %v6163
    %v6371 = vpop.f32.mrf.mxu0
    %v6372 = vadd.f32 %v6106, %v6371
    %6373 = vmatmul.f32.gmra.mxu0 %v6166
    %v6374 = vpop.f32.mrf.mxu0
    %v6375 = vadd.f32 %v6106, %v6374
    %6376 = vmatmul.f32.gmra.mxu0 %v6169
    %v6377 = vpop.f32.mrf.mxu0
    %v6378 = vadd.f32 %v6106, %v6377
    %6379 = vmatmul.f32.gmra.mxu0 %v6172
    %v6380 = vpop.f32.mrf.mxu0
    %v6381 = vadd.f32 %v6106, %v6380
    %6382 = vmatmul.f32.gmra.mxu0 %v6175
    %v6383 = vpop.f32.mrf.mxu0
    %v6384 = vadd.f32 %v6106, %v6383
    %6385 = vmatmul.f32.gmra.mxu0 %v6178
    %v6386 = vpop.f32.mrf.mxu0
    %v6387 = vadd.f32 %v6106, %v6386
    %6388 = vmatmul.f32.gmra.mxu0 %v6181
    %v6389 = vpop.f32.mrf.mxu0
    %v6390 = vadd.f32 %v6106, %v6389
    %6391 = vmatmul.f32.gmra.mxu0 %v6184
    %v6392 = vpop.f32.mrf.mxu0
    %v6393 = vadd.f32 %v6106, %v6392
    %6394 = vmatmul.f32.gmra.mxu0 %v6187
    %v6395 = vpop.f32.mrf.mxu0
    %v6396 = vadd.f32 %v6106, %v6395
    %6397 = vmatmul.f32.gmra.mxu0 %v6190
    %v6398 = vpop.f32.mrf.mxu0
    %v6399 = vadd.f32 %v6106, %v6398
    %6400 = vmatmul.f32.gmra.mxu0 %v6193
    %v6401 = vpop.f32.mrf.mxu0
    %v6402 = vadd.f32 %v6106, %v6401
    %6403 = vmatmul.f32.gmra.mxu0 %v6196
    %v6404 = vpop.f32.mrf.mxu0
    %v6405 = vadd.f32 %v6106, %v6404
    %6406 = vmatmul.f32.gmra.mxu0 %v6199
    %v6407 = vpop.f32.mrf.mxu0
    %v6408 = vadd.f32 %v6106, %v6407
    %6409 = vmatmul.f32.gmra.mxu0 %v6202
    %v6410 = vpop.f32.mrf.mxu0
    %v6411 = vadd.f32 %v6106, %v6410
    %6412 = vmatmul.f32.gmra.mxu0 %v6205
    %v6413 = vpop.f32.mrf.mxu0
    %v6414 = vadd.f32 %v6106, %v6413
    %6415 = vmatmul.f32.gmra.mxu0 %v6208
    %v6416 = vpop.f32.mrf.mxu0
    %v6417 = vadd.f32 %v6106, %v6416
    %6418 = vmatmul.f32.gmra.mxu0 %v6211
    %v6419 = vpop.f32.mrf.mxu0
    %v6420 = vadd.f32 %v6106, %v6419
    %6421 = vmatmul.f32.gmra.mxu0 %v6214
    %v6422 = vpop.f32.mrf.mxu0
    %v6423 = vadd.f32 %v6106, %v6422
    %6424 = vmatmul.f32.gmra.mxu0 %v6217
    %v6425 = vpop.f32.mrf.mxu0
    %v6426 = vadd.f32 %v6106, %v6425
    %6427 = vmatmul.f32.gmra.mxu0 %v6220
    %v6428 = vpop.f32.mrf.mxu0
    %v6429 = vadd.f32 %v6106, %v6428
    %6430 = vmatmul.f32.gmra.mxu0 %v6223
    %v6431 = vpop.f32.mrf.mxu0
    %v6432 = vadd.f32 %v6106, %v6431
    %6433 = vmatmul.f32.gmra.mxu0 %v6226
    %v6434 = vpop.f32.mrf.mxu0
    %v6435 = vadd.f32 %v6106, %v6434
    %6436 = vmatmul.f32.gmra.mxu0 %v6229
    %v6437 = vpop.f32.mrf.mxu0
    %v6438 = vadd.f32 %v6106, %v6437
    %6439 = vmatmul.f32.gmra.mxu0 %v6232
    %v6440 = vpop.f32.mrf.mxu0
    %v6441 = vadd.f32 %v6106, %v6440
    %6442 = vmatmul.f32.gmra.mxu0 %v6235
    %v6443 = vpop.f32.mrf.mxu0
    %v6444 = vadd.f32 %v6106, %v6443
    %6445 = vmatmul.f32.gmra.mxu0 %v6238
    %v6446 = vpop.f32.mrf.mxu0
    %v6447 = vadd.f32 %v6106, %v6446
    %6448 = vmatmul.f32.gmra.mxu0 %v6241
    %v6449 = vpop.f32.mrf.mxu0
    %v6450 = vadd.f32 %v6106, %v6449
    %6451 = vmatmul.f32.gmra.mxu0 %v6244
    %v6452 = vpop.f32.mrf.mxu0
    %v6453 = vadd.f32 %v6106, %v6452
    %6454 = vmatmul.f32.gmra.mxu0 %v6247
    %v6455 = vpop.f32.mrf.mxu0
    %v6456 = vadd.f32 %v6106, %v6455
    %6457 = vmatmul.f32.gmra.mxu0 %v6250
    %v6458 = vpop.f32.mrf.mxu0
    %v6459 = vadd.f32 %v6106, %v6458
    %6460 = vmatmul.f32.gmra.mxu0 %v6253
    %v6461 = vpop.f32.mrf.mxu0
    %v6462 = vadd.f32 %v6106, %v6461
    %6463 = vmatmul.f32.gmra.mxu0 %v6256
    %v6464 = vpop.f32.mrf.mxu0
    %v6465 = vadd.f32 %v6106, %v6464
    %6466 = vmatmul.f32.gmra.mxu0 %v6259
    %v6467 = vpop.f32.mrf.mxu0
    %v6468 = vadd.f32 %v6106, %v6467
    %6469 = vmatmul.f32.gmra.mxu0 %v6262
    %v6470 = vpop.f32.mrf.mxu0
    %v6471 = vadd.f32 %v6106, %v6470
    %6472 = vmatmul.f32.gmra.mxu0 %v6265
    %v6473 = vpop.f32.mrf.mxu0
    %v6474 = vadd.f32 %v6106, %v6473
    %6475 = vmatmul.f32.gmra.mxu0 %v6268
    %v6476 = vpop.f32.mrf.mxu0
    %v6477 = vadd.f32 %v6106, %v6476
    %6478 = vmatmul.f32.gmra.mxu0 %v6271
    %v6479 = vpop.f32.mrf.mxu0
    %v6480 = vadd.f32 %v6106, %v6479
    %6481 = vmatmul.f32.gmra.mxu0 %v6274
    %v6482 = vpop.f32.mrf.mxu0
    %v6483 = vadd.f32 %v6106, %v6482
    %6484 = vmatmul.f32.gmra.mxu0 %v6277
    %v6485 = vpop.f32.mrf.mxu0
    %v6486 = vadd.f32 %v6106, %v6485
    %6487 = vmatmul.f32.gmra.mxu0 %v6280
    %v6488 = vpop.f32.mrf.mxu0
    %v6489 = vadd.f32 %v6106, %v6488
    %6490 = vmatmul.f32.gmra.mxu0 %v6283
    %v6491 = vpop.f32.mrf.mxu0
    %v6492 = vadd.f32 %v6106, %v6491
    %6493 = vmatmul.f32.gmra.mxu0 %v6286
    %v6494 = vpop.f32.mrf.mxu0
    %v6495 = vadd.f32 %v6106, %v6494
    %6496 = vmatmul.f32.gmra.mxu0 %v6289
    %v6497 = vpop.f32.mrf.mxu0
    %v6498 = vadd.f32 %v6106, %v6497
    %6499 = vmatmul.f32.gmra.mxu0 %v6292
    %v6500 = vpop.f32.mrf.mxu0
    %v6501 = vadd.f32 %v6106, %v6500
    %6502 = vmatmul.f32.gmra.mxu0 %v6295
    %v6503 = vpop.f32.mrf.mxu0
    %v6504 = vadd.f32 %v6106, %v6503
    %6505 = vmatmul.f32.gmra.mxu0 %v6298
    %v6506 = vpop.f32.mrf.mxu0
    %v6507 = vadd.f32 %v6106, %v6506
    %6508 = vdwg.mxu0
    %6509 = vst.msk [vmem:[%s23] sm:$0xff] %vm139, %v6318
    %6510 = vst.msk [vmem:[%s23 + $0x8] sm:$0xff] %vm139, %v6321
    %6511 = vst.msk [vmem:[%s23 + $0x10] sm:$0xff] %vm139, %v6324
    %6512 = vst.msk [vmem:[%s23 + $0x18] sm:$0xff] %vm139, %v6327
    %6513 = vst.msk [vmem:[%s23 + $0x20] sm:$0xff] %vm139, %v6330
    %6514 = vst.msk [vmem:[%s23 + $0x28] sm:$0xff] %vm139, %v6333
    %6515 = vst.msk [vmem:[%s23 + $0x30] sm:$0xff] %vm139, %v6336
    %6516 = vst.msk [vmem:[%s23 + $0x38] sm:$0xff] %vm139, %v6339
    %6517 = vst.msk [vmem:[%s23 + $0x40] sm:$0xff] %vm139, %v6342
    %6518 = vst.msk [vmem:[%s23 + $0x48] sm:$0xff] %vm139, %v6345
    %6519 = vst.msk [vmem:[%s23 + $0x50] sm:$0xff] %vm139, %v6348
    %6520 = vst.msk [vmem:[%s23 + $0x58] sm:$0xff] %vm139, %v6351
    %6521 = vst.msk [vmem:[%s23 + $0x60] sm:$0xff] %vm139, %v6354
    %6522 = vst.msk [vmem:[%s23 + $0x68] sm:$0xff] %vm139, %v6357
    %6523 = vst.msk [vmem:[%s23 + $0x70] sm:$0xff] %vm139, %v6360
    %6524 = vst.msk [vmem:[%s23 + $0x78] sm:$0xff] %vm139, %v6363
    %6525 = vst.msk [vmem:[%s23 + $0x80] sm:$0xff] %vm139, %v6366
    %6526 = vst.msk [vmem:[%s23 + $0x88] sm:$0xff] %vm139, %v6369
    %6527 = vst.msk [vmem:[%s23 + $0x90] sm:$0xff] %vm139, %v6372
    %6528 = vst.msk [vmem:[%s23 + $0x98] sm:$0xff] %vm139, %v6375
    %6529 = vst.msk [vmem:[%s23 + $0xa0] sm:$0xff] %vm139, %v6378
    %6530 = vst.msk [vmem:[%s23 + $0xa8] sm:$0xff] %vm139, %v6381
    %6531 = vst.msk [vmem:[%s23 + $0xb0] sm:$0xff] %vm139, %v6384
    %6532 = vst.msk [vmem:[%s23 + $0xb8] sm:$0xff] %vm139, %v6387
    %6533 = vst.msk [vmem:[%s23 + $0xc0] sm:$0xff] %vm139, %v6390
    %6534 = vst.msk [vmem:[%s23 + $0xc8] sm:$0xff] %vm139, %v6393
    %6535 = vst.msk [vmem:[%s23 + $0xd0] sm:$0xff] %vm139, %v6396
    %6536 = vst.msk [vmem:[%s23 + $0xd8] sm:$0xff] %vm139, %v6399
    %6537 = vst.msk [vmem:[%s23 + $0xe0] sm:$0xff] %vm139, %v6402
    %6538 = vst.msk [vmem:[%s23 + $0xe8] sm:$0xff] %vm139, %v6405
    %6539 = vst.msk [vmem:[%s23 + $0xf0] sm:$0xff] %vm139, %v6408
    %6540 = vst.msk [vmem:[%s23 + $0xf8] sm:$0xff] %vm139, %v6411
    %6541 = vst.msk [vmem:[%s23 + $0x100] sm:$0xff] %vm139, %v6414
    %6542 = vst.msk [vmem:[%s23 + $0x108] sm:$0xff] %vm139, %v6417
    %6543 = vst.msk [vmem:[%s23 + $0x110] sm:$0xff] %vm139, %v6420
    %6544 = vst.msk [vmem:[%s23 + $0x118] sm:$0xff] %vm139, %v6423
    %6545 = vst.msk [vmem:[%s23 + $0x120] sm:$0xff] %vm139, %v6426
    %6546 = vst.msk [vmem:[%s23 + $0x128] sm:$0xff] %vm139, %v6429
    %6547 = vst.msk [vmem:[%s23 + $0x130] sm:$0xff] %vm139, %v6432
    %6548 = vst.msk [vmem:[%s23 + $0x138] sm:$0xff] %vm139, %v6435
    %6549 = vst.msk [vmem:[%s23 + $0x140] sm:$0xff] %vm139, %v6438
    %6550 = vst.msk [vmem:[%s23 + $0x148] sm:$0xff] %vm139, %v6441
    %6551 = vst.msk [vmem:[%s23 + $0x150] sm:$0xff] %vm139, %v6444
    %6552 = vst.msk [vmem:[%s23 + $0x158] sm:$0xff] %vm139, %v6447
    %6553 = vst.msk [vmem:[%s23 + $0x160] sm:$0xff] %vm139, %v6450
    %6554 = vst.msk [vmem:[%s23 + $0x168] sm:$0xff] %vm139, %v6453
    %6555 = vst.msk [vmem:[%s23 + $0x170] sm:$0xff] %vm139, %v6456
    %6556 = vst.msk [vmem:[%s23 + $0x178] sm:$0xff] %vm139, %v6459
    %6557 = vst.msk [vmem:[%s23 + $0x180] sm:$0xff] %vm139, %v6462
    %6558 = vst.msk [vmem:[%s23 + $0x188] sm:$0xff] %vm139, %v6465
    %6559 = vst.msk [vmem:[%s23 + $0x190] sm:$0xff] %vm139, %v6468
    %6560 = vst.msk [vmem:[%s23 + $0x198] sm:$0xff] %vm139, %v6471
    %6561 = vst.msk [vmem:[%s23 + $0x1a0] sm:$0xff] %vm139, %v6474
    %6562 = vst.msk [vmem:[%s23 + $0x1a8] sm:$0xff] %vm139, %v6477
    %6563 = vst.msk [vmem:[%s23 + $0x1b0] sm:$0xff] %vm139, %v6480
    %6564 = vst.msk [vmem:[%s23 + $0x1b8] sm:$0xff] %vm139, %v6483
    %6565 = vst.msk [vmem:[%s23 + $0x1c0] sm:$0xff] %vm139, %v6486
    %6566 = vst.msk [vmem:[%s23 + $0x1c8] sm:$0xff] %vm139, %v6489
    %6567 = vst.msk [vmem:[%s23 + $0x1d0] sm:$0xff] %vm139, %v6492
    %6568 = vst.msk [vmem:[%s23 + $0x1d8] sm:$0xff] %vm139, %v6495
    %6569 = vst.msk [vmem:[%s23 + $0x1e0] sm:$0xff] %vm139, %v6498
    %6570 = vst.msk [vmem:[%s23 + $0x1e8] sm:$0xff] %vm139, %v6501
    %6571 = vst.msk [vmem:[%s23 + $0x1f0] sm:$0xff] %vm139, %v6504
    %6572 = vst.msk [vmem:[%s23 + $0x1f8] sm:$0xff] %vm139, %v6507
    // Predicated region
    $region82: #{vqvae_forward.1} parent=1 // pred_check
      _
    $region83: #{vqvae_forward.1} parent=1 // pred_check_branch
      %6574 = sbr.rel (0) target = $region85
    $region84: #{vqvae_forward.1} parent=1 // pred_region
      _
    $region85: #{vqvae_forward.1} parent=1 // pred_fallthru
      _
    // Predicated region
    $region86: #{vqvae_forward.1} parent=1 // pred_check
      _
    $region87: #{vqvae_forward.1} parent=1 // pred_check_branch
      %6576 = sbr.rel (0) target = $region89
    $region88: #{vqvae_forward.1} parent=1 // pred_region
      %6578 = vsyncadd [#allocation3], 0
      %s6580 = sshll.u32 [#allocation2], 4
      %s6581 = int_to_ptr.vmem [resolvable:$true] %s6580
      %s6582 = sshll.u32 %s21, 4
      %s6583 = int_to_ptr.hbm [resolvable:$true] %s6582
      %6585 = dma.vmem_to_hbm [thread:$0]  %s6581, 64, %s6583, [#allocation3]
    $region89: #{vqvae_forward.1} parent=1 // pred_fallthru
      _
    // Predicated region
    $region90: #{vqvae_forward.1} parent=1 // pred_check
      _
    $region91: #{vqvae_forward.1} parent=1 // pred_check_branch
      %6587 = sbr.rel (0) target = $region93
    $region92: #{vqvae_forward.1} parent=1 // pred_region
      _
    $region93: #{vqvae_forward.1} parent=1 // pred_fallthru
      _
    // Predicated region
    $region94: #{vqvae_forward.1} parent=1 // pred_check
      _
    $region95: #{vqvae_forward.1} parent=1 // pred_check_branch
      %6589 = sbr.rel (0) target = $region97
    $region96: #{vqvae_forward.1} parent=1 // pred_region
      _
    $region97: #{vqvae_forward.1} parent=1 // pred_fallthru
      _
    // Predicated region
    $region98: #{vqvae_forward.1} parent=1 // pred_check
      _
    $region99: #{vqvae_forward.1} parent=1 // pred_check_branch
      %6591 = sbr.rel (0) target = $region101
    $region100: #{vqvae_forward.1} parent=1 // pred_region
      _
    $region101: #{vqvae_forward.1} parent=1 // pred_fallthru
      _
    // Predicated region
    $region102: #{vqvae_forward.1} parent=1 // pred_check
      _
    $region103: #{vqvae_forward.1} parent=1 // pred_check_branch
      %6593 = sbr.rel (0) target = $region105
    $region104: #{vqvae_forward.1} parent=1 // pred_region
      %6595 = dma.done [#allocation3], 64
    $region105: #{vqvae_forward.1} parent=1 // pred_fallthru
      _
    // Predicated region
    $region106: #{vqvae_forward.1} parent=1 // pred_check
      _
    $region107: #{vqvae_forward.1} parent=1 // pred_check_branch
      %6597 = sbr.rel (0) target = $region109
    $region108: #{vqvae_forward.1} parent=1 // pred_region
      _
    $region109: #{vqvae_forward.1} parent=1 // pred_fallthru
      _
    // Predicated region
    $region110: #{vqvae_forward.1} parent=1 // pred_check
      _
    $region111: #{vqvae_forward.1} parent=1 // pred_check_branch
      %6599 = sbr.rel (0) target = $region113
    $region112: #{vqvae_forward.1} parent=1 // pred_region
      _
    $region113: #{vqvae_forward.1} parent=1 // pred_fallthru
      _
    %6600 = vsyncpa [#allocation3], 1

</llo_original>
